<compile_context>
chip_gen: v6e
topology: v6e:2x2x1
jax: 0.10.0
libtpu: 0.0.40
codegen_flags: <defaults>
</compile_context>

<pallas_src>
import jax
import jax.numpy as jnp
from jax import lax
from jax.experimental import pallas as pl
from jax.experimental.pallas import tpu as pltpu

_BN_EPS = 1e-5
_LANES = 128


# --------------------------- parameter preparation ---------------------------

def _bn_fold(gamma, beta, mean, var, conv_bias):
    s = gamma / jnp.sqrt(var + _BN_EPS)
    return s, (conv_bias - mean) * s + beta


def _pad2(a, rows, cols):
    return jnp.pad(a, ((0, rows - a.shape[0]), (0, cols - a.shape[1])))


def _pad_vec(v):
    return jnp.pad(v, (0, _LANES - v.shape[0])).reshape(1, _LANES).astype(jnp.float32)


def prepare_params(p):
    """Fold BN (eval mode) + bias into weights, pad Cout to 128 lanes, bf16-cast.

    Done once, outside the jitted forward.
    """
    kp = {}

    # conv1 (3x3, pad 1) + BN1: im2col weight (cin*9, 128); K left UNPADDED.
    s1, t1 = _bn_fold(p['g1'], p['be1'], p['m1'], p['v1'], p['b1'])
    cout1, cin, kh, kw = p['w1'].shape
    w1m = jnp.transpose(p['w1'], (2, 3, 1, 0)).reshape(kh * kw * cin, cout1)
    kp['w1'] = (w1m * s1[None, :]).astype(jnp.bfloat16)            # (9*cin, 128)
    kp['s1'] = t1.reshape(1, _LANES).astype(jnp.float32)

    # conv2 (3x3, stride 2, pad 1) + BN2: 9 tap blocks (128 in, 128 out-padded)
    s2, t2 = _bn_fold(p['g2'], p['be2'], p['m2'], p['v2'], p['b2'])
    taps = [_pad2(p['w2'][:, :, di, dj].T * s2[None, :], _LANES, _LANES)
            for di in range(3) for dj in range(3)]
    kp['w2'] = jnp.stack(taps, axis=0).astype(jnp.bfloat16)        # (9, 128, 128)
    kp['s2'] = _pad_vec(t2)

    # conv3 (3x3, valid) + BN3: 9 tap blocks (128, 128)
    s3, t3 = _bn_fold(p['g3'], p['be3'], p['m3'], p['v3'], p['b3'])
    taps = [_pad2(p['w3'][:, :, di, dj].T * s3[None, :], _LANES, _LANES)
            for di in range(3) for dj in range(3)]
    kp['w3'] = jnp.stack(taps, axis=0).astype(jnp.bfloat16)        # (9, 128, 128)
    kp['s3'] = _pad_vec(t3)

    # conv4 (1x1, no BN)
    kp['w4'] = _pad2(p['w4'][:, :, 0, 0].T, _LANES, _LANES).astype(jnp.bfloat16)
    kp['s4'] = _pad_vec(p['b4'])
    return kp


# ------------------------------ glue (pre-kernel) ----------------------------

def _conv1_patch_groups(x_nchw):
    """conv1 im2col patches grouped by output (h-parity, w-parity).

    Returns (4, N, h2*w2, cin*9) bf16.  Group g = 2*p + q holds the patches of
    the conv1 output positions with row parity (1-p) and col parity (1-q),
    ordered (row//2, col//2) — exactly the interior of parity plane (p, q) in
    the kernel's scratch, so the kernel can scatter conv1's output with four
    contiguous block stores.
    """
    n, cin, h, w = x_nchw.shape
    h2, w2 = h // 2, w // 2
    k1 = 9 * cin
    xh = jnp.transpose(x_nchw, (0, 2, 3, 1)).astype(jnp.float32)   # NHWC
    xp = jnp.pad(xh, ((0, 0), (1, 1), (1, 1), (0, 0)))
    taps = [xp[:, di:di + h, dj:dj + w, :] for di in range(3) for dj in range(3)]
    pat = jnp.concatenate(taps, axis=-1)                           # (n,h,w,9*cin)
    pat = pat.reshape(n, h2, 2, w2, 2, k1)                         # ih=2a+rp, iw=2b+cp
    groups = jnp.stack([pat[:, :, 1 - p, :, 1 - q, :]
                        for p in (0, 1) for q in (0, 1)], axis=0)  # (4,n,h2,w2,k1)
    return groups.reshape(4, n, h2 * w2, k1).astype(jnp.bfloat16)


def _pick_batch_tile(n, target=8):
    """Largest divisor of n that is <= target while keeping >= 2 grid steps
    (so v7x can shard the grid across both TensorCores)."""
    best = 1
    for d in range(1, min(n, target) + 1):
        if n % d == 0 and (n // d >= 2 or n == 1):
            best = d
    return best


# --------------------------------- forward -----------------------------------

def classifier_net1_forward(x, kp, *, batch_tile=None):
    n, cin, h, w = x.shape
    assert h % 4 == 0 and w % 4 == 0 and h >= 12 and w >= 12, "unsupported size"
    h2, w2 = h // 2, w // 2            # conv2 output spatial
    h3, w3 = h2 // 2, w2 // 2          # after 2x2 maxpool
    h4, w4 = h3 - 2, w3 - 2            # conv3 / conv4 output spatial
    k1 = kp['w1'].shape[0]             # cin * 9 (unpadded)
    bt = batch_tile if batch_tile is not None else _pick_batch_tile(n)
    assert n % bt == 0
    m1 = 4 * bt * h2 * w2              # conv1 matmul M (all parity groups)
    m2 = bt * h2 * w2                  # conv2 matmul M
    m3 = bt * h4 * w4                  # conv3 / conv4 matmul M

    def kernel(p1_ref, w1_ref, s1_ref, w2_ref, s2_ref, w3_ref, s3_ref,
               w4_ref, s4_ref, o_ref, scr):

        def elu(v):
            # ELU(alpha=1); clamp exp arg so the discarded branch stays finite.
            return jnp.where(v > 0.0, v, jnp.exp(jnp.minimum(v, 0.0)) - 1.0)

        # ---- zero the padding ring of the parity-plane scratch --------------
        # Re-done every step (tiny) so correctness holds when the parallel grid
        # is sharded across TensorCores; the interior is overwritten below.
        zrow = jnp.zeros((bt, 1, w2 + 1, _LANES), jnp.float32)
        zcol = jnp.zeros((bt, h2 + 1, 1, _LANES), jnp.float32)
        scr[0, :, 0:1, :, :] = zrow      # plane (p=0,q=0): top row
        scr[1, :, 0:1, :, :] = zrow      # plane (p=0,q=1): top row
        scr[0, :, :, 0:1, :] = zcol      # plane (p=0,q=0): left col
        scr[2, :, :, 0:1, :] = zcol      # plane (p=1,q=0): left col

        # ---- conv1 + BN + ELU : single MXU matmul over all parity groups ----
        p1 = p1_ref[...].reshape(m1, k1)                       # bf16, K = cin*9
        y1 = jnp.dot(p1, w1_ref[...], preferred_element_type=jnp.float32)
        y1 = elu(y1 + s1_ref[...])                             # (m1, 128) f32

        # Scatter into parity planes: group g = 2p+q -> interior offset (1-p, 1-q)
        # scr[p,q][b, A, Bc, :] == conv1_padded[b, 2A+p, 2Bc+q, :]
        for g in range(4):
            p_, q_ = g // 2, g % 2
            slab = y1[g * m2:(g + 1) * m2].reshape(bt, h2, w2, _LANES)
            scr[g, :, 1 - p_:1 - p_ + h2, 1 - q_:1 - q_ + w2, :] = slab

        # ---- conv2 (3x3, stride 2, pad 1) + BN + ELU : 9 tap-accumulate dots -
        acc2 = None
        for t in range(9):
            di, dj = t // 3, t % 3
            g = (di % 2) * 2 + (dj % 2)
            r0, c0 = di // 2, dj // 2
            tap = scr[g, :, r0:r0 + h2, c0:c0 + w2, :]         # (bt,h2,w2,128) f32
            tap = tap.reshape(m2, _LANES).astype(jnp.bfloat16)
            d = jnp.dot(tap, w2_ref[t], preferred_element_type=jnp.float32)
            acc2 = d if acc2 is None else acc2 + d
        y2 = elu(acc2 + s2_ref[...])                           # (m2, 128) f32

        # ---- maxpool 2x2 stride 2 : reshape + max (no per-column slicing) ----
        y2 = y2.reshape(bt, h3, 2, w2, _LANES)
        rmax = jnp.max(y2, axis=2)                             # (bt, h3, w2, 128)
        pooled = jnp.max(rmax.reshape(bt, h3, w3, 2, _LANES), axis=3)

        # ---- conv3 (3x3, valid) + BN + ELU : 9 tap-accumulate dots -----------
        acc3 = None
        for t in range(9):
            di, dj = t // 3, t % 3
            tap = pooled[:, di:di + h4, dj:dj + w4, :]         # (bt, h4, w4, 128)
            tap = tap.reshape(m3, _LANES).astype(jnp.bfloat16)
            d = jnp.dot(tap, w3_ref[t], preferred_element_type=jnp.float32)
            acc3 = d if acc3 is None else acc3 + d
        y3 = elu(acc3 + s3_ref[...]).astype(jnp.bfloat16)      # (m3, 128)

        # ---- conv4 (1x1) + ELU + global average pool --------------------------
        y4 = elu(jnp.dot(y3, w4_ref[...], preferred_element_type=jnp.float32)
                 + s4_ref[...])                                # (m3, 128) f32
        avg = jnp.mean(y4.reshape(bt, h4 * w4, _LANES), axis=1)   # (bt, 128)
        o_ref[...] = jnp.broadcast_to(avg[:, None, :], (bt, 8, _LANES))

    patches = _conv1_patch_groups(x)

    out = pl.pallas_call(
        kernel,
        out_shape=jax.ShapeDtypeStruct((n, 8, _LANES), jnp.float32),
        grid=(n // bt,),
        in_specs=[
            pl.BlockSpec((4, bt, h2 * w2, k1), lambda i: (0, i, 0, 0)),
            pl.BlockSpec((k1, _LANES), lambda i: (0, 0)),
            pl.BlockSpec((1, _LANES), lambda i: (0, 0)),
            pl.BlockSpec((9, _LANES, _LANES), lambda i: (0, 0, 0)),
            pl.BlockSpec((1, _LANES), lambda i: (0, 0)),
            pl.BlockSpec((9, _LANES, _LANES), lambda i: (0, 0, 0)),
            pl.BlockSpec((1, _LANES), lambda i: (0, 0)),
            pl.BlockSpec((_LANES, _LANES), lambda i: (0, 0)),
            pl.BlockSpec((1, _LANES), lambda i: (0, 0)),
        ],
        out_specs=pl.BlockSpec((bt, 8, _LANES), lambda i: (i, 0, 0)),
        scratch_shapes=[
            pltpu.VMEM((4, bt, h2 + 1, w2 + 1, _LANES), jnp.float32)],
        compiler_params=pltpu.CompilerParams(
            dimension_semantics=("parallel",),
            vmem_limit_bytes=32 * 1024 * 1024),
    )(patches, kp['w1'], kp['s1'], kp['w2'], kp['s2'],
      kp['w3'], kp['s3'], kp['w4'], kp['s4'])

    return out[:, 0, :6]                                        # (N, 6)


# --------------------------- parameter construction --------------------------

def init_params(key, cin):
    keys = iter(jax.random.split(key, 32))
    nk = lambda: next(keys)

    def conv(cout, cin_, k):
        fan = float(cin_ * k * k)
        w = jax.random.normal(nk(), (cout, cin_, k, k), jnp.float32) / jnp.sqrt(fan)
        b = 0.1 * jax.random.normal(nk(), (cout,), jnp.float32)
        return w, b

    def bn(c):
        g = 1.0 + 0.1 * jax.random.normal(nk(), (c,), jnp.float32)
        be = 0.1 * jax.random.normal(nk(), (c,), jnp.float32)
        m = 0.1 * jax.random.normal(nk(), (c,), jnp.float32)
        v = 0.5 + 0.5 * jnp.abs(jax.random.normal(nk(), (c,), jnp.float32))
        return g, be, m, v

    p = {}
    p['w1'], p['b1'] = conv(128, cin, 3)
    p['g1'], p['be1'], p['m1'], p['v1'] = bn(128)
    p['w2'], p['b2'] = conv(64, 128, 3)
    p['g2'], p['be2'], p['m2'], p['v2'] = bn(64)
    p['w3'], p['b3'] = conv(32, 64, 3)
    p['g3'], p['be3'], p['m3'], p['v3'] = bn(32)
    p['w4'], p['b4'] = conv(6, 32, 1)
    return p


# ------------------------- pure-JAX reference check --------------------------

def _ref_forward(x, p):
    def conv(x, w, b, stride, pad):
        y = lax.conv_general_dilated(
            x, w, window_strides=(stride, stride),
            padding=((pad, pad), (pad, pad)),
            dimension_numbers=('NCHW', 'OIHW', 'NCHW'),
            precision=lax.Precision.HIGHEST)
        return y + b[None, :, None, None]

    def bn(x, g, be, m, v):
        return ((x - m[None, :, None, None])
                / jnp.sqrt(v[None, :, None, None] + _BN_EPS)
                * g[None, :, None, None] + be[None, :, None, None])

    elu = jax.nn.elu
    x = elu(bn(conv(x, p['w1'], p['b1'], 1, 1), p['g1'], p['be1'], p['m1'], p['v1']))
    x = elu(bn(conv(x, p['w2'], p['b2'], 2, 1), p['g2'], p['be2'], p['m2'], p['v2']))
    x = lax.reduce_window(x, -jnp.inf, lax.max, (1, 1, 2, 2), (1, 1, 2, 2), 'VALID')
    x = elu(bn(conv(x, p['w3'], p['b3'], 1, 0), p['g3'], p['be3'], p['m3'], p['v3']))
    x = elu(conv(x, p['w4'], p['b4'], 1, 0))
    return jnp.mean(x, axis=(2, 3))


# ----------------------------------- main -------------------------------------

if __name__ == "__main__":
    key = jax.random.PRNGKey(0)
    k_x, k_p = jax.random.split(key)

    # N=4 exercises the batch-tiled path (B_tile=2, 2 grid steps).
    N, C, H, W = 4, 4, 16, 16
    x = jax.random.normal(k_x, (N, C, H, W), jnp.float32)
    params = init_params(k_p, C)
    kparams = prepare_params(params)           # BN fold / pad / bf16 cast, once

    fwd = jax.jit(classifier_net1_forward)
    out = jax.block_until_ready(fwd(x, kparams))

    assert out.shape == (N, 6), f"unexpected output shape {out.shape}"
    assert bool(jnp.all(jnp.isfinite(out)))

    ref = _ref_forward(x, params)
    # Tolerance accounts for bf16 matmul operands (f32 accumulation) vs an
    # all-f32 HIGHEST-precision reference.
    if not bool(jnp.allclose(out, ref, rtol=3e-2, atol=3e-2)):
        raise AssertionError(
            f"Pallas output does not match reference:\n{out}\nvs\n{ref}")

    print("KERNEL_OK")
</pallas_src>

<mosaic_0001>
module attributes {stable_mosaic.version = 11 : i64} {
  func.func @kernel(%arg0: i32, %arg1: memref<4x2x64x36xbf16, #tpu.memory_space<vmem>>, %arg2: memref<36x128xbf16, #tpu.memory_space<vmem>>, %arg3: memref<1x128xf32, #tpu.memory_space<vmem>>, %arg4: memref<9x128x128xbf16, #tpu.memory_space<vmem>>, %arg5: memref<1x128xf32, #tpu.memory_space<vmem>>, %arg6: memref<9x128x128xbf16, #tpu.memory_space<vmem>>, %arg7: memref<1x128xf32, #tpu.memory_space<vmem>>, %arg8: memref<128x128xbf16, #tpu.memory_space<vmem>>, %arg9: memref<1x128xf32, #tpu.memory_space<vmem>>, %arg10: memref<2x8x128xf32, #tpu.memory_space<vmem>>, %arg11: memref<4x2x9x9x128xf32, #tpu.memory_space<vmem>>) attributes {dimension_semantics = [#tpu.dimension_semantics<parallel>], iteration_bounds = array<i64: 2>, scalar_prefetch = 0 : i64, scratch_operands = 1 : i64, tpu.core_type = #tpu.core_type<tc>, window_params = [{transform_indices = @transform_0, window_bounds = array<i64: 4, 2, 64, 36>}, {pipeline_mode = #tpu.pipeline_mode<synchronous>, transform_indices = @transform_1, window_bounds = array<i64: 36, 128>}, {pipeline_mode = #tpu.pipeline_mode<synchronous>, transform_indices = @transform_2, window_bounds = array<i64: 1, 128>}, {pipeline_mode = #tpu.pipeline_mode<synchronous>, transform_indices = @transform_3, window_bounds = array<i64: 9, 128, 128>}, {pipeline_mode = #tpu.pipeline_mode<synchronous>, transform_indices = @transform_4, window_bounds = array<i64: 1, 128>}, {pipeline_mode = #tpu.pipeline_mode<synchronous>, transform_indices = @transform_5, window_bounds = array<i64: 9, 128, 128>}, {pipeline_mode = #tpu.pipeline_mode<synchronous>, transform_indices = @transform_6, window_bounds = array<i64: 1, 128>}, {pipeline_mode = #tpu.pipeline_mode<synchronous>, transform_indices = @transform_7, window_bounds = array<i64: 128, 128>}, {pipeline_mode = #tpu.pipeline_mode<synchronous>, transform_indices = @transform_8, window_bounds = array<i64: 1, 128>}, {transform_indices = @transform_9, window_bounds = array<i64: 2, 8, 128>}]} {
    %cst = arith.constant 0.000000e+00 : f32
    %0 = vector.broadcast %cst : f32 to vector<2x1x9x128xf32>
    %cst_0 = arith.constant 0.000000e+00 : f32
    %1 = vector.broadcast %cst_0 : f32 to vector<2x9x1x128xf32>
    %c0 = arith.constant 0 : index
    %c0_1 = arith.constant 0 : index
    %c0_2 = arith.constant 0 : index
    %c0_3 = arith.constant 0 : index
    %c0_4 = arith.constant 0 : index
    %2 = vector.load %arg11[%c0, %c0_1, %c0_2, %c0_3, %c0_4] : memref<4x2x9x9x128xf32, #tpu.memory_space<vmem>>, vector<1x2x1x9x128xf32>
    %3 = vector.shape_cast %2 : vector<1x2x1x9x128xf32> to vector<2x1x9x128xf32>
    %4 = vector.shape_cast %0 : vector<2x1x9x128xf32> to vector<1x2x1x9x128xf32>
    tpu.vector_store %arg11[%c0, %c0_1, %c0_2, %c0_3, %c0_4], %4 {strides = array<i32>} : memref<4x2x9x9x128xf32, #tpu.memory_space<vmem>>, vector<1x2x1x9x128xf32>,
    %c1 = arith.constant 1 : index
    %c0_5 = arith.constant 0 : index
    %c0_6 = arith.constant 0 : index
    %c0_7 = arith.constant 0 : index
    %c0_8 = arith.constant 0 : index
    %5 = vector.load %arg11[%c1, %c0_5, %c0_6, %c0_7, %c0_8] : memref<4x2x9x9x128xf32, #tpu.memory_space<vmem>>, vector<1x2x1x9x128xf32>
    %6 = vector.shape_cast %5 : vector<1x2x1x9x128xf32> to vector<2x1x9x128xf32>
    %7 = vector.shape_cast %0 : vector<2x1x9x128xf32> to vector<1x2x1x9x128xf32>
    tpu.vector_store %arg11[%c1, %c0_5, %c0_6, %c0_7, %c0_8], %7 {strides = array<i32>} : memref<4x2x9x9x128xf32, #tpu.memory_space<vmem>>, vector<1x2x1x9x128xf32>,
    %c0_9 = arith.constant 0 : index
    %c0_10 = arith.constant 0 : index
    %c0_11 = arith.constant 0 : index
    %c0_12 = arith.constant 0 : index
    %c0_13 = arith.constant 0 : index
    %8 = vector.load %arg11[%c0_9, %c0_10, %c0_11, %c0_12, %c0_13] : memref<4x2x9x9x128xf32, #tpu.memory_space<vmem>>, vector<1x2x9x1x128xf32>
    %9 = vector.shape_cast %8 : vector<1x2x9x1x128xf32> to vector<2x9x1x128xf32>
    %10 = vector.shape_cast %1 : vector<2x9x1x128xf32> to vector<1x2x9x1x128xf32>
    tpu.vector_store %arg11[%c0_9, %c0_10, %c0_11, %c0_12, %c0_13], %10 {strides = array<i32>} : memref<4x2x9x9x128xf32, #tpu.memory_space<vmem>>, vector<1x2x9x1x128xf32>,
    %c2 = arith.constant 2 : index
    %c0_14 = arith.constant 0 : index
    %c0_15 = arith.constant 0 : index
    %c0_16 = arith.constant 0 : index
    %c0_17 = arith.constant 0 : index
    %11 = vector.load %arg11[%c2, %c0_14, %c0_15, %c0_16, %c0_17] : memref<4x2x9x9x128xf32, #tpu.memory_space<vmem>>, vector<1x2x9x1x128xf32>
    %12 = vector.shape_cast %11 : vector<1x2x9x1x128xf32> to vector<2x9x1x128xf32>
    %13 = vector.shape_cast %1 : vector<2x9x1x128xf32> to vector<1x2x9x1x128xf32>
    tpu.vector_store %arg11[%c2, %c0_14, %c0_15, %c0_16, %c0_17], %13 {strides = array<i32>} : memref<4x2x9x9x128xf32, #tpu.memory_space<vmem>>, vector<1x2x9x1x128xf32>,
    %c0_18 = arith.constant 0 : index
    %c0_19 = arith.constant 0 : index
    %c0_20 = arith.constant 0 : index
    %c0_21 = arith.constant 0 : index
    %14 = vector.load %arg1[%c0_18, %c0_19, %c0_20, %c0_21] : memref<4x2x64x36xbf16, #tpu.memory_space<vmem>>, vector<4x2x64x36xbf16>
    %15 = vector.shape_cast %14 : vector<4x2x64x36xbf16> to vector<512x36xbf16>
    %c0_22 = arith.constant 0 : index
    %c0_23 = arith.constant 0 : index
    %16 = vector.load %arg2[%c0_22, %c0_23] : memref<36x128xbf16, #tpu.memory_space<vmem>>, vector<36x128xbf16>
    %cst_24 = arith.constant dense<0.000000e+00> : vector<512x128xf32>
    %17 = tpu.matmul %15, %16, %cst_24 {dimension_numbers = #tpu.dot_dimension_numbers<[1], [0], [0], [1], [0, 0, 1, 1], [], []>} : vector<512x36xbf16>, vector<36x128xbf16>, vector<512x128xf32> -> vector<512x128xf32>
    %c0_25 = arith.constant 0 : index
    %c0_26 = arith.constant 0 : index
    %18 = vector.load %arg3[%c0_25, %c0_26] : memref<1x128xf32, #tpu.memory_space<vmem>>, vector<1x128xf32>
    %19 = vector.broadcast %18 : vector<1x128xf32> to vector<512x128xf32>
    %20 = arith.addf %17, %19 : vector<512x128xf32>
    %cst_27 = arith.constant 0.000000e+00 : f32
    %21 = vector.broadcast %cst_27 : f32 to vector<512x128xf32>
    %22 = arith.cmpf ogt, %20, %21 : vector<512x128xf32>
    %cst_28 = arith.constant 0.000000e+00 : f32
    %23 = vector.broadcast %cst_28 : f32 to vector<512x128xf32>
    %24 = arith.minimumf %20, %23 : vector<512x128xf32>
    %25 = math.exp %24 : vector<512x128xf32>
    %cst_29 = arith.constant 1.000000e+00 : f32
    %26 = vector.broadcast %cst_29 : f32 to vector<512x128xf32>
    %27 = arith.subf %25, %26 : vector<512x128xf32>
    %28 = arith.select %22, %20, %27 : vector<512x128xi1>, vector<512x128xf32>
    %29 = vector.extract_strided_slice %28 {offsets = [0, 0], sizes = [128, 128], strides = [1, 1]} : vector<512x128xf32> to vector<128x128xf32>
    %30 = vector.shape_cast %29 : vector<128x128xf32> to vector<2x8x8x128xf32>
    %c0_30 = arith.constant 0 : index
    %c0_31 = arith.constant 0 : index
    %c1_32 = arith.constant 1 : index
    %c1_33 = arith.constant 1 : index
    %c0_34 = arith.constant 0 : index
    %31 = vector.load %arg11[%c0_30, %c0_31, %c1_32, %c1_33, %c0_34] : memref<4x2x9x9x128xf32, #tpu.memory_space<vmem>>, vector<1x2x8x8x128xf32>
    %32 = vector.shape_cast %31 : vector<1x2x8x8x128xf32> to vector<2x8x8x128xf32>
    %33 = vector.shape_cast %30 : vector<2x8x8x128xf32> to vector<1x2x8x8x128xf32>
    tpu.vector_store %arg11[%c0_30, %c0_31, %c1_32, %c1_33, %c0_34], %33 {strides = array<i32>} : memref<4x2x9x9x128xf32, #tpu.memory_space<vmem>>, vector<1x2x8x8x128xf32>,
    %34 = vector.extract_strided_slice %28 {offsets = [128, 0], sizes = [128, 128], strides = [1, 1]} : vector<512x128xf32> to vector<128x128xf32>
    %35 = vector.shape_cast %34 : vector<128x128xf32> to vector<2x8x8x128xf32>
    %c1_35 = arith.constant 1 : index
    %c0_36 = arith.constant 0 : index
    %c1_37 = arith.constant 1 : index
    %c0_38 = arith.constant 0 : index
    %c0_39 = arith.constant 0 : index
    %36 = vector.load %arg11[%c1_35, %c0_36, %c1_37, %c0_38, %c0_39] : memref<4x2x9x9x128xf32, #tpu.memory_space<vmem>>, vector<1x2x8x8x128xf32>
    %37 = vector.shape_cast %36 : vector<1x2x8x8x128xf32> to vector<2x8x8x128xf32>
    %38 = vector.shape_cast %35 : vector<2x8x8x128xf32> to vector<1x2x8x8x128xf32>
    tpu.vector_store %arg11[%c1_35, %c0_36, %c1_37, %c0_38, %c0_39], %38 {strides = array<i32>} : memref<4x2x9x9x128xf32, #tpu.memory_space<vmem>>, vector<1x2x8x8x128xf32>,
    %39 = vector.extract_strided_slice %28 {offsets = [256, 0], sizes = [128, 128], strides = [1, 1]} : vector<512x128xf32> to vector<128x128xf32>
    %40 = vector.shape_cast %39 : vector<128x128xf32> to vector<2x8x8x128xf32>
    %c2_40 = arith.constant 2 : index
    %c0_41 = arith.constant 0 : index
    %c0_42 = arith.constant 0 : index
    %c1_43 = arith.constant 1 : index
    %c0_44 = arith.constant 0 : index
    %41 = vector.load %arg11[%c2_40, %c0_41, %c0_42, %c1_43, %c0_44] : memref<4x2x9x9x128xf32, #tpu.memory_space<vmem>>, vector<1x2x8x8x128xf32>
    %42 = vector.shape_cast %41 : vector<1x2x8x8x128xf32> to vector<2x8x8x128xf32>
    %43 = vector.shape_cast %40 : vector<2x8x8x128xf32> to vector<1x2x8x8x128xf32>
    tpu.vector_store %arg11[%c2_40, %c0_41, %c0_42, %c1_43, %c0_44], %43 {strides = array<i32>} : memref<4x2x9x9x128xf32, #tpu.memory_space<vmem>>, vector<1x2x8x8x128xf32>,
    %44 = vector.extract_strided_slice %28 {offsets = [384, 0], sizes = [128, 128], strides = [1, 1]} : vector<512x128xf32> to vector<128x128xf32>
    %45 = vector.shape_cast %44 : vector<128x128xf32> to vector<2x8x8x128xf32>
    %c3 = arith.constant 3 : index
    %c0_45 = arith.constant 0 : index
    %c0_46 = arith.constant 0 : index
    %c0_47 = arith.constant 0 : index
    %c0_48 = arith.constant 0 : index
    %46 = vector.load %arg11[%c3, %c0_45, %c0_46, %c0_47, %c0_48] : memref<4x2x9x9x128xf32, #tpu.memory_space<vmem>>, vector<1x2x8x8x128xf32>
    %47 = vector.shape_cast %46 : vector<1x2x8x8x128xf32> to vector<2x8x8x128xf32>
    %48 = vector.shape_cast %45 : vector<2x8x8x128xf32> to vector<1x2x8x8x128xf32>
    tpu.vector_store %arg11[%c3, %c0_45, %c0_46, %c0_47, %c0_48], %48 {strides = array<i32>} : memref<4x2x9x9x128xf32, #tpu.memory_space<vmem>>, vector<1x2x8x8x128xf32>,
    %c0_49 = arith.constant 0 : index
    %c0_50 = arith.constant 0 : index
    %c0_51 = arith.constant 0 : index
    %c0_52 = arith.constant 0 : index
    %c0_53 = arith.constant 0 : index
    %49 = vector.load %arg11[%c0_49, %c0_50, %c0_51, %c0_52, %c0_53] : memref<4x2x9x9x128xf32, #tpu.memory_space<vmem>>, vector<1x2x8x8x128xf32>
    %50 = vector.shape_cast %49 : vector<1x2x8x8x128xf32> to vector<2x8x8x128xf32>
    %51 = vector.shape_cast %50 : vector<2x8x8x128xf32> to vector<128x128xf32>
    %52 = arith.truncf %51 : vector<128x128xf32> to vector<128x128xbf16>
    %c0_54 = arith.constant 0 : index
    %c0_55 = arith.constant 0 : index
    %c0_56 = arith.constant 0 : index
    %53 = vector.load %arg4[%c0_54, %c0_55, %c0_56] : memref<9x128x128xbf16, #tpu.memory_space<vmem>>, vector<1x128x128xbf16>
    %54 = vector.shape_cast %53 : vector<1x128x128xbf16> to vector<128x128xbf16>
    %cst_57 = arith.constant dense<0.000000e+00> : vector<128x128xf32>
    %55 = tpu.matmul %52, %54, %cst_57 {dimension_numbers = #tpu.dot_dimension_numbers<[1], [0], [0], [1], [0, 0, 1, 1], [], []>} : vector<128x128xbf16>, vector<128x128xbf16>, vector<128x128xf32> -> vector<128x128xf32>
    %c1_58 = arith.constant 1 : index
    %c0_59 = arith.constant 0 : index
    %c0_60 = arith.constant 0 : index
    %c0_61 = arith.constant 0 : index
    %c0_62 = arith.constant 0 : index
    %56 = vector.load %arg11[%c1_58, %c0_59, %c0_60, %c0_61, %c0_62] : memref<4x2x9x9x128xf32, #tpu.memory_space<vmem>>, vector<1x2x8x8x128xf32>
    %57 = vector.shape_cast %56 : vector<1x2x8x8x128xf32> to vector<2x8x8x128xf32>
    %58 = vector.shape_cast %57 : vector<2x8x8x128xf32> to vector<128x128xf32>
    %59 = arith.truncf %58 : vector<128x128xf32> to vector<128x128xbf16>
    %c1_63 = arith.constant 1 : index
    %c0_64 = arith.constant 0 : index
    %c0_65 = arith.constant 0 : index
    %60 = vector.load %arg4[%c1_63, %c0_64, %c0_65] : memref<9x128x128xbf16, #tpu.memory_space<vmem>>, vector<1x128x128xbf16>
    %61 = vector.shape_cast %60 : vector<1x128x128xbf16> to vector<128x128xbf16>
    %cst_66 = arith.constant dense<0.000000e+00> : vector<128x128xf32>
    %62 = tpu.matmul %59, %61, %cst_66 {dimension_numbers = #tpu.dot_dimension_numbers<[1], [0], [0], [1], [0, 0, 1, 1], [], []>} : vector<128x128xbf16>, vector<128x128xbf16>, vector<128x128xf32> -> vector<128x128xf32>
    %63 = arith.addf %55, %62 : vector<128x128xf32>
    %c0_67 = arith.constant 0 : index
    %c0_68 = arith.constant 0 : index
    %c0_69 = arith.constant 0 : index
    %c1_70 = arith.constant 1 : index
    %c0_71 = arith.constant 0 : index
    %64 = vector.load %arg11[%c0_67, %c0_68, %c0_69, %c1_70, %c0_71] : memref<4x2x9x9x128xf32, #tpu.memory_space<vmem>>, vector<1x2x8x8x128xf32>
    %65 = vector.shape_cast %64 : vector<1x2x8x8x128xf32> to vector<2x8x8x128xf32>
    %66 = vector.shape_cast %65 : vector<2x8x8x128xf32> to vector<128x128xf32>
    %67 = arith.truncf %66 : vector<128x128xf32> to vector<128x128xbf16>
    %c2_72 = arith.constant 2 : index
    %c0_73 = arith.constant 0 : index
    %c0_74 = arith.constant 0 : index
    %68 = vector.load %arg4[%c2_72, %c0_73, %c0_74] : memref<9x128x128xbf16, #tpu.memory_space<vmem>>, vector<1x128x128xbf16>
    %69 = vector.shape_cast %68 : vector<1x128x128xbf16> to vector<128x128xbf16>
    %cst_75 = arith.constant dense<0.000000e+00> : vector<128x128xf32>
    %70 = tpu.matmul %67, %69, %cst_75 {dimension_numbers = #tpu.dot_dimension_numbers<[1], [0], [0], [1], [0, 0, 1, 1], [], []>} : vector<128x128xbf16>, vector<128x128xbf16>, vector<128x128xf32> -> vector<128x128xf32>
    %71 = arith.addf %63, %70 : vector<128x128xf32>
    %c2_76 = arith.constant 2 : index
    %c0_77 = arith.constant 0 : index
    %c0_78 = arith.constant 0 : index
    %c0_79 = arith.constant 0 : index
    %c0_80 = arith.constant 0 : index
    %72 = vector.load %arg11[%c2_76, %c0_77, %c0_78, %c0_79, %c0_80] : memref<4x2x9x9x128xf32, #tpu.memory_space<vmem>>, vector<1x2x8x8x128xf32>
    %73 = vector.shape_cast %72 : vector<1x2x8x8x128xf32> to vector<2x8x8x128xf32>
    %74 = vector.shape_cast %73 : vector<2x8x8x128xf32> to vector<128x128xf32>
    %75 = arith.truncf %74 : vector<128x128xf32> to vector<128x128xbf16>
    %c3_81 = arith.constant 3 : index
    %c0_82 = arith.constant 0 : index
    %c0_83 = arith.constant 0 : index
    %76 = vector.load %arg4[%c3_81, %c0_82, %c0_83] : memref<9x128x128xbf16, #tpu.memory_space<vmem>>, vector<1x128x128xbf16>
    %77 = vector.shape_cast %76 : vector<1x128x128xbf16> to vector<128x128xbf16>
    %cst_84 = arith.constant dense<0.000000e+00> : vector<128x128xf32>
    %78 = tpu.matmul %75, %77, %cst_84 {dimension_numbers = #tpu.dot_dimension_numbers<[1], [0], [0], [1], [0, 0, 1, 1], [], []>} : vector<128x128xbf16>, vector<128x128xbf16>, vector<128x128xf32> -> vector<128x128xf32>
    %79 = arith.addf %71, %78 : vector<128x128xf32>
    %c3_85 = arith.constant 3 : index
    %c0_86 = arith.constant 0 : index
    %c0_87 = arith.constant 0 : index
    %c0_88 = arith.constant 0 : index
    %c0_89 = arith.constant 0 : index
    %80 = vector.load %arg11[%c3_85, %c0_86, %c0_87, %c0_88, %c0_89] : memref<4x2x9x9x128xf32, #tpu.memory_space<vmem>>, vector<1x2x8x8x128xf32>
    %81 = vector.shape_cast %80 : vector<1x2x8x8x128xf32> to vector<2x8x8x128xf32>
    %82 = vector.shape_cast %81 : vector<2x8x8x128xf32> to vector<128x128xf32>
    %83 = arith.truncf %82 : vector<128x128xf32> to vector<128x128xbf16>
    %c4 = arith.constant 4 : index
    %c0_90 = arith.constant 0 : index
    %c0_91 = arith.constant 0 : index
    %84 = vector.load %arg4[%c4, %c0_90, %c0_91] : memref<9x128x128xbf16, #tpu.memory_space<vmem>>, vector<1x128x128xbf16>
    %85 = vector.shape_cast %84 : vector<1x128x128xbf16> to vector<128x128xbf16>
    %cst_92 = arith.constant dense<0.000000e+00> : vector<128x128xf32>
    %86 = tpu.matmul %83, %85, %cst_92 {dimension_numbers = #tpu.dot_dimension_numbers<[1], [0], [0], [1], [0, 0, 1, 1], [], []>} : vector<128x128xbf16>, vector<128x128xbf16>, vector<128x128xf32> -> vector<128x128xf32>
    %87 = arith.addf %79, %86 : vector<128x128xf32>
    %c2_93 = arith.constant 2 : index
    %c0_94 = arith.constant 0 : index
    %c0_95 = arith.constant 0 : index
    %c1_96 = arith.constant 1 : index
    %c0_97 = arith.constant 0 : index
    %88 = vector.load %arg11[%c2_93, %c0_94, %c0_95, %c1_96, %c0_97] : memref<4x2x9x9x128xf32, #tpu.memory_space<vmem>>, vector<1x2x8x8x128xf32>
    %89 = vector.shape_cast %88 : vector<1x2x8x8x128xf32> to vector<2x8x8x128xf32>
    %90 = vector.shape_cast %89 : vector<2x8x8x128xf32> to vector<128x128xf32>
    %91 = arith.truncf %90 : vector<128x128xf32> to vector<128x128xbf16>
    %c5 = arith.constant 5 : index
    %c0_98 = arith.constant 0 : index
    %c0_99 = arith.constant 0 : index
    %92 = vector.load %arg4[%c5, %c0_98, %c0_99] : memref<9x128x128xbf16, #tpu.memory_space<vmem>>, vector<1x128x128xbf16>
    %93 = vector.shape_cast %92 : vector<1x128x128xbf16> to vector<128x128xbf16>
    %cst_100 = arith.constant dense<0.000000e+00> : vector<128x128xf32>
    %94 = tpu.matmul %91, %93, %cst_100 {dimension_numbers = #tpu.dot_dimension_numbers<[1], [0], [0], [1], [0, 0, 1, 1], [], []>} : vector<128x128xbf16>, vector<128x128xbf16>, vector<128x128xf32> -> vector<128x128xf32>
    %95 = arith.addf %87, %94 : vector<128x128xf32>
    %c0_101 = arith.constant 0 : index
    %c0_102 = arith.constant 0 : index
    %c1_103 = arith.constant 1 : index
    %c0_104 = arith.constant 0 : index
    %c0_105 = arith.constant 0 : index
    %96 = vector.load %arg11[%c0_101, %c0_102, %c1_103, %c0_104, %c0_105] : memref<4x2x9x9x128xf32, #tpu.memory_space<vmem>>, vector<1x2x8x8x128xf32>
    %97 = vector.shape_cast %96 : vector<1x2x8x8x128xf32> to vector<2x8x8x128xf32>
    %98 = vector.shape_cast %97 : vector<2x8x8x128xf32> to vector<128x128xf32>
    %99 = arith.truncf %98 : vector<128x128xf32> to vector<128x128xbf16>
    %c6 = arith.constant 6 : index
    %c0_106 = arith.constant 0 : index
    %c0_107 = arith.constant 0 : index
    %100 = vector.load %arg4[%c6, %c0_106, %c0_107] : memref<9x128x128xbf16, #tpu.memory_space<vmem>>, vector<1x128x128xbf16>
    %101 = vector.shape_cast %100 : vector<1x128x128xbf16> to vector<128x128xbf16>
    %cst_108 = arith.constant dense<0.000000e+00> : vector<128x128xf32>
    %102 = tpu.matmul %99, %101, %cst_108 {dimension_numbers = #tpu.dot_dimension_numbers<[1], [0], [0], [1], [0, 0, 1, 1], [], []>} : vector<128x128xbf16>, vector<128x128xbf16>, vector<128x128xf32> -> vector<128x128xf32>
    %103 = arith.addf %95, %102 : vector<128x128xf32>
    %c1_109 = arith.constant 1 : index
    %c0_110 = arith.constant 0 : index
    %c1_111 = arith.constant 1 : index
    %c0_112 = arith.constant 0 : index
    %c0_113 = arith.constant 0 : index
    %104 = vector.load %arg11[%c1_109, %c0_110, %c1_111, %c0_112, %c0_113] : memref<4x2x9x9x128xf32, #tpu.memory_space<vmem>>, vector<1x2x8x8x128xf32>
    %105 = vector.shape_cast %104 : vector<1x2x8x8x128xf32> to vector<2x8x8x128xf32>
    %106 = vector.shape_cast %105 : vector<2x8x8x128xf32> to vector<128x128xf32>
    %107 = arith.truncf %106 : vector<128x128xf32> to vector<128x128xbf16>
    %c7 = arith.constant 7 : index
    %c0_114 = arith.constant 0 : index
    %c0_115 = arith.constant 0 : index
    %108 = vector.load %arg4[%c7, %c0_114, %c0_115] : memref<9x128x128xbf16, #tpu.memory_space<vmem>>, vector<1x128x128xbf16>
    %109 = vector.shape_cast %108 : vector<1x128x128xbf16> to vector<128x128xbf16>
    %cst_116 = arith.constant dense<0.000000e+00> : vector<128x128xf32>
    %110 = tpu.matmul %107, %109, %cst_116 {dimension_numbers = #tpu.dot_dimension_numbers<[1], [0], [0], [1], [0, 0, 1, 1], [], []>} : vector<128x128xbf16>, vector<128x128xbf16>, vector<128x128xf32> -> vector<128x128xf32>
    %111 = arith.addf %103, %110 : vector<128x128xf32>
    %c0_117 = arith.constant 0 : index
    %c0_118 = arith.constant 0 : index
    %c1_119 = arith.constant 1 : index
    %c1_120 = arith.constant 1 : index
    %c0_121 = arith.constant 0 : index
    %112 = vector.load %arg11[%c0_117, %c0_118, %c1_119, %c1_120, %c0_121] : memref<4x2x9x9x128xf32, #tpu.memory_space<vmem>>, vector<1x2x8x8x128xf32>
    %113 = vector.shape_cast %112 : vector<1x2x8x8x128xf32> to vector<2x8x8x128xf32>
    %114 = vector.shape_cast %113 : vector<2x8x8x128xf32> to vector<128x128xf32>
    %115 = arith.truncf %114 : vector<128x128xf32> to vector<128x128xbf16>
    %c8 = arith.constant 8 : index
    %c0_122 = arith.constant 0 : index
    %c0_123 = arith.constant 0 : index
    %116 = vector.load %arg4[%c8, %c0_122, %c0_123] : memref<9x128x128xbf16, #tpu.memory_space<vmem>>, vector<1x128x128xbf16>
    %117 = vector.shape_cast %116 : vector<1x128x128xbf16> to vector<128x128xbf16>
    %cst_124 = arith.constant dense<0.000000e+00> : vector<128x128xf32>
    %118 = tpu.matmul %115, %117, %cst_124 {dimension_numbers = #tpu.dot_dimension_numbers<[1], [0], [0], [1], [0, 0, 1, 1], [], []>} : vector<128x128xbf16>, vector<128x128xbf16>, vector<128x128xf32> -> vector<128x128xf32>
    %119 = arith.addf %111, %118 : vector<128x128xf32>
    %c0_125 = arith.constant 0 : index
    %c0_126 = arith.constant 0 : index
    %120 = vector.load %arg5[%c0_125, %c0_126] : memref<1x128xf32, #tpu.memory_space<vmem>>, vector<1x128xf32>
    %121 = vector.broadcast %120 : vector<1x128xf32> to vector<128x128xf32>
    %122 = arith.addf %119, %121 : vector<128x128xf32>
    %cst_127 = arith.constant 0.000000e+00 : f32
    %123 = vector.broadcast %cst_127 : f32 to vector<128x128xf32>
    %124 = arith.cmpf ogt, %122, %123 : vector<128x128xf32>
    %cst_128 = arith.constant 0.000000e+00 : f32
    %125 = vector.broadcast %cst_128 : f32 to vector<128x128xf32>
    %126 = arith.minimumf %122, %125 : vector<128x128xf32>
    %127 = math.exp %126 : vector<128x128xf32>
    %cst_129 = arith.constant 1.000000e+00 : f32
    %128 = vector.broadcast %cst_129 : f32 to vector<128x128xf32>
    %129 = arith.subf %127, %128 : vector<128x128xf32>
    %130 = arith.select %124, %122, %129 : vector<128x128xi1>, vector<128x128xf32>
    %131 = vector.shape_cast %130 : vector<128x128xf32> to vector<2x4x2x8x128xf32>
    %cst_130 = arith.constant dense<0xFF800000> : vector<2x4x8x128xf32>
    %132 = vector.multi_reduction <maximumf>, %131, %cst_130 [2] : vector<2x4x2x8x128xf32> to vector<2x4x8x128xf32>
    %133 = vector.shape_cast %132 : vector<2x4x8x128xf32> to vector<2x4x4x2x128xf32>
    %cst_131 = arith.constant dense<0xFF800000> : vector<2x4x4x128xf32>
    %134 = vector.multi_reduction <maximumf>, %133, %cst_131 [3] : vector<2x4x4x2x128xf32> to vector<2x4x4x128xf32>
    %135 = vector.extract_strided_slice %134 {offsets = [0, 0, 0, 0], sizes = [2, 2, 2, 128], strides = [1, 1, 1, 1]} : vector<2x4x4x128xf32> to vector<2x2x2x128xf32>
    %136 = vector.shape_cast %135 : vector<2x2x2x128xf32> to vector<8x128xf32>
    %137 = arith.truncf %136 : vector<8x128xf32> to vector<8x128xbf16>
    %c0_132 = arith.constant 0 : index
    %c0_133 = arith.constant 0 : index
    %c0_134 = arith.constant 0 : index
    %138 = vector.load %arg6[%c0_132, %c0_133, %c0_134] : memref<9x128x128xbf16, #tpu.memory_space<vmem>>, vector<1x128x128xbf16>
    %139 = vector.shape_cast %138 : vector<1x128x128xbf16> to vector<128x128xbf16>
    %cst_135 = arith.constant dense<0.000000e+00> : vector<8x128xf32>
    %140 = tpu.matmul %137, %139, %cst_135 {dimension_numbers = #tpu.dot_dimension_numbers<[1], [0], [0], [1], [0, 0, 1, 1], [], []>} : vector<8x128xbf16>, vector<128x128xbf16>, vector<8x128xf32> -> vector<8x128xf32>
    %141 = vector.extract_strided_slice %134 {offsets = [0, 0, 1, 0], sizes = [2, 2, 2, 128], strides = [1, 1, 1, 1]} : vector<2x4x4x128xf32> to vector<2x2x2x128xf32>
    %142 = vector.shape_cast %141 : vector<2x2x2x128xf32> to vector<8x128xf32>
    %143 = arith.truncf %142 : vector<8x128xf32> to vector<8x128xbf16>
    %c1_136 = arith.constant 1 : index
    %c0_137 = arith.constant 0 : index
    %c0_138 = arith.constant 0 : index
    %144 = vector.load %arg6[%c1_136, %c0_137, %c0_138] : memref<9x128x128xbf16, #tpu.memory_space<vmem>>, vector<1x128x128xbf16>
    %145 = vector.shape_cast %144 : vector<1x128x128xbf16> to vector<128x128xbf16>
    %cst_139 = arith.constant dense<0.000000e+00> : vector<8x128xf32>
    %146 = tpu.matmul %143, %145, %cst_139 {dimension_numbers = #tpu.dot_dimension_numbers<[1], [0], [0], [1], [0, 0, 1, 1], [], []>} : vector<8x128xbf16>, vector<128x128xbf16>, vector<8x128xf32> -> vector<8x128xf32>
    %147 = arith.addf %140, %146 : vector<8x128xf32>
    %148 = vector.extract_strided_slice %134 {offsets = [0, 0, 2, 0], sizes = [2, 2, 2, 128], strides = [1, 1, 1, 1]} : vector<2x4x4x128xf32> to vector<2x2x2x128xf32>
    %149 = vector.shape_cast %148 : vector<2x2x2x128xf32> to vector<8x128xf32>
    %150 = arith.truncf %149 : vector<8x128xf32> to vector<8x128xbf16>
    %c2_140 = arith.constant 2 : index
    %c0_141 = arith.constant 0 : index
    %c0_142 = arith.constant 0 : index
    %151 = vector.load %arg6[%c2_140, %c0_141, %c0_142] : memref<9x128x128xbf16, #tpu.memory_space<vmem>>, vector<1x128x128xbf16>
    %152 = vector.shape_cast %151 : vector<1x128x128xbf16> to vector<128x128xbf16>
    %cst_143 = arith.constant dense<0.000000e+00> : vector<8x128xf32>
    %153 = tpu.matmul %150, %152, %cst_143 {dimension_numbers = #tpu.dot_dimension_numbers<[1], [0], [0], [1], [0, 0, 1, 1], [], []>} : vector<8x128xbf16>, vector<128x128xbf16>, vector<8x128xf32> -> vector<8x128xf32>
    %154 = arith.addf %147, %153 : vector<8x128xf32>
    %155 = vector.extract_strided_slice %134 {offsets = [0, 1, 0, 0], sizes = [2, 2, 2, 128], strides = [1, 1, 1, 1]} : vector<2x4x4x128xf32> to vector<2x2x2x128xf32>
    %156 = vector.shape_cast %155 : vector<2x2x2x128xf32> to vector<8x128xf32>
    %157 = arith.truncf %156 : vector<8x128xf32> to vector<8x128xbf16>
    %c3_144 = arith.constant 3 : index
    %c0_145 = arith.constant 0 : index
    %c0_146 = arith.constant 0 : index
    %158 = vector.load %arg6[%c3_144, %c0_145, %c0_146] : memref<9x128x128xbf16, #tpu.memory_space<vmem>>, vector<1x128x128xbf16>
    %159 = vector.shape_cast %158 : vector<1x128x128xbf16> to vector<128x128xbf16>
    %cst_147 = arith.constant dense<0.000000e+00> : vector<8x128xf32>
    %160 = tpu.matmul %157, %159, %cst_147 {dimension_numbers = #tpu.dot_dimension_numbers<[1], [0], [0], [1], [0, 0, 1, 1], [], []>} : vector<8x128xbf16>, vector<128x128xbf16>, vector<8x128xf32> -> vector<8x128xf32>
    %161 = arith.addf %154, %160 : vector<8x128xf32>
    %162 = vector.extract_strided_slice %134 {offsets = [0, 1, 1, 0], sizes = [2, 2, 2, 128], strides = [1, 1, 1, 1]} : vector<2x4x4x128xf32> to vector<2x2x2x128xf32>
    %163 = vector.shape_cast %162 : vector<2x2x2x128xf32> to vector<8x128xf32>
    %164 = arith.truncf %163 : vector<8x128xf32> to vector<8x128xbf16>
    %c4_148 = arith.constant 4 : index
    %c0_149 = arith.constant 0 : index
    %c0_150 = arith.constant 0 : index
    %165 = vector.load %arg6[%c4_148, %c0_149, %c0_150] : memref<9x128x128xbf16, #tpu.memory_space<vmem>>, vector<1x128x128xbf16>
    %166 = vector.shape_cast %165 : vector<1x128x128xbf16> to vector<128x128xbf16>
    %cst_151 = arith.constant dense<0.000000e+00> : vector<8x128xf32>
    %167 = tpu.matmul %164, %166, %cst_151 {dimension_numbers = #tpu.dot_dimension_numbers<[1], [0], [0], [1], [0, 0, 1, 1], [], []>} : vector<8x128xbf16>, vector<128x128xbf16>, vector<8x128xf32> -> vector<8x128xf32>
    %168 = arith.addf %161, %167 : vector<8x128xf32>
    %169 = vector.extract_strided_slice %134 {offsets = [0, 1, 2, 0], sizes = [2, 2, 2, 128], strides = [1, 1, 1, 1]} : vector<2x4x4x128xf32> to vector<2x2x2x128xf32>
    %170 = vector.shape_cast %169 : vector<2x2x2x128xf32> to vector<8x128xf32>
    %171 = arith.truncf %170 : vector<8x128xf32> to vector<8x128xbf16>
    %c5_152 = arith.constant 5 : index
    %c0_153 = arith.constant 0 : index
    %c0_154 = arith.constant 0 : index
    %172 = vector.load %arg6[%c5_152, %c0_153, %c0_154] : memref<9x128x128xbf16, #tpu.memory_space<vmem>>, vector<1x128x128xbf16>
    %173 = vector.shape_cast %172 : vector<1x128x128xbf16> to vector<128x128xbf16>
    %cst_155 = arith.constant dense<0.000000e+00> : vector<8x128xf32>
    %174 = tpu.matmul %171, %173, %cst_155 {dimension_numbers = #tpu.dot_dimension_numbers<[1], [0], [0], [1], [0, 0, 1, 1], [], []>} : vector<8x128xbf16>, vector<128x128xbf16>, vector<8x128xf32> -> vector<8x128xf32>
    %175 = arith.addf %168, %174 : vector<8x128xf32>
    %176 = vector.extract_strided_slice %134 {offsets = [0, 2, 0, 0], sizes = [2, 2, 2, 128], strides = [1, 1, 1, 1]} : vector<2x4x4x128xf32> to vector<2x2x2x128xf32>
    %177 = vector.shape_cast %176 : vector<2x2x2x128xf32> to vector<8x128xf32>
    %178 = arith.truncf %177 : vector<8x128xf32> to vector<8x128xbf16>
    %c6_156 = arith.constant 6 : index
    %c0_157 = arith.constant 0 : index
    %c0_158 = arith.constant 0 : index
    %179 = vector.load %arg6[%c6_156, %c0_157, %c0_158] : memref<9x128x128xbf16, #tpu.memory_space<vmem>>, vector<1x128x128xbf16>
    %180 = vector.shape_cast %179 : vector<1x128x128xbf16> to vector<128x128xbf16>
    %cst_159 = arith.constant dense<0.000000e+00> : vector<8x128xf32>
    %181 = tpu.matmul %178, %180, %cst_159 {dimension_numbers = #tpu.dot_dimension_numbers<[1], [0], [0], [1], [0, 0, 1, 1], [], []>} : vector<8x128xbf16>, vector<128x128xbf16>, vector<8x128xf32> -> vector<8x128xf32>
    %182 = arith.addf %175, %181 : vector<8x128xf32>
    %183 = vector.extract_strided_slice %134 {offsets = [0, 2, 1, 0], sizes = [2, 2, 2, 128], strides = [1, 1, 1, 1]} : vector<2x4x4x128xf32> to vector<2x2x2x128xf32>
    %184 = vector.shape_cast %183 : vector<2x2x2x128xf32> to vector<8x128xf32>
    %185 = arith.truncf %184 : vector<8x128xf32> to vector<8x128xbf16>
    %c7_160 = arith.constant 7 : index
    %c0_161 = arith.constant 0 : index
    %c0_162 = arith.constant 0 : index
    %186 = vector.load %arg6[%c7_160, %c0_161, %c0_162] : memref<9x128x128xbf16, #tpu.memory_space<vmem>>, vector<1x128x128xbf16>
    %187 = vector.shape_cast %186 : vector<1x128x128xbf16> to vector<128x128xbf16>
    %cst_163 = arith.constant dense<0.000000e+00> : vector<8x128xf32>
    %188 = tpu.matmul %185, %187, %cst_163 {dimension_numbers = #tpu.dot_dimension_numbers<[1], [0], [0], [1], [0, 0, 1, 1], [], []>} : vector<8x128xbf16>, vector<128x128xbf16>, vector<8x128xf32> -> vector<8x128xf32>
    %189 = arith.addf %182, %188 : vector<8x128xf32>
    %190 = vector.extract_strided_slice %134 {offsets = [0, 2, 2, 0], sizes = [2, 2, 2, 128], strides = [1, 1, 1, 1]} : vector<2x4x4x128xf32> to vector<2x2x2x128xf32>
    %191 = vector.shape_cast %190 : vector<2x2x2x128xf32> to vector<8x128xf32>
    %192 = arith.truncf %191 : vector<8x128xf32> to vector<8x128xbf16>
    %c8_164 = arith.constant 8 : index
    %c0_165 = arith.constant 0 : index
    %c0_166 = arith.constant 0 : index
    %193 = vector.load %arg6[%c8_164, %c0_165, %c0_166] : memref<9x128x128xbf16, #tpu.memory_space<vmem>>, vector<1x128x128xbf16>
    %194 = vector.shape_cast %193 : vector<1x128x128xbf16> to vector<128x128xbf16>
    %cst_167 = arith.constant dense<0.000000e+00> : vector<8x128xf32>
    %195 = tpu.matmul %192, %194, %cst_167 {dimension_numbers = #tpu.dot_dimension_numbers<[1], [0], [0], [1], [0, 0, 1, 1], [], []>} : vector<8x128xbf16>, vector<128x128xbf16>, vector<8x128xf32> -> vector<8x128xf32>
    %196 = arith.addf %189, %195 : vector<8x128xf32>
    %c0_168 = arith.constant 0 : index
    %c0_169 = arith.constant 0 : index
    %197 = vector.load %arg7[%c0_168, %c0_169] : memref<1x128xf32, #tpu.memory_space<vmem>>, vector<1x128xf32>
    %198 = vector.broadcast %197 : vector<1x128xf32> to vector<8x128xf32>
    %199 = arith.addf %196, %198 : vector<8x128xf32>
    %cst_170 = arith.constant 0.000000e+00 : f32
    %200 = vector.broadcast %cst_170 : f32 to vector<8x128xf32>
    %201 = arith.cmpf ogt, %199, %200 : vector<8x128xf32>
    %cst_171 = arith.constant 0.000000e+00 : f32
    %202 = vector.broadcast %cst_171 : f32 to vector<8x128xf32>
    %203 = arith.minimumf %199, %202 : vector<8x128xf32>
    %204 = math.exp %203 : vector<8x128xf32>
    %cst_172 = arith.constant 1.000000e+00 : f32
    %205 = vector.broadcast %cst_172 : f32 to vector<8x128xf32>
    %206 = arith.subf %204, %205 : vector<8x128xf32>
    %207 = arith.select %201, %199, %206 : vector<8x128xi1>, vector<8x128xf32>
    %208 = arith.truncf %207 : vector<8x128xf32> to vector<8x128xbf16>
    %c0_173 = arith.constant 0 : index
    %c0_174 = arith.constant 0 : index
    %209 = vector.load %arg8[%c0_173, %c0_174] : memref<128x128xbf16, #tpu.memory_space<vmem>>, vector<128x128xbf16>
    %cst_175 = arith.constant dense<0.000000e+00> : vector<8x128xf32>
    %210 = tpu.matmul %208, %209, %cst_175 {dimension_numbers = #tpu.dot_dimension_numbers<[1], [0], [0], [1], [0, 0, 1, 1], [], []>} : vector<8x128xbf16>, vector<128x128xbf16>, vector<8x128xf32> -> vector<8x128xf32>
    %c0_176 = arith.constant 0 : index
    %c0_177 = arith.constant 0 : index
    %211 = vector.load %arg9[%c0_176, %c0_177] : memref<1x128xf32, #tpu.memory_space<vmem>>, vector<1x128xf32>
    %212 = vector.broadcast %211 : vector<1x128xf32> to vector<8x128xf32>
    %213 = arith.addf %210, %212 : vector<8x128xf32>
    %cst_178 = arith.constant 0.000000e+00 : f32
    %214 = vector.broadcast %cst_178 : f32 to vector<8x128xf32>
    %215 = arith.cmpf ogt, %213, %214 : vector<8x128xf32>
    %cst_179 = arith.constant 0.000000e+00 : f32
    %216 = vector.broadcast %cst_179 : f32 to vector<8x128xf32>
    %217 = arith.minimumf %213, %216 : vector<8x128xf32>
    %218 = math.exp %217 : vector<8x128xf32>
    %cst_180 = arith.constant 1.000000e+00 : f32
    %219 = vector.broadcast %cst_180 : f32 to vector<8x128xf32>
    %220 = arith.subf %218, %219 : vector<8x128xf32>
    %221 = arith.select %215, %213, %220 : vector<8x128xi1>, vector<8x128xf32>
    %222 = vector.shape_cast %221 : vector<8x128xf32> to vector<2x4x128xf32>
    %cst_181 = arith.constant dense<0.000000e+00> : vector<2x128xf32>
    %223 = vector.multi_reduction <add>, %222, %cst_181 [1] : vector<2x4x128xf32> to vector<2x128xf32>
    %cst_182 = arith.constant 4.000000e+00 : f32
    %224 = vector.broadcast %cst_182 : f32 to vector<2x128xf32>
    %225 = arith.divf %223, %224 : vector<2x128xf32>
    %226 = vector.shape_cast %225 : vector<2x128xf32> to vector<2x1x128xf32>
    %227 = vector.shape_cast %226 : vector<2x1x128xf32> to vector<2x1x128xf32>
    %228 = vector.broadcast %227 : vector<2x1x128xf32> to vector<2x8x128xf32>
    %c0_183 = arith.constant 0 : index
    %c0_184 = arith.constant 0 : index
    %c0_185 = arith.constant 0 : index
    %229 = vector.load %arg10[%c0_183, %c0_184, %c0_185] : memref<2x8x128xf32, #tpu.memory_space<vmem>>, vector<2x8x128xf32>
    tpu.vector_store %arg10[%c0_183, %c0_184, %c0_185], %228 {strides = array<i32>} : memref<2x8x128xf32, #tpu.memory_space<vmem>>, vector<2x8x128xf32>,
    return
  }
  func.func @transform_0(%arg0: i32) -> (i32, i32, i32, i32) {
    %c0_i32 = arith.constant 0 : i32
    %c0_i32_0 = arith.constant 0 : i32
    %c0_i32_1 = arith.constant 0 : i32
    %c0_i32_2 = arith.constant 0 : i32
    return %c0_i32, %arg0, %c0_i32_0, %c0_i32_1 : i32, i32, i32, i32
  }
  func.func @transform_1(%arg0: i32) -> (i32, i32) {
    %c0_i32 = arith.constant 0 : i32
    %c0_i32_0 = arith.constant 0 : i32
    %c0_i32_1 = arith.constant 0 : i32
    return %c0_i32, %c0_i32_0 : i32, i32
  }
  func.func @transform_2(%arg0: i32) -> (i32, i32) {
    %c0_i32 = arith.constant 0 : i32
    %c0_i32_0 = arith.constant 0 : i32
    %c0_i32_1 = arith.constant 0 : i32
    return %c0_i32, %c0_i32_0 : i32, i32
  }
  func.func @transform_3(%arg0: i32) -> (i32, i32, i32) {
    %c0_i32 = arith.constant 0 : i32
    %c0_i32_0 = arith.constant 0 : i32
    %c0_i32_1 = arith.constant 0 : i32
    %c0_i32_2 = arith.constant 0 : i32
    return %c0_i32, %c0_i32_0, %c0_i32_1 : i32, i32, i32
  }
  func.func @transform_4(%arg0: i32) -> (i32, i32) {
    %c0_i32 = arith.constant 0 : i32
    %c0_i32_0 = arith.constant 0 : i32
    %c0_i32_1 = arith.constant 0 : i32
    return %c0_i32, %c0_i32_0 : i32, i32
  }
  func.func @transform_5(%arg0: i32) -> (i32, i32, i32) {
    %c0_i32 = arith.constant 0 : i32
    %c0_i32_0 = arith.constant 0 : i32
    %c0_i32_1 = arith.constant 0 : i32
    %c0_i32_2 = arith.constant 0 : i32
    return %c0_i32, %c0_i32_0, %c0_i32_1 : i32, i32, i32
  }
  func.func @transform_6(%arg0: i32) -> (i32, i32) {
    %c0_i32 = arith.constant 0 : i32
    %c0_i32_0 = arith.constant 0 : i32
    %c0_i32_1 = arith.constant 0 : i32
    return %c0_i32, %c0_i32_0 : i32, i32
  }
  func.func @transform_7(%arg0: i32) -> (i32, i32) {
    %c0_i32 = arith.constant 0 : i32
    %c0_i32_0 = arith.constant 0 : i32
    %c0_i32_1 = arith.constant 0 : i32
    return %c0_i32, %c0_i32_0 : i32, i32
  }
  func.func @transform_8(%arg0: i32) -> (i32, i32) {
    %c0_i32 = arith.constant 0 : i32
    %c0_i32_0 = arith.constant 0 : i32
    %c0_i32_1 = arith.constant 0 : i32
    return %c0_i32, %c0_i32_0 : i32, i32
  }
  func.func @transform_9(%arg0: i32) -> (i32, i32, i32) {
    %c0_i32 = arith.constant 0 : i32
    %c0_i32_0 = arith.constant 0 : i32
    %c0_i32_1 = arith.constant 0 : i32
    return %arg0, %c0_i32, %c0_i32_0 : i32, i32, i32
  }
}

</mosaic_0001>

<llo_original>
// kernel: classifier_net1_forward.1
$region0: #{classifier_net1_forward.1}
  #allocation0 [shape = 'u32[]', space=smem, size = 0x4, offset = 0x4, fixed_abs, tag = 'smem constant byte address 0x4 - core index']
  #allocation1 [shape = 'u32[144,128]{1,0:T(1,128)}', space=vmem, size = 0x12000, scoped, tag = 'internal scratch']
  #allocation2 [shape = 'f32[4,2,9,9,128]{4,3,2,1,0:T(8,128)}', space=vmem, size = 0x90000, scoped, tag = 'scratch operand']
  %s0 = inlined_call_operand.vmem [shape: bf16[4,4,64,36], index: 0, kind: input, shape index: {}]
  %s1 = inlined_call_operand.vmem [shape: bf16[36,128], index: 1, kind: input, shape index: {}]
  %s2 = inlined_call_operand.vmem [shape: f32[1,128], index: 2, kind: input, shape index: {}]
  %s3 = inlined_call_operand.vmem [shape: bf16[9,128,128], index: 3, kind: input, shape index: {}]
  %s4 = inlined_call_operand.vmem [shape: f32[1,128], index: 4, kind: input, shape index: {}]
  %s5 = inlined_call_operand.vmem [shape: bf16[9,128,128], index: 5, kind: input, shape index: {}]
  %s6 = inlined_call_operand.vmem [shape: f32[1,128], index: 6, kind: input, shape index: {}]
  %s7 = inlined_call_operand.vmem [shape: bf16[128,128], index: 7, kind: input, shape index: {}]
  %s8 = inlined_call_operand.vmem [shape: f32[1,128], index: 8, kind: input, shape index: {}]
  %s9 = inlined_call_operand.vmem [shape: f32[4,8,128], index: 9, kind: output, shape index: {}]
  %s10 = sld [smem:[#allocation0]]
  $region110: #{classifier_net1_forward.1} parent=0
    _
  %s12 = ssub.s32 1, %s10
  %s13 = scalar_select 0, %s12, %s10
  $region1: #{classifier_net1_forward.1} parent=0
    #allocation3 [shape = 'u8[262144]{0}', space=vmem, size = 0x40000, scoped, tag = 'input window, operand 0']
    loop: start=0, step=1, limit=4
    $region2: #{classifier_net1_forward.1} parent=1 // loop_pre_header
      _
    $region3: #{classifier_net1_forward.1} parent=1 // loop_header
      %s15 = sphi 0, %s19
      %p16 = scmp.ge.s32.totalorder %s15, 4
      %s25 = sphi 0, %s27
      %s28 = sphi 0, %s25
      %s29 = sphi 0, %s28
      %s45 = sphi 0, %s29
      %s49 = sphi 0, %s49
      %s51 = sphi 0, %s49
      %s52 = sphi 0, %s51
      %s66 = sphi 0, %s52
      %s70 = sphi 0, %s70
      %s72 = sphi 0, %s70
      %s73 = sphi 0, %s72
      %s87 = sphi 0, %s73
      %s91 = sphi 0, %s91
      %s93 = sphi 0, %s91
      %s94 = sphi 0, %s93
      %s108 = sphi 0, %s94
      %s112 = sphi 0, %s112
      %s114 = sphi 0, %s112
      %s115 = sphi 0, %s114
      %s129 = sphi 0, %s115
      %s133 = sphi 0, %s133
      %s135 = sphi 0, %s133
      %s136 = sphi 0, %s135
      %s150 = sphi 0, %s136
      %s154 = sphi 0, %s154
      %s156 = sphi 0, %s154
      %s157 = sphi 0, %s156
      %s171 = sphi 0, %s157
      %s175 = sphi 0, %s175
      %s177 = sphi 0, %s175
      %s178 = sphi 0, %s177
      %s192 = sphi 0, %s178
      %s196 = sphi 0, %s196
      %s198 = sphi 0, %s196
      %s199 = sphi 0, %s198
      %s213 = sphi 0, %s199
      %s219 = sphi 0, %s221
      %s222 = sphi 0, %s219
      %s223 = sphi 0, %s222
      %s239 = sphi 0, %s223
    $region4: #{classifier_net1_forward.1} parent=1 // loop_header_branch
      %18 = sbr.rel (%p16) target = $region8
    $region5: #{classifier_net1_forward.1} parent=1 // loop_body
      %s20 = ssub.s32 %s15, 1
      %s21 = ssub.s32 %s15, 2
      %s22 = sadd.s32 %s15, 1
      %s23 = ssub.s32 %s15, %s22
      %p24 = scmp.eq.s32.totalorder %s23, 0
      %s26 = sadd.s32 %s25, 1
      %s27 = scalar_select %p24, %s25, %s26
      %p30 = pneg %p24
      %p31 = scmp.eq.s32.totalorder %s15, 1
      %p32 = por %p30, %p31
      %p33 = scmp.ne.s32.totalorder %s25, %s28
      %p34 = scmp.eq.s32.totalorder %s15, 0
      %p35 = por %p33, %p34
      %p36 = scmp.ne.s32.totalorder %s25, %s28
      %p37 = scmp.eq.s32.totalorder %s20, 1
      %p38 = por %p36, %p37
      %p39 = scmp.ne.s32.totalorder %s28, %s29
      %p40 = scmp.eq.s32.totalorder %s20, 0
      %p41 = por %p39, %p40
      %p42 = scmp.ne.s32.totalorder %s28, %s29
      %p43 = scmp.eq.s32.totalorder %s21, 1
      %p44 = por %p42, %p43
      %p46 = scmp.ne.s32.totalorder %s29, %s45
      %p47 = scmp.eq.s32.totalorder %s21, 0
      %p48 = por %p46, %p47
      %s50 = sadd.s32 %s49, 1
      %p53 = scmp.eq.s32.totalorder %s15, 1
      %p54 = scmp.ne.s32.totalorder %s49, %s51
      %p55 = scmp.eq.s32.totalorder %s15, 0
      %p56 = por %p54, %p55
      %p57 = scmp.ne.s32.totalorder %s49, %s51
      %p58 = scmp.eq.s32.totalorder %s20, 1
      %p59 = por %p57, %p58
      %p60 = scmp.ne.s32.totalorder %s51, %s52
      %p61 = scmp.eq.s32.totalorder %s20, 0
      %p62 = por %p60, %p61
      %p63 = scmp.ne.s32.totalorder %s51, %s52
      %p64 = scmp.eq.s32.totalorder %s21, 1
      %p65 = por %p63, %p64
      %p67 = scmp.ne.s32.totalorder %s52, %s66
      %p68 = scmp.eq.s32.totalorder %s21, 0
      %p69 = por %p67, %p68
      %s71 = sadd.s32 %s70, 1
      %p74 = scmp.eq.s32.totalorder %s15, 1
      %p75 = scmp.ne.s32.totalorder %s70, %s72
      %p76 = scmp.eq.s32.totalorder %s15, 0
      %p77 = por %p75, %p76
      %p78 = scmp.ne.s32.totalorder %s70, %s72
      %p79 = scmp.eq.s32.totalorder %s20, 1
      %p80 = por %p78, %p79
      %p81 = scmp.ne.s32.totalorder %s72, %s73
      %p82 = scmp.eq.s32.totalorder %s20, 0
      %p83 = por %p81, %p82
      %p84 = scmp.ne.s32.totalorder %s72, %s73
      %p85 = scmp.eq.s32.totalorder %s21, 1
      %p86 = por %p84, %p85
      %p88 = scmp.ne.s32.totalorder %s73, %s87
      %p89 = scmp.eq.s32.totalorder %s21, 0
      %p90 = por %p88, %p89
      %s92 = sadd.s32 %s91, 1
      %p95 = scmp.eq.s32.totalorder %s15, 1
      %p96 = scmp.ne.s32.totalorder %s91, %s93
      %p97 = scmp.eq.s32.totalorder %s15, 0
      %p98 = por %p96, %p97
      %p99 = scmp.ne.s32.totalorder %s91, %s93
      %p100 = scmp.eq.s32.totalorder %s20, 1
      %p101 = por %p99, %p100
      %p102 = scmp.ne.s32.totalorder %s93, %s94
      %p103 = scmp.eq.s32.totalorder %s20, 0
      %p104 = por %p102, %p103
      %p105 = scmp.ne.s32.totalorder %s93, %s94
      %p106 = scmp.eq.s32.totalorder %s21, 1
      %p107 = por %p105, %p106
      %p109 = scmp.ne.s32.totalorder %s94, %s108
      %p110 = scmp.eq.s32.totalorder %s21, 0
      %p111 = por %p109, %p110
      %s113 = sadd.s32 %s112, 1
      %p116 = scmp.eq.s32.totalorder %s15, 1
      %p117 = scmp.ne.s32.totalorder %s112, %s114
      %p118 = scmp.eq.s32.totalorder %s15, 0
      %p119 = por %p117, %p118
      %p120 = scmp.ne.s32.totalorder %s112, %s114
      %p121 = scmp.eq.s32.totalorder %s20, 1
      %p122 = por %p120, %p121
      %p123 = scmp.ne.s32.totalorder %s114, %s115
      %p124 = scmp.eq.s32.totalorder %s20, 0
      %p125 = por %p123, %p124
      %p126 = scmp.ne.s32.totalorder %s114, %s115
      %p127 = scmp.eq.s32.totalorder %s21, 1
      %p128 = por %p126, %p127
      %p130 = scmp.ne.s32.totalorder %s115, %s129
      %p131 = scmp.eq.s32.totalorder %s21, 0
      %p132 = por %p130, %p131
      %s134 = sadd.s32 %s133, 1
      %p137 = scmp.eq.s32.totalorder %s15, 1
      %p138 = scmp.ne.s32.totalorder %s133, %s135
      %p139 = scmp.eq.s32.totalorder %s15, 0
      %p140 = por %p138, %p139
      %p141 = scmp.ne.s32.totalorder %s133, %s135
      %p142 = scmp.eq.s32.totalorder %s20, 1
      %p143 = por %p141, %p142
      %p144 = scmp.ne.s32.totalorder %s135, %s136
      %p145 = scmp.eq.s32.totalorder %s20, 0
      %p146 = por %p144, %p145
      %p147 = scmp.ne.s32.totalorder %s135, %s136
      %p148 = scmp.eq.s32.totalorder %s21, 1
      %p149 = por %p147, %p148
      %p151 = scmp.ne.s32.totalorder %s136, %s150
      %p152 = scmp.eq.s32.totalorder %s21, 0
      %p153 = por %p151, %p152
      %s155 = sadd.s32 %s154, 1
      %p158 = scmp.eq.s32.totalorder %s15, 1
      %p159 = scmp.ne.s32.totalorder %s154, %s156
      %p160 = scmp.eq.s32.totalorder %s15, 0
      %p161 = por %p159, %p160
      %p162 = scmp.ne.s32.totalorder %s154, %s156
      %p163 = scmp.eq.s32.totalorder %s20, 1
      %p164 = por %p162, %p163
      %p165 = scmp.ne.s32.totalorder %s156, %s157
      %p166 = scmp.eq.s32.totalorder %s20, 0
      %p167 = por %p165, %p166
      %p168 = scmp.ne.s32.totalorder %s156, %s157
      %p169 = scmp.eq.s32.totalorder %s21, 1
      %p170 = por %p168, %p169
      %p172 = scmp.ne.s32.totalorder %s157, %s171
      %p173 = scmp.eq.s32.totalorder %s21, 0
      %p174 = por %p172, %p173
      %s176 = sadd.s32 %s175, 1
      %p179 = scmp.eq.s32.totalorder %s15, 1
      %p180 = scmp.ne.s32.totalorder %s175, %s177
      %p181 = scmp.eq.s32.totalorder %s15, 0
      %p182 = por %p180, %p181
      %p183 = scmp.ne.s32.totalorder %s175, %s177
      %p184 = scmp.eq.s32.totalorder %s20, 1
      %p185 = por %p183, %p184
      %p186 = scmp.ne.s32.totalorder %s177, %s178
      %p187 = scmp.eq.s32.totalorder %s20, 0
      %p188 = por %p186, %p187
      %p189 = scmp.ne.s32.totalorder %s177, %s178
      %p190 = scmp.eq.s32.totalorder %s21, 1
      %p191 = por %p189, %p190
      %p193 = scmp.ne.s32.totalorder %s178, %s192
      %p194 = scmp.eq.s32.totalorder %s21, 0
      %p195 = por %p193, %p194
      %s197 = sadd.s32 %s196, 1
      %p200 = scmp.eq.s32.totalorder %s15, 1
      %p201 = scmp.ne.s32.totalorder %s196, %s198
      %p202 = scmp.eq.s32.totalorder %s15, 0
      %p203 = por %p201, %p202
      %p204 = scmp.ne.s32.totalorder %s196, %s198
      %p205 = scmp.eq.s32.totalorder %s20, 1
      %p206 = por %p204, %p205
      %p207 = scmp.ne.s32.totalorder %s198, %s199
      %p208 = scmp.eq.s32.totalorder %s20, 0
      %p209 = por %p207, %p208
      %p210 = scmp.ne.s32.totalorder %s198, %s199
      %p211 = scmp.eq.s32.totalorder %s21, 1
      %p212 = por %p210, %p211
      %p214 = scmp.ne.s32.totalorder %s199, %s213
      %p215 = scmp.eq.s32.totalorder %s21, 0
      %p216 = por %p214, %p215
      %s217 = ssub.s32 %s15, %s22
      %p218 = scmp.eq.s32.totalorder %s217, 0
      %s220 = sadd.s32 %s219, 1
      %s221 = scalar_select %p218, %s219, %s220
      %p224 = pneg %p218
      %p225 = scmp.eq.s32.totalorder %s15, 1
      %p226 = por %p224, %p225
      %p227 = scmp.ne.s32.totalorder %s219, %s222
      %p228 = scmp.eq.s32.totalorder %s15, 0
      %p229 = por %p227, %p228
      %p230 = scmp.ne.s32.totalorder %s219, %s222
      %p231 = scmp.eq.s32.totalorder %s20, 1
      %p232 = por %p230, %p231
      %p233 = scmp.ne.s32.totalorder %s222, %s223
      %p234 = scmp.eq.s32.totalorder %s20, 0
      %p235 = por %p233, %p234
      %p236 = scmp.ne.s32.totalorder %s222, %s223
      %p237 = scmp.eq.s32.totalorder %s21, 1
      %p238 = por %p236, %p237
      %p240 = scmp.ne.s32.totalorder %s223, %s239
      %p241 = scmp.eq.s32.totalorder %s21, 0
      %p242 = por %p240, %p241
      %p243 = scmp.le.s32.totalorder 1, %s15
      %p244 = scmp.lt.s32.totalorder %s15, 3
      %p245 = pnand %p243, %p244
      %p246 = pneg %p245
      // Predicated region
      $region9: #{classifier_net1_forward.1} parent=5 // pred_check
        _
      $region10: #{classifier_net1_forward.1} parent=5 // pred_check_branch
        %248 = sbr.rel (%p245) target = $region12
      $region11: #{classifier_net1_forward.1} parent=5 // pred_region
        %s249 = ssub.s32 %s15, 1
        // Predicated region
        $region13: #{classifier_net1_forward.1} parent=11 // pred_check
          %p250 = pneg %p62
        $region14: #{classifier_net1_forward.1} parent=11 // pred_check_branch
          %252 = sbr.rel (%p250) target = $region16
        $region15: #{classifier_net1_forward.1} parent=11 // pred_region
          _
        $region16: #{classifier_net1_forward.1} parent=11 // pred_fallthru
          _
        // Predicated region
        $region17: #{classifier_net1_forward.1} parent=11 // pred_check
          %p253 = pneg %p83
        $region18: #{classifier_net1_forward.1} parent=11 // pred_check_branch
          %255 = sbr.rel (%p253) target = $region20
        $region19: #{classifier_net1_forward.1} parent=11 // pred_region
          _
        $region20: #{classifier_net1_forward.1} parent=11 // pred_fallthru
          _
        // Predicated region
        $region21: #{classifier_net1_forward.1} parent=11 // pred_check
          %p256 = pneg %p104
        $region22: #{classifier_net1_forward.1} parent=11 // pred_check_branch
          %258 = sbr.rel (%p256) target = $region24
        $region23: #{classifier_net1_forward.1} parent=11 // pred_region
          _
        $region24: #{classifier_net1_forward.1} parent=11 // pred_fallthru
          _
        // Predicated region
        $region25: #{classifier_net1_forward.1} parent=11 // pred_check
          %p259 = pneg %p125
        $region26: #{classifier_net1_forward.1} parent=11 // pred_check_branch
          %261 = sbr.rel (%p259) target = $region28
        $region27: #{classifier_net1_forward.1} parent=11 // pred_region
          _
        $region28: #{classifier_net1_forward.1} parent=11 // pred_fallthru
          _
        // Predicated region
        $region29: #{classifier_net1_forward.1} parent=11 // pred_check
          %p262 = pneg %p146
        $region30: #{classifier_net1_forward.1} parent=11 // pred_check_branch
          %264 = sbr.rel (%p262) target = $region32
        $region31: #{classifier_net1_forward.1} parent=11 // pred_region
          _
        $region32: #{classifier_net1_forward.1} parent=11 // pred_fallthru
          _
        // Predicated region
        $region33: #{classifier_net1_forward.1} parent=11 // pred_check
          %p265 = pneg %p167
        $region34: #{classifier_net1_forward.1} parent=11 // pred_check_branch
          %267 = sbr.rel (%p265) target = $region36
        $region35: #{classifier_net1_forward.1} parent=11 // pred_region
          _
        $region36: #{classifier_net1_forward.1} parent=11 // pred_fallthru
          _
        // Predicated region
        $region37: #{classifier_net1_forward.1} parent=11 // pred_check
          %p268 = pneg %p188
        $region38: #{classifier_net1_forward.1} parent=11 // pred_check_branch
          %270 = sbr.rel (%p268) target = $region40
        $region39: #{classifier_net1_forward.1} parent=11 // pred_region
          _
        $region40: #{classifier_net1_forward.1} parent=11 // pred_fallthru
          _
        // Predicated region
        $region41: #{classifier_net1_forward.1} parent=11 // pred_check
          %p271 = pneg %p209
        $region42: #{classifier_net1_forward.1} parent=11 // pred_check_branch
          %273 = sbr.rel (%p271) target = $region44
        $region43: #{classifier_net1_forward.1} parent=11 // pred_region
          _
        $region44: #{classifier_net1_forward.1} parent=11 // pred_fallthru
          _
      $region12: #{classifier_net1_forward.1} parent=5 // pred_fallthru
        _
      %p274 = scmp.lt.s32.totalorder %s15, 2
      // Predicated region
      $region45: #{classifier_net1_forward.1} parent=5 // pred_check
        %p275 = pneg %p274
      $region46: #{classifier_net1_forward.1} parent=5 // pred_check_branch
        %277 = sbr.rel (%p275) target = $region48
      $region47: #{classifier_net1_forward.1} parent=5 // pred_region
        // Predicated region
        $region49: #{classifier_net1_forward.1} parent=47 // pred_check
          %p278 = pneg %p35
        $region50: #{classifier_net1_forward.1} parent=47 // pred_check_branch
          %280 = sbr.rel (%p278) target = $region52
        $region51: #{classifier_net1_forward.1} parent=47 // pred_region
          %s281 = sand.u32 %s25, 1
          %s282 = sand.u32 %s25, 1
          %s283 = smul.addr %s282, 256
          %s284 = scalar_lea.vmem [#allocation3], %s283
          %s285 = smul.u32 2, %s15
          %s286 = smul.addr %s285, 8
          %s287 = smul.addr %s286, 4
          %s288 = scalar_lea.vmem %s0, %s287
          // Predicated region
          $region53: #{classifier_net1_forward.1} parent=51 // pred_check
            _
          $region54: #{classifier_net1_forward.1} parent=51 // pred_check_branch
            %290 = sbr.rel (0) target = $region56
          $region55: #{classifier_net1_forward.1} parent=51 // pred_region
            // Predicated region
            $region57: #{classifier_net1_forward.1} parent=55 // pred_check
              _
            $region58: #{classifier_net1_forward.1} parent=55 // pred_check_branch
              %292 = sbr.rel target = $region60
            $region59: #{classifier_net1_forward.1} parent=55 // pred_region
              // Predicated region
              $region72: #{classifier_net1_forward.1} parent=59 // pred_check
                _
              $region73: #{classifier_net1_forward.1} parent=59 // pred_check_branch
                %434 = sbr.rel (0) target = $region75
              $region74: #{classifier_net1_forward.1} parent=59 // pred_region
                loop: start=0, step=1, limit=1
                $region76: #{classifier_net1_forward.1} parent=74 // loop_pre_header
                  _
                $region77: #{classifier_net1_forward.1} parent=74 // loop_header
                  %s436 = sphi 0, %s440
                  %p437 = scmp.ge.s32.totalorder %s436, 1
                  %s441 = sphi %s288, %s288
                  %s442 = sphi %s284, %s284
                $region78: #{classifier_net1_forward.1} parent=74 // loop_header_branch
                  %439 = sbr.rel (%p437) target = $region82
                $region79: #{classifier_net1_forward.1} parent=74 // loop_body
                  _
                $region80: #{classifier_net1_forward.1} parent=74 // loop_footer
                  %s440 = sadd.s32 1, %s436
                $region81: #{classifier_net1_forward.1} parent=74 // loop_footer_branch
                  %435 = sbr.rel target = $region77
                $region82: #{classifier_net1_forward.1} parent=74 // loop_exit
                  _
                %s444 = ssub.s32 16, 1
                loop: start=0, step=1, limit=1
                $region83: #{classifier_net1_forward.1} parent=74 // loop_pre_header
                  _
                $region84: #{classifier_net1_forward.1} parent=74 // loop_header
                  %s446 = sphi 0, %s450
                  %p447 = scmp.ge.s32.totalorder %s446, 1
                  %s451 = sphi %s288, %s288
                  %s452 = sphi %s284, %s284
                $region85: #{classifier_net1_forward.1} parent=74 // loop_header_branch
                  %449 = sbr.rel (%p447) target = $region89
                $region86: #{classifier_net1_forward.1} parent=74 // loop_body
                  %v453 = vld [vmem:[%s451] sm:%s444]
                  %454 = vst [vmem:[%s452] sm:%s444] %v453
                  %v455 = vld [vmem:[%s451 + $0x4] sm:%s444]
                  %456 = vst [vmem:[%s452 + $0x4] sm:%s444] %v455
                  %v457 = vld [vmem:[%s451 + $0x8] sm:%s444]
                  %458 = vst [vmem:[%s452 + $0x8] sm:%s444] %v457
                  %v459 = vld [vmem:[%s451 + $0xc] sm:%s444]
                  %460 = vst [vmem:[%s452 + $0xc] sm:%s444] %v459
                  %v461 = vld [vmem:[%s451 + $0x10] sm:%s444]
                  %462 = vst [vmem:[%s452 + $0x10] sm:%s444] %v461
                  %v463 = vld [vmem:[%s451 + $0x14] sm:%s444]
                  %464 = vst [vmem:[%s452 + $0x14] sm:%s444] %v463
                  %v465 = vld [vmem:[%s451 + $0x18] sm:%s444]
                  %466 = vst [vmem:[%s452 + $0x18] sm:%s444] %v465
                  %v467 = vld [vmem:[%s451 + $0x1c] sm:%s444]
                  %468 = vst [vmem:[%s452 + $0x1c] sm:%s444] %v467
                  %v469 = vld [vmem:[%s451 + $0x20] sm:%s444]
                  %470 = vst [vmem:[%s452 + $0x20] sm:%s444] %v469
                  %v471 = vld [vmem:[%s451 + $0x24] sm:%s444]
                  %472 = vst [vmem:[%s452 + $0x24] sm:%s444] %v471
                  %v473 = vld [vmem:[%s451 + $0x28] sm:%s444]
                  %474 = vst [vmem:[%s452 + $0x28] sm:%s444] %v473
                  %v475 = vld [vmem:[%s451 + $0x2c] sm:%s444]
                  %476 = vst [vmem:[%s452 + $0x2c] sm:%s444] %v475
                  %v477 = vld [vmem:[%s451 + $0x30] sm:%s444]
                  %478 = vst [vmem:[%s452 + $0x30] sm:%s444] %v477
                  %v479 = vld [vmem:[%s451 + $0x34] sm:%s444]
                  %480 = vst [vmem:[%s452 + $0x34] sm:%s444] %v479
                  %v481 = vld [vmem:[%s451 + $0x38] sm:%s444]
                  %482 = vst [vmem:[%s452 + $0x38] sm:%s444] %v481
                  %v483 = vld [vmem:[%s451 + $0x3c] sm:%s444]
                  %484 = vst [vmem:[%s452 + $0x3c] sm:%s444] %v483
                  %v485 = vld [vmem:[%s451 + $0x80] sm:%s444]
                  %486 = vst [vmem:[%s452 + $0x40] sm:%s444] %v485
                  %v487 = vld [vmem:[%s451 + $0x84] sm:%s444]
                  %488 = vst [vmem:[%s452 + $0x44] sm:%s444] %v487
                  %v489 = vld [vmem:[%s451 + $0x88] sm:%s444]
                  %490 = vst [vmem:[%s452 + $0x48] sm:%s444] %v489
                  %v491 = vld [vmem:[%s451 + $0x8c] sm:%s444]
                  %492 = vst [vmem:[%s452 + $0x4c] sm:%s444] %v491
                  %v493 = vld [vmem:[%s451 + $0x90] sm:%s444]
                  %494 = vst [vmem:[%s452 + $0x50] sm:%s444] %v493
                  %v495 = vld [vmem:[%s451 + $0x94] sm:%s444]
                  %496 = vst [vmem:[%s452 + $0x54] sm:%s444] %v495
                  %v497 = vld [vmem:[%s451 + $0x98] sm:%s444]
                  %498 = vst [vmem:[%s452 + $0x58] sm:%s444] %v497
                  %v499 = vld [vmem:[%s451 + $0x9c] sm:%s444]
                  %500 = vst [vmem:[%s452 + $0x5c] sm:%s444] %v499
                  %v501 = vld [vmem:[%s451 + $0xa0] sm:%s444]
                  %502 = vst [vmem:[%s452 + $0x60] sm:%s444] %v501
                  %v503 = vld [vmem:[%s451 + $0xa4] sm:%s444]
                  %504 = vst [vmem:[%s452 + $0x64] sm:%s444] %v503
                  %v505 = vld [vmem:[%s451 + $0xa8] sm:%s444]
                  %506 = vst [vmem:[%s452 + $0x68] sm:%s444] %v505
                  %v507 = vld [vmem:[%s451 + $0xac] sm:%s444]
                  %508 = vst [vmem:[%s452 + $0x6c] sm:%s444] %v507
                  %v509 = vld [vmem:[%s451 + $0xb0] sm:%s444]
                  %510 = vst [vmem:[%s452 + $0x70] sm:%s444] %v509
                  %v511 = vld [vmem:[%s451 + $0xb4] sm:%s444]
                  %512 = vst [vmem:[%s452 + $0x74] sm:%s444] %v511
                  %v513 = vld [vmem:[%s451 + $0xb8] sm:%s444]
                  %514 = vst [vmem:[%s452 + $0x78] sm:%s444] %v513
                  %v515 = vld [vmem:[%s451 + $0xbc] sm:%s444]
                  %516 = vst [vmem:[%s452 + $0x7c] sm:%s444] %v515
                  %v517 = vld [vmem:[%s451 + $0x100] sm:%s444]
                  %518 = vst [vmem:[%s452 + $0x80] sm:%s444] %v517
                  %v519 = vld [vmem:[%s451 + $0x104] sm:%s444]
                  %520 = vst [vmem:[%s452 + $0x84] sm:%s444] %v519
                  %v521 = vld [vmem:[%s451 + $0x108] sm:%s444]
                  %522 = vst [vmem:[%s452 + $0x88] sm:%s444] %v521
                  %v523 = vld [vmem:[%s451 + $0x10c] sm:%s444]
                  %524 = vst [vmem:[%s452 + $0x8c] sm:%s444] %v523
                  %v525 = vld [vmem:[%s451 + $0x110] sm:%s444]
                  %526 = vst [vmem:[%s452 + $0x90] sm:%s444] %v525
                  %v527 = vld [vmem:[%s451 + $0x114] sm:%s444]
                  %528 = vst [vmem:[%s452 + $0x94] sm:%s444] %v527
                  %v529 = vld [vmem:[%s451 + $0x118] sm:%s444]
                  %530 = vst [vmem:[%s452 + $0x98] sm:%s444] %v529
                  %v531 = vld [vmem:[%s451 + $0x11c] sm:%s444]
                  %532 = vst [vmem:[%s452 + $0x9c] sm:%s444] %v531
                  %v533 = vld [vmem:[%s451 + $0x120] sm:%s444]
                  %534 = vst [vmem:[%s452 + $0xa0] sm:%s444] %v533
                  %v535 = vld [vmem:[%s451 + $0x124] sm:%s444]
                  %536 = vst [vmem:[%s452 + $0xa4] sm:%s444] %v535
                  %v537 = vld [vmem:[%s451 + $0x128] sm:%s444]
                  %538 = vst [vmem:[%s452 + $0xa8] sm:%s444] %v537
                  %v539 = vld [vmem:[%s451 + $0x12c] sm:%s444]
                  %540 = vst [vmem:[%s452 + $0xac] sm:%s444] %v539
                  %v541 = vld [vmem:[%s451 + $0x130] sm:%s444]
                  %542 = vst [vmem:[%s452 + $0xb0] sm:%s444] %v541
                  %v543 = vld [vmem:[%s451 + $0x134] sm:%s444]
                  %544 = vst [vmem:[%s452 + $0xb4] sm:%s444] %v543
                  %v545 = vld [vmem:[%s451 + $0x138] sm:%s444]
                  %546 = vst [vmem:[%s452 + $0xb8] sm:%s444] %v545
                  %v547 = vld [vmem:[%s451 + $0x13c] sm:%s444]
                  %548 = vst [vmem:[%s452 + $0xbc] sm:%s444] %v547
                  %v549 = vld [vmem:[%s451 + $0x180] sm:%s444]
                  %550 = vst [vmem:[%s452 + $0xc0] sm:%s444] %v549
                  %v551 = vld [vmem:[%s451 + $0x184] sm:%s444]
                  %552 = vst [vmem:[%s452 + $0xc4] sm:%s444] %v551
                  %v553 = vld [vmem:[%s451 + $0x188] sm:%s444]
                  %554 = vst [vmem:[%s452 + $0xc8] sm:%s444] %v553
                  %v555 = vld [vmem:[%s451 + $0x18c] sm:%s444]
                  %556 = vst [vmem:[%s452 + $0xcc] sm:%s444] %v555
                  %v557 = vld [vmem:[%s451 + $0x190] sm:%s444]
                  %558 = vst [vmem:[%s452 + $0xd0] sm:%s444] %v557
                  %v559 = vld [vmem:[%s451 + $0x194] sm:%s444]
                  %560 = vst [vmem:[%s452 + $0xd4] sm:%s444] %v559
                  %v561 = vld [vmem:[%s451 + $0x198] sm:%s444]
                  %562 = vst [vmem:[%s452 + $0xd8] sm:%s444] %v561
                  %v563 = vld [vmem:[%s451 + $0x19c] sm:%s444]
                  %564 = vst [vmem:[%s452 + $0xdc] sm:%s444] %v563
                  %v565 = vld [vmem:[%s451 + $0x1a0] sm:%s444]
                  %566 = vst [vmem:[%s452 + $0xe0] sm:%s444] %v565
                  %v567 = vld [vmem:[%s451 + $0x1a4] sm:%s444]
                  %568 = vst [vmem:[%s452 + $0xe4] sm:%s444] %v567
                  %v569 = vld [vmem:[%s451 + $0x1a8] sm:%s444]
                  %570 = vst [vmem:[%s452 + $0xe8] sm:%s444] %v569
                  %v571 = vld [vmem:[%s451 + $0x1ac] sm:%s444]
                  %572 = vst [vmem:[%s452 + $0xec] sm:%s444] %v571
                  %v573 = vld [vmem:[%s451 + $0x1b0] sm:%s444]
                  %574 = vst [vmem:[%s452 + $0xf0] sm:%s444] %v573
                  %v575 = vld [vmem:[%s451 + $0x1b4] sm:%s444]
                  %576 = vst [vmem:[%s452 + $0xf4] sm:%s444] %v575
                  %v577 = vld [vmem:[%s451 + $0x1b8] sm:%s444]
                  %578 = vst [vmem:[%s452 + $0xf8] sm:%s444] %v577
                  %v579 = vld [vmem:[%s451 + $0x1bc] sm:%s444]
                  %580 = vst [vmem:[%s452 + $0xfc] sm:%s444] %v579
                $region87: #{classifier_net1_forward.1} parent=74 // loop_footer
                  %s450 = sadd.s32 1, %s446
                $region88: #{classifier_net1_forward.1} parent=74 // loop_footer_branch
                  %445 = sbr.rel target = $region84
                $region89: #{classifier_net1_forward.1} parent=74 // loop_exit
                  _
              $region75: #{classifier_net1_forward.1} parent=59 // pred_fallthru
                _
            $region60: #{classifier_net1_forward.1} parent=55 // pred_fallthru
              _
            // Predicated region
            $region61: #{classifier_net1_forward.1} parent=55 // pred_check
              _
            $region62: #{classifier_net1_forward.1} parent=55 // pred_check_branch
              %294 = sbr.rel (0) target = $region64
            $region63: #{classifier_net1_forward.1} parent=55 // pred_region
              %s296 = ssub.s32 16, 1
              loop: start=0, step=1, limit=1
              $region65: #{classifier_net1_forward.1} parent=63 // loop_pre_header
                _
              $region66: #{classifier_net1_forward.1} parent=63 // loop_header
                %s298 = sphi 0, %s302
                %p299 = scmp.ge.s32.totalorder %s298, 1
                %s303 = sphi %s288, %s288
                %s304 = sphi %s284, %s284
              $region67: #{classifier_net1_forward.1} parent=63 // loop_header_branch
                %301 = sbr.rel (%p299) target = $region71
              $region68: #{classifier_net1_forward.1} parent=63 // loop_body
                %v305 = vld [vmem:[%s303] sm:%s296]
                %306 = vst [vmem:[%s304] sm:%s296] %v305
                %v307 = vld [vmem:[%s303 + $0x4] sm:%s296]
                %308 = vst [vmem:[%s304 + $0x4] sm:%s296] %v307
                %v309 = vld [vmem:[%s303 + $0x8] sm:%s296]
                %310 = vst [vmem:[%s304 + $0x8] sm:%s296] %v309
                %v311 = vld [vmem:[%s303 + $0xc] sm:%s296]
                %312 = vst [vmem:[%s304 + $0xc] sm:%s296] %v311
                %v313 = vld [vmem:[%s303 + $0x10] sm:%s296]
                %314 = vst [vmem:[%s304 + $0x10] sm:%s296] %v313
                %v315 = vld [vmem:[%s303 + $0x14] sm:%s296]
                %316 = vst [vmem:[%s304 + $0x14] sm:%s296] %v315
                %v317 = vld [vmem:[%s303 + $0x18] sm:%s296]
                %318 = vst [vmem:[%s304 + $0x18] sm:%s296] %v317
                %v319 = vld [vmem:[%s303 + $0x1c] sm:%s296]
                %320 = vst [vmem:[%s304 + $0x1c] sm:%s296] %v319
                %v321 = vld [vmem:[%s303 + $0x20] sm:%s296]
                %322 = vst [vmem:[%s304 + $0x20] sm:%s296] %v321
                %v323 = vld [vmem:[%s303 + $0x24] sm:%s296]
                %324 = vst [vmem:[%s304 + $0x24] sm:%s296] %v323
                %v325 = vld [vmem:[%s303 + $0x28] sm:%s296]
                %326 = vst [vmem:[%s304 + $0x28] sm:%s296] %v325
                %v327 = vld [vmem:[%s303 + $0x2c] sm:%s296]
                %328 = vst [vmem:[%s304 + $0x2c] sm:%s296] %v327
                %v329 = vld [vmem:[%s303 + $0x30] sm:%s296]
                %330 = vst [vmem:[%s304 + $0x30] sm:%s296] %v329
                %v331 = vld [vmem:[%s303 + $0x34] sm:%s296]
                %332 = vst [vmem:[%s304 + $0x34] sm:%s296] %v331
                %v333 = vld [vmem:[%s303 + $0x38] sm:%s296]
                %334 = vst [vmem:[%s304 + $0x38] sm:%s296] %v333
                %v335 = vld [vmem:[%s303 + $0x3c] sm:%s296]
                %336 = vst [vmem:[%s304 + $0x3c] sm:%s296] %v335
                %v337 = vld [vmem:[%s303 + $0x80] sm:%s296]
                %338 = vst [vmem:[%s304 + $0x40] sm:%s296] %v337
                %v339 = vld [vmem:[%s303 + $0x84] sm:%s296]
                %340 = vst [vmem:[%s304 + $0x44] sm:%s296] %v339
                %v341 = vld [vmem:[%s303 + $0x88] sm:%s296]
                %342 = vst [vmem:[%s304 + $0x48] sm:%s296] %v341
                %v343 = vld [vmem:[%s303 + $0x8c] sm:%s296]
                %344 = vst [vmem:[%s304 + $0x4c] sm:%s296] %v343
                %v345 = vld [vmem:[%s303 + $0x90] sm:%s296]
                %346 = vst [vmem:[%s304 + $0x50] sm:%s296] %v345
                %v347 = vld [vmem:[%s303 + $0x94] sm:%s296]
                %348 = vst [vmem:[%s304 + $0x54] sm:%s296] %v347
                %v349 = vld [vmem:[%s303 + $0x98] sm:%s296]
                %350 = vst [vmem:[%s304 + $0x58] sm:%s296] %v349
                %v351 = vld [vmem:[%s303 + $0x9c] sm:%s296]
                %352 = vst [vmem:[%s304 + $0x5c] sm:%s296] %v351
                %v353 = vld [vmem:[%s303 + $0xa0] sm:%s296]
                %354 = vst [vmem:[%s304 + $0x60] sm:%s296] %v353
                %v355 = vld [vmem:[%s303 + $0xa4] sm:%s296]
                %356 = vst [vmem:[%s304 + $0x64] sm:%s296] %v355
                %v357 = vld [vmem:[%s303 + $0xa8] sm:%s296]
                %358 = vst [vmem:[%s304 + $0x68] sm:%s296] %v357
                %v359 = vld [vmem:[%s303 + $0xac] sm:%s296]
                %360 = vst [vmem:[%s304 + $0x6c] sm:%s296] %v359
                %v361 = vld [vmem:[%s303 + $0xb0] sm:%s296]
                %362 = vst [vmem:[%s304 + $0x70] sm:%s296] %v361
                %v363 = vld [vmem:[%s303 + $0xb4] sm:%s296]
                %364 = vst [vmem:[%s304 + $0x74] sm:%s296] %v363
                %v365 = vld [vmem:[%s303 + $0xb8] sm:%s296]
                %366 = vst [vmem:[%s304 + $0x78] sm:%s296] %v365
                %v367 = vld [vmem:[%s303 + $0xbc] sm:%s296]
                %368 = vst [vmem:[%s304 + $0x7c] sm:%s296] %v367
                %v369 = vld [vmem:[%s303 + $0x100] sm:%s296]
                %370 = vst [vmem:[%s304 + $0x80] sm:%s296] %v369
                %v371 = vld [vmem:[%s303 + $0x104] sm:%s296]
                %372 = vst [vmem:[%s304 + $0x84] sm:%s296] %v371
                %v373 = vld [vmem:[%s303 + $0x108] sm:%s296]
                %374 = vst [vmem:[%s304 + $0x88] sm:%s296] %v373
                %v375 = vld [vmem:[%s303 + $0x10c] sm:%s296]
                %376 = vst [vmem:[%s304 + $0x8c] sm:%s296] %v375
                %v377 = vld [vmem:[%s303 + $0x110] sm:%s296]
                %378 = vst [vmem:[%s304 + $0x90] sm:%s296] %v377
                %v379 = vld [vmem:[%s303 + $0x114] sm:%s296]
                %380 = vst [vmem:[%s304 + $0x94] sm:%s296] %v379
                %v381 = vld [vmem:[%s303 + $0x118] sm:%s296]
                %382 = vst [vmem:[%s304 + $0x98] sm:%s296] %v381
                %v383 = vld [vmem:[%s303 + $0x11c] sm:%s296]
                %384 = vst [vmem:[%s304 + $0x9c] sm:%s296] %v383
                %v385 = vld [vmem:[%s303 + $0x120] sm:%s296]
                %386 = vst [vmem:[%s304 + $0xa0] sm:%s296] %v385
                %v387 = vld [vmem:[%s303 + $0x124] sm:%s296]
                %388 = vst [vmem:[%s304 + $0xa4] sm:%s296] %v387
                %v389 = vld [vmem:[%s303 + $0x128] sm:%s296]
                %390 = vst [vmem:[%s304 + $0xa8] sm:%s296] %v389
                %v391 = vld [vmem:[%s303 + $0x12c] sm:%s296]
                %392 = vst [vmem:[%s304 + $0xac] sm:%s296] %v391
                %v393 = vld [vmem:[%s303 + $0x130] sm:%s296]
                %394 = vst [vmem:[%s304 + $0xb0] sm:%s296] %v393
                %v395 = vld [vmem:[%s303 + $0x134] sm:%s296]
                %396 = vst [vmem:[%s304 + $0xb4] sm:%s296] %v395
                %v397 = vld [vmem:[%s303 + $0x138] sm:%s296]
                %398 = vst [vmem:[%s304 + $0xb8] sm:%s296] %v397
                %v399 = vld [vmem:[%s303 + $0x13c] sm:%s296]
                %400 = vst [vmem:[%s304 + $0xbc] sm:%s296] %v399
                %v401 = vld [vmem:[%s303 + $0x180] sm:%s296]
                %402 = vst [vmem:[%s304 + $0xc0] sm:%s296] %v401
                %v403 = vld [vmem:[%s303 + $0x184] sm:%s296]
                %404 = vst [vmem:[%s304 + $0xc4] sm:%s296] %v403
                %v405 = vld [vmem:[%s303 + $0x188] sm:%s296]
                %406 = vst [vmem:[%s304 + $0xc8] sm:%s296] %v405
                %v407 = vld [vmem:[%s303 + $0x18c] sm:%s296]
                %408 = vst [vmem:[%s304 + $0xcc] sm:%s296] %v407
                %v409 = vld [vmem:[%s303 + $0x190] sm:%s296]
                %410 = vst [vmem:[%s304 + $0xd0] sm:%s296] %v409
                %v411 = vld [vmem:[%s303 + $0x194] sm:%s296]
                %412 = vst [vmem:[%s304 + $0xd4] sm:%s296] %v411
                %v413 = vld [vmem:[%s303 + $0x198] sm:%s296]
                %414 = vst [vmem:[%s304 + $0xd8] sm:%s296] %v413
                %v415 = vld [vmem:[%s303 + $0x19c] sm:%s296]
                %416 = vst [vmem:[%s304 + $0xdc] sm:%s296] %v415
                %v417 = vld [vmem:[%s303 + $0x1a0] sm:%s296]
                %418 = vst [vmem:[%s304 + $0xe0] sm:%s296] %v417
                %v419 = vld [vmem:[%s303 + $0x1a4] sm:%s296]
                %420 = vst [vmem:[%s304 + $0xe4] sm:%s296] %v419
                %v421 = vld [vmem:[%s303 + $0x1a8] sm:%s296]
                %422 = vst [vmem:[%s304 + $0xe8] sm:%s296] %v421
                %v423 = vld [vmem:[%s303 + $0x1ac] sm:%s296]
                %424 = vst [vmem:[%s304 + $0xec] sm:%s296] %v423
                %v425 = vld [vmem:[%s303 + $0x1b0] sm:%s296]
                %426 = vst [vmem:[%s304 + $0xf0] sm:%s296] %v425
                %v427 = vld [vmem:[%s303 + $0x1b4] sm:%s296]
                %428 = vst [vmem:[%s304 + $0xf4] sm:%s296] %v427
                %v429 = vld [vmem:[%s303 + $0x1b8] sm:%s296]
                %430 = vst [vmem:[%s304 + $0xf8] sm:%s296] %v429
                %v431 = vld [vmem:[%s303 + $0x1bc] sm:%s296]
                %432 = vst [vmem:[%s304 + $0xfc] sm:%s296] %v431
              $region69: #{classifier_net1_forward.1} parent=63 // loop_footer
                %s302 = sadd.s32 1, %s298
              $region70: #{classifier_net1_forward.1} parent=63 // loop_footer_branch
                %297 = sbr.rel target = $region66
              $region71: #{classifier_net1_forward.1} parent=63 // loop_exit
                _
            $region64: #{classifier_net1_forward.1} parent=55 // pred_fallthru
              _
          $region56: #{classifier_net1_forward.1} parent=51 // pred_fallthru
            _
          %581 = vnop
        $region52: #{classifier_net1_forward.1} parent=47 // pred_fallthru
          _
      $region48: #{classifier_net1_forward.1} parent=5 // pred_fallthru
        _
      %p582 = scmp.le.s32.totalorder 1, %s15
      %p583 = scmp.lt.s32.totalorder %s15, 3
      %p584 = pnand %p582, %p583
      %p585 = pneg %p584
      // Predicated region
      $region90: #{classifier_net1_forward.1} parent=5 // pred_check
        _
      $region91: #{classifier_net1_forward.1} parent=5 // pred_check_branch
        %587 = sbr.rel (%p584) target = $region93
      $region92: #{classifier_net1_forward.1} parent=5 // pred_region
        %s588 = ssub.s32 %s15, 1
        %s589 = sand.u32 %s28, 1
        %s590 = sand.u32 %s28, 1
        %s591 = smul.addr %s590, 256
        %s592 = scalar_lea.vmem [#allocation3], %s591
        // Predicated region
        $region94: #{classifier_net1_forward.1} parent=92 // pred_check
          %p593 = pneg %p41
        $region95: #{classifier_net1_forward.1} parent=92 // pred_check_branch
          %595 = sbr.rel (%p593) target = $region97
        $region96: #{classifier_net1_forward.1} parent=92 // pred_region
          _
        $region97: #{classifier_net1_forward.1} parent=92 // pred_fallthru
          _
        %s596 = sand.u32 %s28, 1
        %s597 = sand.u32 %s28, 1
        %s598 = smul.addr %s597, 256
        %s599 = scalar_lea.vmem [#allocation3], %s598
        %p600 = pneg %p41
        %p601 = pneg %p38
        %p602 = pneg %p62
        %p603 = pneg %p59
        %p604 = pneg %p83
        %p605 = pneg %p80
        %p606 = pneg %p104
        %p607 = pneg %p101
        %p608 = pneg %p125
        %p609 = pneg %p122
        %p610 = pneg %p146
        %p611 = pneg %p143
        %p612 = pneg %p167
        %p613 = pneg %p164
        %p614 = pneg %p188
        %p615 = pneg %p185
        %p616 = pneg %p209
        %p617 = pneg %p206
        %p618 = pneg %p235
        %p619 = pneg %p232
        %s620 = smul.u32 2, %s20
        %p621 = scmp.lt.s32.totalorder %s620, 3
        %s622 = scalar_select %p621, %s620, 3
        %s623 = smul.addr %s622, 8
        %s624 = scalar_lea.vmem %s9, %s623
        %s625 = smul.u32 2, %s20
        %s626 = smul.u32 2, %s20
        %p627 = scmp.lt.s32.totalorder %s626, 3
        %s628 = scalar_select %p627, %s626, 3
        %s629 = smul.addr %s628, 8
        %s630 = scalar_lea.vmem %s9, %s629
        %s631 = smul.u32 2, %s20
        %633 = vst [vmem:[#allocation2] sm:$0xff] 0.0
        %634 = vst [vmem:[#allocation2 + $0x8] sm:$0x1] 0.0
        %635 = vst [vmem:[#allocation2 + $0x90] sm:$0xff] 0.0
        %636 = vst [vmem:[#allocation2 + $0x98] sm:$0x1] 0.0
        %s637 = scalar_lea.vmem [#allocation2], 288
        %638 = vst [vmem:[%s637] sm:$0xff] 0.0
        %639 = vst [vmem:[%s637 + $0x8] sm:$0x1] 0.0
        %640 = vst [vmem:[%s637 + $0x90] sm:$0xff] 0.0
        %641 = vst [vmem:[%s637 + $0x98] sm:$0x1] 0.0
        %642 = vst [vmem:[#allocation2] sm:$0x1] 0.0
        %643 = vst [vmem:[#allocation2 + $0x10] sm:$0x1] 0.0
        %644 = vst [vmem:[#allocation2 + $0x20] sm:$0x1] 0.0
        %645 = vst [vmem:[#allocation2 + $0x30] sm:$0x1] 0.0
        %646 = vst [vmem:[#allocation2 + $0x40] sm:$0x1] 0.0
        %647 = vst [vmem:[#allocation2 + $0x50] sm:$0x1] 0.0
        %648 = vst [vmem:[#allocation2 + $0x60] sm:$0x1] 0.0
        %649 = vst [vmem:[#allocation2 + $0x70] sm:$0x1] 0.0
        %650 = vst [vmem:[#allocation2 + $0x80] sm:$0x1] 0.0
        %651 = vst [vmem:[#allocation2 + $0x90] sm:$0x1] 0.0
        %652 = vst [vmem:[#allocation2 + $0xa0] sm:$0x1] 0.0
        %653 = vst [vmem:[#allocation2 + $0xb0] sm:$0x1] 0.0
        %654 = vst [vmem:[#allocation2 + $0xc0] sm:$0x1] 0.0
        %655 = vst [vmem:[#allocation2 + $0xd0] sm:$0x1] 0.0
        %656 = vst [vmem:[#allocation2 + $0xe0] sm:$0x1] 0.0
        %657 = vst [vmem:[#allocation2 + $0xf0] sm:$0x1] 0.0
        %658 = vst [vmem:[#allocation2 + $0x100] sm:$0x1] 0.0
        %659 = vst [vmem:[#allocation2 + $0x110] sm:$0x1] 0.0
        %s660 = scalar_lea.vmem [#allocation2], 576
        %661 = vst [vmem:[%s660] sm:$0x1] 0.0
        %662 = vst [vmem:[%s660 + $0x10] sm:$0x1] 0.0
        %663 = vst [vmem:[%s660 + $0x20] sm:$0x1] 0.0
        %664 = vst [vmem:[%s660 + $0x30] sm:$0x1] 0.0
        %665 = vst [vmem:[%s660 + $0x40] sm:$0x1] 0.0
        %666 = vst [vmem:[%s660 + $0x50] sm:$0x1] 0.0
        %667 = vst [vmem:[%s660 + $0x60] sm:$0x1] 0.0
        %668 = vst [vmem:[%s660 + $0x70] sm:$0x1] 0.0
        %669 = vst [vmem:[%s660 + $0x80] sm:$0x1] 0.0
        %670 = vst [vmem:[%s660 + $0x90] sm:$0x1] 0.0
        %671 = vst [vmem:[%s660 + $0xa0] sm:$0x1] 0.0
        %672 = vst [vmem:[%s660 + $0xb0] sm:$0x1] 0.0
        %673 = vst [vmem:[%s660 + $0xc0] sm:$0x1] 0.0
        %674 = vst [vmem:[%s660 + $0xd0] sm:$0x1] 0.0
        %675 = vst [vmem:[%s660 + $0xe0] sm:$0x1] 0.0
        %676 = vst [vmem:[%s660 + $0xf0] sm:$0x1] 0.0
        %677 = vst [vmem:[%s660 + $0x100] sm:$0x1] 0.0
        %678 = vst [vmem:[%s660 + $0x110] sm:$0x1] 0.0
        %v679 = vld [vmem:[%s592] sm:$0xf]
        %v680 = vld [vmem:[%s592 + $0x4] sm:$0xf]
        %v681 = vld [vmem:[%s592 + $0x8] sm:$0xf]
        %v682 = vld [vmem:[%s592 + $0xc] sm:$0xf]
        %v683 = vld [vmem:[%s592 + $0x10] sm:$0xf]
        %v684 = vld [vmem:[%s592 + $0x14] sm:$0xf]
        %v685 = vld [vmem:[%s592 + $0x18] sm:$0xf]
        %v686 = vld [vmem:[%s592 + $0x1c] sm:$0xf]
        %v687 = vld [vmem:[%s592 + $0x20] sm:$0xf]
        %v688 = vld [vmem:[%s592 + $0x24] sm:$0xf]
        %v689 = vld [vmem:[%s592 + $0x28] sm:$0xf]
        %v690 = vld [vmem:[%s592 + $0x2c] sm:$0xf]
        %v691 = vld [vmem:[%s592 + $0x30] sm:$0xf]
        %v692 = vld [vmem:[%s592 + $0x34] sm:$0xf]
        %v693 = vld [vmem:[%s592 + $0x38] sm:$0xf]
        %v694 = vld [vmem:[%s592 + $0x3c] sm:$0xf]
        %v695 = vld [vmem:[%s592 + $0x40] sm:$0xf]
        %v696 = vld [vmem:[%s592 + $0x44] sm:$0xf]
        %v697 = vld [vmem:[%s592 + $0x48] sm:$0xf]
        %v698 = vld [vmem:[%s592 + $0x4c] sm:$0xf]
        %v699 = vld [vmem:[%s592 + $0x50] sm:$0xf]
        %v700 = vld [vmem:[%s592 + $0x54] sm:$0xf]
        %v701 = vld [vmem:[%s592 + $0x58] sm:$0xf]
        %v702 = vld [vmem:[%s592 + $0x5c] sm:$0xf]
        %v703 = vld [vmem:[%s592 + $0x60] sm:$0xf]
        %v704 = vld [vmem:[%s592 + $0x64] sm:$0xf]
        %v705 = vld [vmem:[%s592 + $0x68] sm:$0xf]
        %v706 = vld [vmem:[%s592 + $0x6c] sm:$0xf]
        %v707 = vld [vmem:[%s592 + $0x70] sm:$0xf]
        %v708 = vld [vmem:[%s592 + $0x74] sm:$0xf]
        %v709 = vld [vmem:[%s592 + $0x78] sm:$0xf]
        %v710 = vld [vmem:[%s592 + $0x7c] sm:$0xf]
        %v711 = vld [vmem:[%s592 + $0x80] sm:$0xf]
        %v712 = vld [vmem:[%s592 + $0x84] sm:$0xf]
        %v713 = vld [vmem:[%s592 + $0x88] sm:$0xf]
        %v714 = vld [vmem:[%s592 + $0x8c] sm:$0xf]
        %v715 = vld [vmem:[%s592 + $0x90] sm:$0xf]
        %v716 = vld [vmem:[%s592 + $0x94] sm:$0xf]
        %v717 = vld [vmem:[%s592 + $0x98] sm:$0xf]
        %v718 = vld [vmem:[%s592 + $0x9c] sm:$0xf]
        %v719 = vld [vmem:[%s592 + $0xa0] sm:$0xf]
        %v720 = vld [vmem:[%s592 + $0xa4] sm:$0xf]
        %v721 = vld [vmem:[%s592 + $0xa8] sm:$0xf]
        %v722 = vld [vmem:[%s592 + $0xac] sm:$0xf]
        %v723 = vld [vmem:[%s592 + $0xb0] sm:$0xf]
        %v724 = vld [vmem:[%s592 + $0xb4] sm:$0xf]
        %v725 = vld [vmem:[%s592 + $0xb8] sm:$0xf]
        %v726 = vld [vmem:[%s592 + $0xbc] sm:$0xf]
        %v727 = vld [vmem:[%s592 + $0xc0] sm:$0xf]
        %v728 = vld [vmem:[%s592 + $0xc4] sm:$0xf]
        %v729 = vld [vmem:[%s592 + $0xc8] sm:$0xf]
        %v730 = vld [vmem:[%s592 + $0xcc] sm:$0xf]
        %v731 = vld [vmem:[%s592 + $0xd0] sm:$0xf]
        %v732 = vld [vmem:[%s592 + $0xd4] sm:$0xf]
        %v733 = vld [vmem:[%s592 + $0xd8] sm:$0xf]
        %v734 = vld [vmem:[%s592 + $0xdc] sm:$0xf]
        %v735 = vld [vmem:[%s592 + $0xe0] sm:$0xf]
        %v736 = vld [vmem:[%s592 + $0xe4] sm:$0xf]
        %v737 = vld [vmem:[%s592 + $0xe8] sm:$0xf]
        %v738 = vld [vmem:[%s592 + $0xec] sm:$0xf]
        %v739 = vld [vmem:[%s592 + $0xf0] sm:$0xf]
        %v740 = vld [vmem:[%s592 + $0xf4] sm:$0xf]
        %v741 = vld [vmem:[%s592 + $0xf8] sm:$0xf]
        %v742 = vld [vmem:[%s592 + $0xfc] sm:$0xf]
        %v743 = vld [vmem:[%s1] sm:$0xf]
        %v744 = vld [vmem:[%s1 + $0x4] sm:$0xf]
        %v745 = vld [vmem:[%s1 + $0x8] sm:$0xf]
        %v746 = vld [vmem:[%s1 + $0xc] sm:$0xf]
        %v747 = vld [vmem:[%s1 + $0x10] sm:$0x3]
        %v748 = vld [vmem:[%s2] sm:$0x1]
        %v750 = vlaneseq
        %v751 = vshrl.u32 %v750, 7
        %v752 = vsub.s32 0, %v751
        %v753 = vrot.slane %v748, %v752
        %v819 = vunpack.c.l.b16 %v679
        %v820 = vunpack.c.l.b16 %v680
        %v821 = vunpack.c.l.b16 %v681
        %v822 = vunpack.c.l.b16 %v682
        %v823 = vunpack.c.l.b16 %v683
        %v824 = vunpack.c.l.b16 %v684
        %v825 = vunpack.c.l.b16 %v685
        %v826 = vunpack.c.l.b16 %v686
        %v827 = vunpack.c.l.b16 %v687
        %v828 = vunpack.c.l.b16 %v688
        %v829 = vunpack.c.l.b16 %v689
        %v830 = vunpack.c.l.b16 %v690
        %v831 = vunpack.c.l.b16 %v691
        %v832 = vunpack.c.l.b16 %v692
        %v833 = vunpack.c.l.b16 %v693
        %v834 = vunpack.c.l.b16 %v694
        %v835 = vunpack.c.l.b16 %v695
        %v836 = vunpack.c.l.b16 %v696
        %v837 = vunpack.c.l.b16 %v697
        %v838 = vunpack.c.l.b16 %v698
        %v839 = vunpack.c.l.b16 %v699
        %v840 = vunpack.c.l.b16 %v700
        %v841 = vunpack.c.l.b16 %v701
        %v842 = vunpack.c.l.b16 %v702
        %v843 = vunpack.c.l.b16 %v703
        %v844 = vunpack.c.l.b16 %v704
        %v845 = vunpack.c.l.b16 %v705
        %v846 = vunpack.c.l.b16 %v706
        %v847 = vunpack.c.l.b16 %v707
        %v848 = vunpack.c.l.b16 %v708
        %v849 = vunpack.c.l.b16 %v709
        %v850 = vunpack.c.l.b16 %v710
        %v851 = vunpack.c.l.b16 %v711
        %v852 = vunpack.c.l.b16 %v712
        %v853 = vunpack.c.l.b16 %v713
        %v854 = vunpack.c.l.b16 %v714
        %v855 = vunpack.c.l.b16 %v715
        %v856 = vunpack.c.l.b16 %v716
        %v857 = vunpack.c.l.b16 %v717
        %v858 = vunpack.c.l.b16 %v718
        %v859 = vunpack.c.l.b16 %v719
        %v860 = vunpack.c.l.b16 %v720
        %v861 = vunpack.c.l.b16 %v721
        %v862 = vunpack.c.l.b16 %v722
        %v863 = vunpack.c.l.b16 %v723
        %v864 = vunpack.c.l.b16 %v724
        %v865 = vunpack.c.l.b16 %v725
        %v866 = vunpack.c.l.b16 %v726
        %v867 = vunpack.c.l.b16 %v727
        %v868 = vunpack.c.l.b16 %v728
        %v869 = vunpack.c.l.b16 %v729
        %v870 = vunpack.c.l.b16 %v730
        %v871 = vunpack.c.l.b16 %v731
        %v872 = vunpack.c.l.b16 %v732
        %v873 = vunpack.c.l.b16 %v733
        %v874 = vunpack.c.l.b16 %v734
        %v875 = vunpack.c.l.b16 %v735
        %v876 = vunpack.c.l.b16 %v736
        %v877 = vunpack.c.l.b16 %v737
        %v878 = vunpack.c.l.b16 %v738
        %v879 = vunpack.c.l.b16 %v739
        %v880 = vunpack.c.l.b16 %v740
        %v881 = vunpack.c.l.b16 %v741
        %v882 = vunpack.c.l.b16 %v742
        %v883 = vpack.c.b16 %v820, %v819
        %v884 = vpack.c.b16 %v822, %v821
        %v885 = vpack.c.b16 %v824, %v823
        %v886 = vpack.c.b16 %v826, %v825
        %v887 = vpack.c.b16 %v828, %v827
        %v888 = vpack.c.b16 %v830, %v829
        %v889 = vpack.c.b16 %v832, %v831
        %v890 = vpack.c.b16 %v834, %v833
        %v891 = vpack.c.b16 %v836, %v835
        %v892 = vpack.c.b16 %v838, %v837
        %v893 = vpack.c.b16 %v840, %v839
        %v894 = vpack.c.b16 %v842, %v841
        %v895 = vpack.c.b16 %v844, %v843
        %v896 = vpack.c.b16 %v846, %v845
        %v897 = vpack.c.b16 %v848, %v847
        %v898 = vpack.c.b16 %v850, %v849
        %v899 = vpack.c.b16 %v852, %v851
        %v900 = vpack.c.b16 %v854, %v853
        %v901 = vpack.c.b16 %v856, %v855
        %v902 = vpack.c.b16 %v858, %v857
        %v903 = vpack.c.b16 %v860, %v859
        %v904 = vpack.c.b16 %v862, %v861
        %v905 = vpack.c.b16 %v864, %v863
        %v906 = vpack.c.b16 %v866, %v865
        %v907 = vpack.c.b16 %v868, %v867
        %v908 = vpack.c.b16 %v870, %v869
        %v909 = vpack.c.b16 %v872, %v871
        %v910 = vpack.c.b16 %v874, %v873
        %v911 = vpack.c.b16 %v876, %v875
        %v912 = vpack.c.b16 %v878, %v877
        %v913 = vpack.c.b16 %v880, %v879
        %v914 = vpack.c.b16 %v882, %v881
        %v920 = vunpack.c.l.b16 %v743
        %v921 = vunpack.c.l.b16 %v744
        %v922 = vunpack.c.l.b16 %v745
        %v923 = vunpack.c.l.b16 %v746
        %v924 = vunpack.c.l.b16 %v747
        %v925 = vpack.c.b16 %v921, %v920
        %v926 = vpack.c.b16 %v923, %v922
        %v927 = vpack.c.b16 %v924, %v924
        %vm930 = vcmask 293888
        %v932 = vsel %vm930, %v883, 0
        %v935 = vsel %vm930, %v884, 0
        %v938 = vsel %vm930, %v885, 0
        %v941 = vsel %vm930, %v886, 0
        %v944 = vsel %vm930, %v887, 0
        %v947 = vsel %vm930, %v888, 0
        %v950 = vsel %vm930, %v889, 0
        %v953 = vsel %vm930, %v890, 0
        %v956 = vsel %vm930, %v891, 0
        %v959 = vsel %vm930, %v892, 0
        %v962 = vsel %vm930, %v893, 0
        %v965 = vsel %vm930, %v894, 0
        %v968 = vsel %vm930, %v895, 0
        %v971 = vsel %vm930, %v896, 0
        %v974 = vsel %vm930, %v897, 0
        %v977 = vsel %vm930, %v898, 0
        %v980 = vsel %vm930, %v899, 0
        %v983 = vsel %vm930, %v900, 0
        %v986 = vsel %vm930, %v901, 0
        %v989 = vsel %vm930, %v902, 0
        %v992 = vsel %vm930, %v903, 0
        %v995 = vsel %vm930, %v904, 0
        %v998 = vsel %vm930, %v905, 0
        %v1001 = vsel %vm930, %v906, 0
        %v1004 = vsel %vm930, %v907, 0
        %v1007 = vsel %vm930, %v908, 0
        %v1010 = vsel %vm930, %v909, 0
        %v1013 = vsel %vm930, %v910, 0
        %v1016 = vsel %vm930, %v911, 0
        %v1019 = vsel %vm930, %v912, 0
        %v1022 = vsel %vm930, %v913, 0
        %v1025 = vsel %vm930, %v914, 0
        %vm1027 = vcmask 1041408
        %v1029 = vsel %vm1027, %v927, 0
        %1031 = vmatprep.subr.bf16.mxu0 0
        %1032 = vmatpush1.bf16.msra.mxu0 0
        %1033 = vmatprep.subr.bf16.mxu0 0
        %1034 = vmatpush1.bf16.msra.mxu0 0
        %1035 = vmatprep.subr.bf16.mxu0 0
        %1036 = vmatpush1.bf16.msra.mxu0 0
        %1037 = vmatprep.subr.bf16.mxu0 0
        %1038 = vmatpush1.bf16.msra.mxu0 0
        %1039 = vmatprep.subr.bf16.mxu0 0
        %1040 = vmatpush1.bf16.msra.mxu0 0
        %1041 = vmatprep.subr.bf16.mxu0 0
        %1042 = vmatpush1.bf16.msra.mxu0 %v1029
        %1043 = vmatprep.subr.bf16.mxu0 0
        %1044 = vmatpush1.bf16.msra.mxu0 %v926
        %1045 = vmatprep.subr.bf16.mxu0 0
        %1046 = vmatpush1.bf16.msra.mxu0 %v925
        %1047 = vmatprep.subr.bf16.mxu0 0
        %1048 = vmatpush2.bf16.msra.mxu0 0
        %1049 = vmatprep.subr.bf16.mxu0 0
        %1050 = vmatpush2.bf16.msra.mxu0 0
        %1051 = vmatprep.subr.bf16.mxu0 0
        %1052 = vmatpush2.bf16.msra.mxu0 0
        %1053 = vmatprep.subr.bf16.mxu0 0
        %1054 = vmatpush2.bf16.msra.mxu0 0
        %1055 = vmatprep.subr.bf16.mxu0 0
        %1056 = vmatpush2.bf16.msra.mxu0 0
        %1057 = vmatprep.subr.bf16.mxu0 0
        %1058 = vmatpush2.bf16.msra.mxu0 0
        %1059 = vmatprep.subr.bf16.mxu0 0
        %1060 = vmatpush2.bf16.msra.mxu0 0
        %1061 = vmatprep.subr.bf16.mxu0 0
        %1062 = vmatpush2.bf16.msra.mxu0 0
        %1063 = vmatprep.mubr.bf16.mxu0 0
        %1064 = vmatmul.mubr.bf16.gmra.mxu0 %v932
        %v1065 = vpop.f32.mrf.mxu0
        %v1066 = vadd.f32 %v753, %v1065
        %v1067 = vpop.f32.mrf.mxu0
        %v1068 = vpop.f32.mrf.mxu0
        %v1069 = vadd.f32 %v753, %v1068
        %v1070 = vpop.f32.mrf.mxu0
        %1071 = vmatprep.mubr.bf16.mxu0 0
        %1072 = vmatmul.mubr.bf16.gmra.mxu0 %v935
        %v1073 = vpop.f32.mrf.mxu0
        %v1074 = vadd.f32 %v753, %v1073
        %v1075 = vpop.f32.mrf.mxu0
        %v1076 = vpop.f32.mrf.mxu0
        %v1077 = vadd.f32 %v753, %v1076
        %v1078 = vpop.f32.mrf.mxu0
        %1079 = vmatprep.mubr.bf16.mxu0 0
        %1080 = vmatmul.mubr.bf16.gmra.mxu0 %v938
        %v1081 = vpop.f32.mrf.mxu0
        %v1082 = vadd.f32 %v753, %v1081
        %v1083 = vpop.f32.mrf.mxu0
        %v1084 = vpop.f32.mrf.mxu0
        %v1085 = vadd.f32 %v753, %v1084
        %v1086 = vpop.f32.mrf.mxu0
        %1087 = vmatprep.mubr.bf16.mxu0 0
        %1088 = vmatmul.mubr.bf16.gmra.mxu0 %v941
        %v1089 = vpop.f32.mrf.mxu0
        %v1090 = vadd.f32 %v753, %v1089
        %v1091 = vpop.f32.mrf.mxu0
        %v1092 = vpop.f32.mrf.mxu0
        %v1093 = vadd.f32 %v753, %v1092
        %v1094 = vpop.f32.mrf.mxu0
        %1095 = vmatprep.mubr.bf16.mxu0 0
        %1096 = vmatmul.mubr.bf16.gmra.mxu0 %v944
        %v1097 = vpop.f32.mrf.mxu0
        %v1098 = vadd.f32 %v753, %v1097
        %v1099 = vpop.f32.mrf.mxu0
        %v1100 = vpop.f32.mrf.mxu0
        %v1101 = vadd.f32 %v753, %v1100
        %v1102 = vpop.f32.mrf.mxu0
        %1103 = vmatprep.mubr.bf16.mxu0 0
        %1104 = vmatmul.mubr.bf16.gmra.mxu0 %v947
        %v1105 = vpop.f32.mrf.mxu0
        %v1106 = vadd.f32 %v753, %v1105
        %v1107 = vpop.f32.mrf.mxu0
        %v1108 = vpop.f32.mrf.mxu0
        %v1109 = vadd.f32 %v753, %v1108
        %v1110 = vpop.f32.mrf.mxu0
        %1111 = vmatprep.mubr.bf16.mxu0 0
        %1112 = vmatmul.mubr.bf16.gmra.mxu0 %v950
        %v1113 = vpop.f32.mrf.mxu0
        %v1114 = vadd.f32 %v753, %v1113
        %v1115 = vpop.f32.mrf.mxu0
        %v1116 = vpop.f32.mrf.mxu0
        %v1117 = vadd.f32 %v753, %v1116
        %v1118 = vpop.f32.mrf.mxu0
        %1119 = vmatprep.mubr.bf16.mxu0 0
        %1120 = vmatmul.mubr.bf16.gmra.mxu0 %v953
        %v1121 = vpop.f32.mrf.mxu0
        %v1122 = vadd.f32 %v753, %v1121
        %v1123 = vpop.f32.mrf.mxu0
        %v1124 = vpop.f32.mrf.mxu0
        %v1125 = vadd.f32 %v753, %v1124
        %v1126 = vpop.f32.mrf.mxu0
        %1127 = vmatprep.mubr.bf16.mxu0 0
        %1128 = vmatmul.mubr.bf16.gmra.mxu0 %v956
        %v1129 = vpop.f32.mrf.mxu0
        %v1130 = vadd.f32 %v753, %v1129
        %v1131 = vpop.f32.mrf.mxu0
        %v1132 = vpop.f32.mrf.mxu0
        %v1133 = vadd.f32 %v753, %v1132
        %v1134 = vpop.f32.mrf.mxu0
        %1135 = vmatprep.mubr.bf16.mxu0 0
        %1136 = vmatmul.mubr.bf16.gmra.mxu0 %v959
        %v1137 = vpop.f32.mrf.mxu0
        %v1138 = vadd.f32 %v753, %v1137
        %v1139 = vpop.f32.mrf.mxu0
        %v1140 = vpop.f32.mrf.mxu0
        %v1141 = vadd.f32 %v753, %v1140
        %v1142 = vpop.f32.mrf.mxu0
        %1143 = vmatprep.mubr.bf16.mxu0 0
        %1144 = vmatmul.mubr.bf16.gmra.mxu0 %v962
        %v1145 = vpop.f32.mrf.mxu0
        %v1146 = vadd.f32 %v753, %v1145
        %v1147 = vpop.f32.mrf.mxu0
        %v1148 = vpop.f32.mrf.mxu0
        %v1149 = vadd.f32 %v753, %v1148
        %v1150 = vpop.f32.mrf.mxu0
        %1151 = vmatprep.mubr.bf16.mxu0 0
        %1152 = vmatmul.mubr.bf16.gmra.mxu0 %v965
        %v1153 = vpop.f32.mrf.mxu0
        %v1154 = vadd.f32 %v753, %v1153
        %v1155 = vpop.f32.mrf.mxu0
        %v1156 = vpop.f32.mrf.mxu0
        %v1157 = vadd.f32 %v753, %v1156
        %v1158 = vpop.f32.mrf.mxu0
        %1159 = vmatprep.mubr.bf16.mxu0 0
        %1160 = vmatmul.mubr.bf16.gmra.mxu0 %v968
        %v1161 = vpop.f32.mrf.mxu0
        %v1162 = vadd.f32 %v753, %v1161
        %v1163 = vpop.f32.mrf.mxu0
        %v1164 = vpop.f32.mrf.mxu0
        %v1165 = vadd.f32 %v753, %v1164
        %v1166 = vpop.f32.mrf.mxu0
        %1167 = vmatprep.mubr.bf16.mxu0 0
        %1168 = vmatmul.mubr.bf16.gmra.mxu0 %v971
        %v1169 = vpop.f32.mrf.mxu0
        %v1170 = vadd.f32 %v753, %v1169
        %v1171 = vpop.f32.mrf.mxu0
        %v1172 = vpop.f32.mrf.mxu0
        %v1173 = vadd.f32 %v753, %v1172
        %v1174 = vpop.f32.mrf.mxu0
        %1175 = vmatprep.mubr.bf16.mxu0 0
        %1176 = vmatmul.mubr.bf16.gmra.mxu0 %v974
        %v1177 = vpop.f32.mrf.mxu0
        %v1178 = vadd.f32 %v753, %v1177
        %v1179 = vpop.f32.mrf.mxu0
        %v1180 = vpop.f32.mrf.mxu0
        %v1181 = vadd.f32 %v753, %v1180
        %v1182 = vpop.f32.mrf.mxu0
        %1183 = vmatprep.mubr.bf16.mxu0 0
        %1184 = vmatmul.mubr.bf16.gmra.mxu0 %v977
        %v1185 = vpop.f32.mrf.mxu0
        %v1186 = vadd.f32 %v753, %v1185
        %v1187 = vpop.f32.mrf.mxu0
        %v1188 = vpop.f32.mrf.mxu0
        %v1189 = vadd.f32 %v753, %v1188
        %v1190 = vpop.f32.mrf.mxu0
        %1191 = vmatprep.mubr.bf16.mxu0 0
        %1192 = vmatmul.mubr.bf16.gmra.mxu0 %v980
        %v1193 = vpop.f32.mrf.mxu0
        %v1194 = vadd.f32 %v753, %v1193
        %v1195 = vpop.f32.mrf.mxu0
        %v1196 = vpop.f32.mrf.mxu0
        %v1197 = vadd.f32 %v753, %v1196
        %v1198 = vpop.f32.mrf.mxu0
        %1199 = vmatprep.mubr.bf16.mxu0 0
        %1200 = vmatmul.mubr.bf16.gmra.mxu0 %v983
        %v1201 = vpop.f32.mrf.mxu0
        %v1202 = vadd.f32 %v753, %v1201
        %v1203 = vpop.f32.mrf.mxu0
        %v1204 = vpop.f32.mrf.mxu0
        %v1205 = vadd.f32 %v753, %v1204
        %v1206 = vpop.f32.mrf.mxu0
        %1207 = vmatprep.mubr.bf16.mxu0 0
        %1208 = vmatmul.mubr.bf16.gmra.mxu0 %v986
        %v1209 = vpop.f32.mrf.mxu0
        %v1210 = vadd.f32 %v753, %v1209
        %v1211 = vpop.f32.mrf.mxu0
        %v1212 = vpop.f32.mrf.mxu0
        %v1213 = vadd.f32 %v753, %v1212
        %v1214 = vpop.f32.mrf.mxu0
        %1215 = vmatprep.mubr.bf16.mxu0 0
        %1216 = vmatmul.mubr.bf16.gmra.mxu0 %v989
        %v1217 = vpop.f32.mrf.mxu0
        %v1218 = vadd.f32 %v753, %v1217
        %v1219 = vpop.f32.mrf.mxu0
        %v1220 = vpop.f32.mrf.mxu0
        %v1221 = vadd.f32 %v753, %v1220
        %v1222 = vpop.f32.mrf.mxu0
        %1223 = vmatprep.mubr.bf16.mxu0 0
        %1224 = vmatmul.mubr.bf16.gmra.mxu0 %v992
        %v1225 = vpop.f32.mrf.mxu0
        %v1226 = vadd.f32 %v753, %v1225
        %v1227 = vpop.f32.mrf.mxu0
        %v1228 = vpop.f32.mrf.mxu0
        %v1229 = vadd.f32 %v753, %v1228
        %v1230 = vpop.f32.mrf.mxu0
        %1231 = vmatprep.mubr.bf16.mxu0 0
        %1232 = vmatmul.mubr.bf16.gmra.mxu0 %v995
        %v1233 = vpop.f32.mrf.mxu0
        %v1234 = vadd.f32 %v753, %v1233
        %v1235 = vpop.f32.mrf.mxu0
        %v1236 = vpop.f32.mrf.mxu0
        %v1237 = vadd.f32 %v753, %v1236
        %v1238 = vpop.f32.mrf.mxu0
        %1239 = vmatprep.mubr.bf16.mxu0 0
        %1240 = vmatmul.mubr.bf16.gmra.mxu0 %v998
        %v1241 = vpop.f32.mrf.mxu0
        %v1242 = vadd.f32 %v753, %v1241
        %v1243 = vpop.f32.mrf.mxu0
        %v1244 = vpop.f32.mrf.mxu0
        %v1245 = vadd.f32 %v753, %v1244
        %v1246 = vpop.f32.mrf.mxu0
        %1247 = vmatprep.mubr.bf16.mxu0 0
        %1248 = vmatmul.mubr.bf16.gmra.mxu0 %v1001
        %v1249 = vpop.f32.mrf.mxu0
        %v1250 = vadd.f32 %v753, %v1249
        %v1251 = vpop.f32.mrf.mxu0
        %v1252 = vpop.f32.mrf.mxu0
        %v1253 = vadd.f32 %v753, %v1252
        %v1254 = vpop.f32.mrf.mxu0
        %1255 = vmatprep.mubr.bf16.mxu0 0
        %1256 = vmatmul.mubr.bf16.gmra.mxu0 %v1004
        %v1257 = vpop.f32.mrf.mxu0
        %v1258 = vadd.f32 %v753, %v1257
        %v1259 = vpop.f32.mrf.mxu0
        %v1260 = vpop.f32.mrf.mxu0
        %v1261 = vadd.f32 %v753, %v1260
        %v1262 = vpop.f32.mrf.mxu0
        %1263 = vmatprep.mubr.bf16.mxu0 0
        %1264 = vmatmul.mubr.bf16.gmra.mxu0 %v1007
        %v1265 = vpop.f32.mrf.mxu0
        %v1266 = vadd.f32 %v753, %v1265
        %v1267 = vpop.f32.mrf.mxu0
        %v1268 = vpop.f32.mrf.mxu0
        %v1269 = vadd.f32 %v753, %v1268
        %v1270 = vpop.f32.mrf.mxu0
        %1271 = vmatprep.mubr.bf16.mxu0 0
        %1272 = vmatmul.mubr.bf16.gmra.mxu0 %v1010
        %v1273 = vpop.f32.mrf.mxu0
        %v1274 = vadd.f32 %v753, %v1273
        %v1275 = vpop.f32.mrf.mxu0
        %v1276 = vpop.f32.mrf.mxu0
        %v1277 = vadd.f32 %v753, %v1276
        %v1278 = vpop.f32.mrf.mxu0
        %1279 = vmatprep.mubr.bf16.mxu0 0
        %1280 = vmatmul.mubr.bf16.gmra.mxu0 %v1013
        %v1281 = vpop.f32.mrf.mxu0
        %v1282 = vadd.f32 %v753, %v1281
        %v1283 = vpop.f32.mrf.mxu0
        %v1284 = vpop.f32.mrf.mxu0
        %v1285 = vadd.f32 %v753, %v1284
        %v1286 = vpop.f32.mrf.mxu0
        %1287 = vmatprep.mubr.bf16.mxu0 0
        %1288 = vmatmul.mubr.bf16.gmra.mxu0 %v1016
        %v1289 = vpop.f32.mrf.mxu0
        %v1290 = vadd.f32 %v753, %v1289
        %v1291 = vpop.f32.mrf.mxu0
        %v1292 = vpop.f32.mrf.mxu0
        %v1293 = vadd.f32 %v753, %v1292
        %v1294 = vpop.f32.mrf.mxu0
        %1295 = vmatprep.mubr.bf16.mxu0 0
        %1296 = vmatmul.mubr.bf16.gmra.mxu0 %v1019
        %v1297 = vpop.f32.mrf.mxu0
        %v1298 = vadd.f32 %v753, %v1297
        %v1299 = vpop.f32.mrf.mxu0
        %v1300 = vpop.f32.mrf.mxu0
        %v1301 = vadd.f32 %v753, %v1300
        %v1302 = vpop.f32.mrf.mxu0
        %1303 = vmatprep.mubr.bf16.mxu0 0
        %1304 = vmatmul.mubr.bf16.gmra.mxu0 %v1022
        %v1305 = vpop.f32.mrf.mxu0
        %v1306 = vadd.f32 %v753, %v1305
        %v1307 = vpop.f32.mrf.mxu0
        %v1308 = vpop.f32.mrf.mxu0
        %v1309 = vadd.f32 %v753, %v1308
        %v1310 = vpop.f32.mrf.mxu0
        %1311 = vmatprep.mubr.bf16.mxu0 0
        %1312 = vmatmul.mubr.bf16.gmra.mxu0 %v1025
        %v1313 = vpop.f32.mrf.mxu0
        %v1314 = vadd.f32 %v753, %v1313
        %v1315 = vpop.f32.mrf.mxu0
        %v1316 = vpop.f32.mrf.mxu0
        %v1317 = vadd.f32 %v753, %v1316
        %v1318 = vpop.f32.mrf.mxu0
        %1319 = vdwg.mxu0
        %vm1320 = vcmp.gt.f32.partialorder %v1066, 0.0
        %vm1321 = vcmp.gt.f32.partialorder %v1069, 0.0
        %vm1322 = vcmp.gt.f32.partialorder %v1074, 0.0
        %vm1323 = vcmp.gt.f32.partialorder %v1077, 0.0
        %vm1324 = vcmp.gt.f32.partialorder %v1082, 0.0
        %vm1325 = vcmp.gt.f32.partialorder %v1085, 0.0
        %vm1326 = vcmp.gt.f32.partialorder %v1090, 0.0
        %vm1327 = vcmp.gt.f32.partialorder %v1093, 0.0
        %vm1328 = vcmp.gt.f32.partialorder %v1098, 0.0
        %vm1329 = vcmp.gt.f32.partialorder %v1101, 0.0
        %vm1330 = vcmp.gt.f32.partialorder %v1106, 0.0
        %vm1331 = vcmp.gt.f32.partialorder %v1109, 0.0
        %vm1332 = vcmp.gt.f32.partialorder %v1114, 0.0
        %vm1333 = vcmp.gt.f32.partialorder %v1117, 0.0
        %vm1334 = vcmp.gt.f32.partialorder %v1122, 0.0
        %vm1335 = vcmp.gt.f32.partialorder %v1125, 0.0
        %vm1336 = vcmp.gt.f32.partialorder %v1130, 0.0
        %vm1337 = vcmp.gt.f32.partialorder %v1133, 0.0
        %vm1338 = vcmp.gt.f32.partialorder %v1138, 0.0
        %vm1339 = vcmp.gt.f32.partialorder %v1141, 0.0
        %vm1340 = vcmp.gt.f32.partialorder %v1146, 0.0
        %vm1341 = vcmp.gt.f32.partialorder %v1149, 0.0
        %vm1342 = vcmp.gt.f32.partialorder %v1154, 0.0
        %vm1343 = vcmp.gt.f32.partialorder %v1157, 0.0
        %vm1344 = vcmp.gt.f32.partialorder %v1162, 0.0
        %vm1345 = vcmp.gt.f32.partialorder %v1165, 0.0
        %vm1346 = vcmp.gt.f32.partialorder %v1170, 0.0
        %vm1347 = vcmp.gt.f32.partialorder %v1173, 0.0
        %vm1348 = vcmp.gt.f32.partialorder %v1178, 0.0
        %vm1349 = vcmp.gt.f32.partialorder %v1181, 0.0
        %vm1350 = vcmp.gt.f32.partialorder %v1186, 0.0
        %vm1351 = vcmp.gt.f32.partialorder %v1189, 0.0
        %vm1352 = vcmp.gt.f32.partialorder %v1194, 0.0
        %vm1353 = vcmp.gt.f32.partialorder %v1197, 0.0
        %vm1354 = vcmp.gt.f32.partialorder %v1202, 0.0
        %vm1355 = vcmp.gt.f32.partialorder %v1205, 0.0
        %vm1356 = vcmp.gt.f32.partialorder %v1210, 0.0
        %vm1357 = vcmp.gt.f32.partialorder %v1213, 0.0
        %vm1358 = vcmp.gt.f32.partialorder %v1218, 0.0
        %vm1359 = vcmp.gt.f32.partialorder %v1221, 0.0
        %vm1360 = vcmp.gt.f32.partialorder %v1226, 0.0
        %vm1361 = vcmp.gt.f32.partialorder %v1229, 0.0
        %vm1362 = vcmp.gt.f32.partialorder %v1234, 0.0
        %vm1363 = vcmp.gt.f32.partialorder %v1237, 0.0
        %vm1364 = vcmp.gt.f32.partialorder %v1242, 0.0
        %vm1365 = vcmp.gt.f32.partialorder %v1245, 0.0
        %vm1366 = vcmp.gt.f32.partialorder %v1250, 0.0
        %vm1367 = vcmp.gt.f32.partialorder %v1253, 0.0
        %vm1368 = vcmp.gt.f32.partialorder %v1258, 0.0
        %vm1369 = vcmp.gt.f32.partialorder %v1261, 0.0
        %vm1370 = vcmp.gt.f32.partialorder %v1266, 0.0
        %vm1371 = vcmp.gt.f32.partialorder %v1269, 0.0
        %vm1372 = vcmp.gt.f32.partialorder %v1274, 0.0
        %vm1373 = vcmp.gt.f32.partialorder %v1277, 0.0
        %vm1374 = vcmp.gt.f32.partialorder %v1282, 0.0
        %vm1375 = vcmp.gt.f32.partialorder %v1285, 0.0
        %vm1376 = vcmp.gt.f32.partialorder %v1290, 0.0
        %vm1377 = vcmp.gt.f32.partialorder %v1293, 0.0
        %vm1378 = vcmp.gt.f32.partialorder %v1298, 0.0
        %vm1379 = vcmp.gt.f32.partialorder %v1301, 0.0
        %vm1380 = vcmp.gt.f32.partialorder %v1306, 0.0
        %vm1381 = vcmp.gt.f32.partialorder %v1309, 0.0
        %vm1382 = vcmp.gt.f32.partialorder %v1314, 0.0
        %vm1383 = vcmp.gt.f32.partialorder %v1317, 0.0
        %v1384 = vmin.f32 %v1066, 0.0
        %v1385 = vmin.f32 %v1069, 0.0
        %v1386 = vmin.f32 %v1074, 0.0
        %v1387 = vmin.f32 %v1077, 0.0
        %v1388 = vmin.f32 %v1082, 0.0
        %v1389 = vmin.f32 %v1085, 0.0
        %v1390 = vmin.f32 %v1090, 0.0
        %v1391 = vmin.f32 %v1093, 0.0
        %v1392 = vmin.f32 %v1098, 0.0
        %v1393 = vmin.f32 %v1101, 0.0
        %v1394 = vmin.f32 %v1106, 0.0
        %v1395 = vmin.f32 %v1109, 0.0
        %v1396 = vmin.f32 %v1114, 0.0
        %v1397 = vmin.f32 %v1117, 0.0
        %v1398 = vmin.f32 %v1122, 0.0
        %v1399 = vmin.f32 %v1125, 0.0
        %v1400 = vmin.f32 %v1130, 0.0
        %v1401 = vmin.f32 %v1133, 0.0
        %v1402 = vmin.f32 %v1138, 0.0
        %v1403 = vmin.f32 %v1141, 0.0
        %v1404 = vmin.f32 %v1146, 0.0
        %v1405 = vmin.f32 %v1149, 0.0
        %v1406 = vmin.f32 %v1154, 0.0
        %v1407 = vmin.f32 %v1157, 0.0
        %v1408 = vmin.f32 %v1162, 0.0
        %v1409 = vmin.f32 %v1165, 0.0
        %v1410 = vmin.f32 %v1170, 0.0
        %v1411 = vmin.f32 %v1173, 0.0
        %v1412 = vmin.f32 %v1178, 0.0
        %v1413 = vmin.f32 %v1181, 0.0
        %v1414 = vmin.f32 %v1186, 0.0
        %v1415 = vmin.f32 %v1189, 0.0
        %v1416 = vmin.f32 %v1194, 0.0
        %v1417 = vmin.f32 %v1197, 0.0
        %v1418 = vmin.f32 %v1202, 0.0
        %v1419 = vmin.f32 %v1205, 0.0
        %v1420 = vmin.f32 %v1210, 0.0
        %v1421 = vmin.f32 %v1213, 0.0
        %v1422 = vmin.f32 %v1218, 0.0
        %v1423 = vmin.f32 %v1221, 0.0
        %v1424 = vmin.f32 %v1226, 0.0
        %v1425 = vmin.f32 %v1229, 0.0
        %v1426 = vmin.f32 %v1234, 0.0
        %v1427 = vmin.f32 %v1237, 0.0
        %v1428 = vmin.f32 %v1242, 0.0
        %v1429 = vmin.f32 %v1245, 0.0
        %v1430 = vmin.f32 %v1250, 0.0
        %v1431 = vmin.f32 %v1253, 0.0
        %v1432 = vmin.f32 %v1258, 0.0
        %v1433 = vmin.f32 %v1261, 0.0
        %v1434 = vmin.f32 %v1266, 0.0
        %v1435 = vmin.f32 %v1269, 0.0
        %v1436 = vmin.f32 %v1274, 0.0
        %v1437 = vmin.f32 %v1277, 0.0
        %v1438 = vmin.f32 %v1282, 0.0
        %v1439 = vmin.f32 %v1285, 0.0
        %v1440 = vmin.f32 %v1290, 0.0
        %v1441 = vmin.f32 %v1293, 0.0
        %v1442 = vmin.f32 %v1298, 0.0
        %v1443 = vmin.f32 %v1301, 0.0
        %v1444 = vmin.f32 %v1306, 0.0
        %v1445 = vmin.f32 %v1309, 0.0
        %v1446 = vmin.f32 %v1314, 0.0
        %v1447 = vmin.f32 %v1317, 0.0
        %v1448 = vmul.f32 %v1384, 1.442695
        %v1449 = vpow.pop %v1448
        %v1450 = vmul.f32 %v1385, 1.442695
        %v1451 = vpow.pop %v1450
        %v1452 = vmul.f32 %v1386, 1.442695
        %v1453 = vpow.pop %v1452
        %v1454 = vmul.f32 %v1387, 1.442695
        %v1455 = vpow.pop %v1454
        %v1456 = vmul.f32 %v1388, 1.442695
        %v1457 = vpow.pop %v1456
        %v1458 = vmul.f32 %v1389, 1.442695
        %v1459 = vpow.pop %v1458
        %v1460 = vmul.f32 %v1390, 1.442695
        %v1461 = vpow.pop %v1460
        %v1462 = vmul.f32 %v1391, 1.442695
        %v1463 = vpow.pop %v1462
        %v1464 = vmul.f32 %v1392, 1.442695
        %v1465 = vpow.pop %v1464
        %v1466 = vmul.f32 %v1393, 1.442695
        %v1467 = vpow.pop %v1466
        %v1468 = vmul.f32 %v1394, 1.442695
        %v1469 = vpow.pop %v1468
        %v1470 = vmul.f32 %v1395, 1.442695
        %v1471 = vpow.pop %v1470
        %v1472 = vmul.f32 %v1396, 1.442695
        %v1473 = vpow.pop %v1472
        %v1474 = vmul.f32 %v1397, 1.442695
        %v1475 = vpow.pop %v1474
        %v1476 = vmul.f32 %v1398, 1.442695
        %v1477 = vpow.pop %v1476
        %v1478 = vmul.f32 %v1399, 1.442695
        %v1479 = vpow.pop %v1478
        %v1480 = vmul.f32 %v1400, 1.442695
        %v1481 = vpow.pop %v1480
        %v1482 = vmul.f32 %v1401, 1.442695
        %v1483 = vpow.pop %v1482
        %v1484 = vmul.f32 %v1402, 1.442695
        %v1485 = vpow.pop %v1484
        %v1486 = vmul.f32 %v1403, 1.442695
        %v1487 = vpow.pop %v1486
        %v1488 = vmul.f32 %v1404, 1.442695
        %v1489 = vpow.pop %v1488
        %v1490 = vmul.f32 %v1405, 1.442695
        %v1491 = vpow.pop %v1490
        %v1492 = vmul.f32 %v1406, 1.442695
        %v1493 = vpow.pop %v1492
        %v1494 = vmul.f32 %v1407, 1.442695
        %v1495 = vpow.pop %v1494
        %v1496 = vmul.f32 %v1408, 1.442695
        %v1497 = vpow.pop %v1496
        %v1498 = vmul.f32 %v1409, 1.442695
        %v1499 = vpow.pop %v1498
        %v1500 = vmul.f32 %v1410, 1.442695
        %v1501 = vpow.pop %v1500
        %v1502 = vmul.f32 %v1411, 1.442695
        %v1503 = vpow.pop %v1502
        %v1504 = vmul.f32 %v1412, 1.442695
        %v1505 = vpow.pop %v1504
        %v1506 = vmul.f32 %v1413, 1.442695
        %v1507 = vpow.pop %v1506
        %v1508 = vmul.f32 %v1414, 1.442695
        %v1509 = vpow.pop %v1508
        %v1510 = vmul.f32 %v1415, 1.442695
        %v1511 = vpow.pop %v1510
        %v1512 = vmul.f32 %v1416, 1.442695
        %v1513 = vpow.pop %v1512
        %v1514 = vmul.f32 %v1417, 1.442695
        %v1515 = vpow.pop %v1514
        %v1516 = vmul.f32 %v1418, 1.442695
        %v1517 = vpow.pop %v1516
        %v1518 = vmul.f32 %v1419, 1.442695
        %v1519 = vpow.pop %v1518
        %v1520 = vmul.f32 %v1420, 1.442695
        %v1521 = vpow.pop %v1520
        %v1522 = vmul.f32 %v1421, 1.442695
        %v1523 = vpow.pop %v1522
        %v1524 = vmul.f32 %v1422, 1.442695
        %v1525 = vpow.pop %v1524
        %v1526 = vmul.f32 %v1423, 1.442695
        %v1527 = vpow.pop %v1526
        %v1528 = vmul.f32 %v1424, 1.442695
        %v1529 = vpow.pop %v1528
        %v1530 = vmul.f32 %v1425, 1.442695
        %v1531 = vpow.pop %v1530
        %v1532 = vmul.f32 %v1426, 1.442695
        %v1533 = vpow.pop %v1532
        %v1534 = vmul.f32 %v1427, 1.442695
        %v1535 = vpow.pop %v1534
        %v1536 = vmul.f32 %v1428, 1.442695
        %v1537 = vpow.pop %v1536
        %v1538 = vmul.f32 %v1429, 1.442695
        %v1539 = vpow.pop %v1538
        %v1540 = vmul.f32 %v1430, 1.442695
        %v1541 = vpow.pop %v1540
        %v1542 = vmul.f32 %v1431, 1.442695
        %v1543 = vpow.pop %v1542
        %v1544 = vmul.f32 %v1432, 1.442695
        %v1545 = vpow.pop %v1544
        %v1546 = vmul.f32 %v1433, 1.442695
        %v1547 = vpow.pop %v1546
        %v1548 = vmul.f32 %v1434, 1.442695
        %v1549 = vpow.pop %v1548
        %v1550 = vmul.f32 %v1435, 1.442695
        %v1551 = vpow.pop %v1550
        %v1552 = vmul.f32 %v1436, 1.442695
        %v1553 = vpow.pop %v1552
        %v1554 = vmul.f32 %v1437, 1.442695
        %v1555 = vpow.pop %v1554
        %v1556 = vmul.f32 %v1438, 1.442695
        %v1557 = vpow.pop %v1556
        %v1558 = vmul.f32 %v1439, 1.442695
        %v1559 = vpow.pop %v1558
        %v1560 = vmul.f32 %v1440, 1.442695
        %v1561 = vpow.pop %v1560
        %v1562 = vmul.f32 %v1441, 1.442695
        %v1563 = vpow.pop %v1562
        %v1564 = vmul.f32 %v1442, 1.442695
        %v1565 = vpow.pop %v1564
        %v1566 = vmul.f32 %v1443, 1.442695
        %v1567 = vpow.pop %v1566
        %v1568 = vmul.f32 %v1444, 1.442695
        %v1569 = vpow.pop %v1568
        %v1570 = vmul.f32 %v1445, 1.442695
        %v1571 = vpow.pop %v1570
        %v1572 = vmul.f32 %v1446, 1.442695
        %v1573 = vpow.pop %v1572
        %v1574 = vmul.f32 %v1447, 1.442695
        %v1575 = vpow.pop %v1574
        %v1576 = vsub.f32 %v1449, 1.0
        %v1577 = vsub.f32 %v1451, 1.0
        %v1578 = vsub.f32 %v1453, 1.0
        %v1579 = vsub.f32 %v1455, 1.0
        %v1580 = vsub.f32 %v1457, 1.0
        %v1581 = vsub.f32 %v1459, 1.0
        %v1582 = vsub.f32 %v1461, 1.0
        %v1583 = vsub.f32 %v1463, 1.0
        %v1584 = vsub.f32 %v1465, 1.0
        %v1585 = vsub.f32 %v1467, 1.0
        %v1586 = vsub.f32 %v1469, 1.0
        %v1587 = vsub.f32 %v1471, 1.0
        %v1588 = vsub.f32 %v1473, 1.0
        %v1589 = vsub.f32 %v1475, 1.0
        %v1590 = vsub.f32 %v1477, 1.0
        %v1591 = vsub.f32 %v1479, 1.0
        %v1592 = vsub.f32 %v1481, 1.0
        %v1593 = vsub.f32 %v1483, 1.0
        %v1594 = vsub.f32 %v1485, 1.0
        %v1595 = vsub.f32 %v1487, 1.0
        %v1596 = vsub.f32 %v1489, 1.0
        %v1597 = vsub.f32 %v1491, 1.0
        %v1598 = vsub.f32 %v1493, 1.0
        %v1599 = vsub.f32 %v1495, 1.0
        %v1600 = vsub.f32 %v1497, 1.0
        %v1601 = vsub.f32 %v1499, 1.0
        %v1602 = vsub.f32 %v1501, 1.0
        %v1603 = vsub.f32 %v1503, 1.0
        %v1604 = vsub.f32 %v1505, 1.0
        %v1605 = vsub.f32 %v1507, 1.0
        %v1606 = vsub.f32 %v1509, 1.0
        %v1607 = vsub.f32 %v1511, 1.0
        %v1608 = vsub.f32 %v1513, 1.0
        %v1609 = vsub.f32 %v1515, 1.0
        %v1610 = vsub.f32 %v1517, 1.0
        %v1611 = vsub.f32 %v1519, 1.0
        %v1612 = vsub.f32 %v1521, 1.0
        %v1613 = vsub.f32 %v1523, 1.0
        %v1614 = vsub.f32 %v1525, 1.0
        %v1615 = vsub.f32 %v1527, 1.0
        %v1616 = vsub.f32 %v1529, 1.0
        %v1617 = vsub.f32 %v1531, 1.0
        %v1618 = vsub.f32 %v1533, 1.0
        %v1619 = vsub.f32 %v1535, 1.0
        %v1620 = vsub.f32 %v1537, 1.0
        %v1621 = vsub.f32 %v1539, 1.0
        %v1622 = vsub.f32 %v1541, 1.0
        %v1623 = vsub.f32 %v1543, 1.0
        %v1624 = vsub.f32 %v1545, 1.0
        %v1625 = vsub.f32 %v1547, 1.0
        %v1626 = vsub.f32 %v1549, 1.0
        %v1627 = vsub.f32 %v1551, 1.0
        %v1628 = vsub.f32 %v1553, 1.0
        %v1629 = vsub.f32 %v1555, 1.0
        %v1630 = vsub.f32 %v1557, 1.0
        %v1631 = vsub.f32 %v1559, 1.0
        %v1632 = vsub.f32 %v1561, 1.0
        %v1633 = vsub.f32 %v1563, 1.0
        %v1634 = vsub.f32 %v1565, 1.0
        %v1635 = vsub.f32 %v1567, 1.0
        %v1636 = vsub.f32 %v1569, 1.0
        %v1637 = vsub.f32 %v1571, 1.0
        %v1638 = vsub.f32 %v1573, 1.0
        %v1639 = vsub.f32 %v1575, 1.0
        %v1640 = vsel %vm1320, %v1066, %v1576
        %v1641 = vsel %vm1321, %v1069, %v1577
        %v1642 = vsel %vm1322, %v1074, %v1578
        %v1643 = vsel %vm1323, %v1077, %v1579
        %v1644 = vsel %vm1324, %v1082, %v1580
        %v1645 = vsel %vm1325, %v1085, %v1581
        %v1646 = vsel %vm1326, %v1090, %v1582
        %v1647 = vsel %vm1327, %v1093, %v1583
        %v1648 = vsel %vm1328, %v1098, %v1584
        %v1649 = vsel %vm1329, %v1101, %v1585
        %v1650 = vsel %vm1330, %v1106, %v1586
        %v1651 = vsel %vm1331, %v1109, %v1587
        %v1652 = vsel %vm1332, %v1114, %v1588
        %v1653 = vsel %vm1333, %v1117, %v1589
        %v1654 = vsel %vm1334, %v1122, %v1590
        %v1655 = vsel %vm1335, %v1125, %v1591
        %v1656 = vsel %vm1336, %v1130, %v1592
        %v1657 = vsel %vm1337, %v1133, %v1593
        %v1658 = vsel %vm1338, %v1138, %v1594
        %v1659 = vsel %vm1339, %v1141, %v1595
        %v1660 = vsel %vm1340, %v1146, %v1596
        %v1661 = vsel %vm1341, %v1149, %v1597
        %v1662 = vsel %vm1342, %v1154, %v1598
        %v1663 = vsel %vm1343, %v1157, %v1599
        %v1664 = vsel %vm1344, %v1162, %v1600
        %v1665 = vsel %vm1345, %v1165, %v1601
        %v1666 = vsel %vm1346, %v1170, %v1602
        %v1667 = vsel %vm1347, %v1173, %v1603
        %v1668 = vsel %vm1348, %v1178, %v1604
        %v1669 = vsel %vm1349, %v1181, %v1605
        %v1670 = vsel %vm1350, %v1186, %v1606
        %v1671 = vsel %vm1351, %v1189, %v1607
        %v1672 = vsel %vm1352, %v1194, %v1608
        %v1673 = vsel %vm1353, %v1197, %v1609
        %v1674 = vsel %vm1354, %v1202, %v1610
        %v1675 = vsel %vm1355, %v1205, %v1611
        %v1676 = vsel %vm1356, %v1210, %v1612
        %v1677 = vsel %vm1357, %v1213, %v1613
        %v1678 = vsel %vm1358, %v1218, %v1614
        %v1679 = vsel %vm1359, %v1221, %v1615
        %v1680 = vsel %vm1360, %v1226, %v1616
        %v1681 = vsel %vm1361, %v1229, %v1617
        %v1682 = vsel %vm1362, %v1234, %v1618
        %v1683 = vsel %vm1363, %v1237, %v1619
        %v1684 = vsel %vm1364, %v1242, %v1620
        %v1685 = vsel %vm1365, %v1245, %v1621
        %v1686 = vsel %vm1366, %v1250, %v1622
        %v1687 = vsel %vm1367, %v1253, %v1623
        %v1688 = vsel %vm1368, %v1258, %v1624
        %v1689 = vsel %vm1369, %v1261, %v1625
        %v1690 = vsel %vm1370, %v1266, %v1626
        %v1691 = vsel %vm1371, %v1269, %v1627
        %v1692 = vsel %vm1372, %v1274, %v1628
        %v1693 = vsel %vm1373, %v1277, %v1629
        %v1694 = vsel %vm1374, %v1282, %v1630
        %v1695 = vsel %vm1375, %v1285, %v1631
        %v1696 = vsel %vm1376, %v1290, %v1632
        %v1697 = vsel %vm1377, %v1293, %v1633
        %v1698 = vsel %vm1378, %v1298, %v1634
        %v1699 = vsel %vm1379, %v1301, %v1635
        %v1700 = vsel %vm1380, %v1306, %v1636
        %v1701 = vsel %vm1381, %v1309, %v1637
        %v1702 = vsel %vm1382, %v1314, %v1638
        %v1703 = vsel %vm1383, %v1317, %v1639
        %s1704 = scalar_lea.vmem [#allocation2], 16
        %1705 = vst [vmem:[%s1704 + $0x1] sm:$0xff] %v1640
        %1706 = vst [vmem:[%s1704 + $0x11] sm:$0xff] %v1641
        %1707 = vst [vmem:[%s1704 + $0x21] sm:$0xff] %v1642
        %1708 = vst [vmem:[%s1704 + $0x31] sm:$0xff] %v1643
        %1709 = vst [vmem:[%s1704 + $0x41] sm:$0xff] %v1644
        %1710 = vst [vmem:[%s1704 + $0x51] sm:$0xff] %v1645
        %1711 = vst [vmem:[%s1704 + $0x61] sm:$0xff] %v1646
        %1712 = vst [vmem:[%s1704 + $0x71] sm:$0xff] %v1647
        %1713 = vst [vmem:[%s1704 + $0x91] sm:$0xff] %v1648
        %1714 = vst [vmem:[%s1704 + $0xa1] sm:$0xff] %v1649
        %1715 = vst [vmem:[%s1704 + $0xb1] sm:$0xff] %v1650
        %1716 = vst [vmem:[%s1704 + $0xc1] sm:$0xff] %v1651
        %1717 = vst [vmem:[%s1704 + $0xd1] sm:$0xff] %v1652
        %1718 = vst [vmem:[%s1704 + $0xe1] sm:$0xff] %v1653
        %1719 = vst [vmem:[%s1704 + $0xf1] sm:$0xff] %v1654
        %1720 = vst [vmem:[%s1704 + $0x101] sm:$0xff] %v1655
        %s1721 = scalar_lea.vmem [#allocation2], 304
        %1722 = vst [vmem:[%s1721] sm:$0xff] %v1656
        %1723 = vst [vmem:[%s1721 + $0x10] sm:$0xff] %v1657
        %1724 = vst [vmem:[%s1721 + $0x20] sm:$0xff] %v1658
        %1725 = vst [vmem:[%s1721 + $0x30] sm:$0xff] %v1659
        %1726 = vst [vmem:[%s1721 + $0x40] sm:$0xff] %v1660
        %1727 = vst [vmem:[%s1721 + $0x50] sm:$0xff] %v1661
        %1728 = vst [vmem:[%s1721 + $0x60] sm:$0xff] %v1662
        %1729 = vst [vmem:[%s1721 + $0x70] sm:$0xff] %v1663
        %1730 = vst [vmem:[%s1721 + $0x90] sm:$0xff] %v1664
        %1731 = vst [vmem:[%s1721 + $0xa0] sm:$0xff] %v1665
        %1732 = vst [vmem:[%s1721 + $0xb0] sm:$0xff] %v1666
        %1733 = vst [vmem:[%s1721 + $0xc0] sm:$0xff] %v1667
        %1734 = vst [vmem:[%s1721 + $0xd0] sm:$0xff] %v1668
        %1735 = vst [vmem:[%s1721 + $0xe0] sm:$0xff] %v1669
        %1736 = vst [vmem:[%s1721 + $0xf0] sm:$0xff] %v1670
        %1737 = vst [vmem:[%s1721 + $0x100] sm:$0xff] %v1671
        %1738 = vst [vmem:[%s660 + $0x1] sm:$0xff] %v1672
        %1739 = vst [vmem:[%s660 + $0x11] sm:$0xff] %v1673
        %1740 = vst [vmem:[%s660 + $0x21] sm:$0xff] %v1674
        %1741 = vst [vmem:[%s660 + $0x31] sm:$0xff] %v1675
        %1742 = vst [vmem:[%s660 + $0x41] sm:$0xff] %v1676
        %1743 = vst [vmem:[%s660 + $0x51] sm:$0xff] %v1677
        %1744 = vst [vmem:[%s660 + $0x61] sm:$0xff] %v1678
        %1745 = vst [vmem:[%s660 + $0x71] sm:$0xff] %v1679
        %1746 = vst [vmem:[%s660 + $0x91] sm:$0xff] %v1680
        %1747 = vst [vmem:[%s660 + $0xa1] sm:$0xff] %v1681
        %1748 = vst [vmem:[%s660 + $0xb1] sm:$0xff] %v1682
        %1749 = vst [vmem:[%s660 + $0xc1] sm:$0xff] %v1683
        %1750 = vst [vmem:[%s660 + $0xd1] sm:$0xff] %v1684
        %1751 = vst [vmem:[%s660 + $0xe1] sm:$0xff] %v1685
        %1752 = vst [vmem:[%s660 + $0xf1] sm:$0xff] %v1686
        %1753 = vst [vmem:[%s660 + $0x101] sm:$0xff] %v1687
        %s1754 = scalar_lea.vmem [#allocation2], 864
        %1755 = vst [vmem:[%s1754] sm:$0xff] %v1688
        %1756 = vst [vmem:[%s1754 + $0x10] sm:$0xff] %v1689
        %1757 = vst [vmem:[%s1754 + $0x20] sm:$0xff] %v1690
        %1758 = vst [vmem:[%s1754 + $0x30] sm:$0xff] %v1691
        %1759 = vst [vmem:[%s1754 + $0x40] sm:$0xff] %v1692
        %1760 = vst [vmem:[%s1754 + $0x50] sm:$0xff] %v1693
        %1761 = vst [vmem:[%s1754 + $0x60] sm:$0xff] %v1694
        %1762 = vst [vmem:[%s1754 + $0x70] sm:$0xff] %v1695
        %1763 = vst [vmem:[%s1754 + $0x90] sm:$0xff] %v1696
        %1764 = vst [vmem:[%s1754 + $0xa0] sm:$0xff] %v1697
        %1765 = vst [vmem:[%s1754 + $0xb0] sm:$0xff] %v1698
        %1766 = vst [vmem:[%s1754 + $0xc0] sm:$0xff] %v1699
        %1767 = vst [vmem:[%s1754 + $0xd0] sm:$0xff] %v1700
        %1768 = vst [vmem:[%s1754 + $0xe0] sm:$0xff] %v1701
        %1769 = vst [vmem:[%s1754 + $0xf0] sm:$0xff] %v1702
        %1770 = vst [vmem:[%s1754 + $0x100] sm:$0xff] %v1703
        %v1771 = vld [vmem:[#allocation2] sm:$0xff]
        %v1772 = vld [vmem:[#allocation2 + $0x10] sm:$0xff]
        %v1773 = vld [vmem:[#allocation2 + $0x20] sm:$0xff]
        %v1774 = vld [vmem:[#allocation2 + $0x30] sm:$0xff]
        %v1775 = vld [vmem:[#allocation2 + $0x40] sm:$0xff]
        %v1776 = vld [vmem:[#allocation2 + $0x50] sm:$0xff]
        %v1777 = vld [vmem:[#allocation2 + $0x60] sm:$0xff]
        %v1778 = vld [vmem:[#allocation2 + $0x70] sm:$0xff]
        %v1779 = vld [vmem:[#allocation2 + $0x90] sm:$0xff]
        %v1780 = vld [vmem:[#allocation2 + $0xa0] sm:$0xff]
        %v1781 = vld [vmem:[#allocation2 + $0xb0] sm:$0xff]
        %v1782 = vld [vmem:[#allocation2 + $0xc0] sm:$0xff]
        %v1783 = vld [vmem:[#allocation2 + $0xd0] sm:$0xff]
        %v1784 = vld [vmem:[#allocation2 + $0xe0] sm:$0xff]
        %v1785 = vld [vmem:[#allocation2 + $0xf0] sm:$0xff]
        %v1786 = vld [vmem:[#allocation2 + $0x100] sm:$0xff]
        %v1787 = vpack.c.bf16 %v1772, %v1771
        %v1788 = vpack.c.bf16 %v1774, %v1773
        %v1789 = vpack.c.bf16 %v1776, %v1775
        %v1790 = vpack.c.bf16 %v1778, %v1777
        %v1791 = vpack.c.bf16 %v1780, %v1779
        %v1792 = vpack.c.bf16 %v1782, %v1781
        %v1793 = vpack.c.bf16 %v1784, %v1783
        %v1794 = vpack.c.bf16 %v1786, %v1785
        %v1795 = vld [vmem:[%s3] sm:$0xf]
        %v1796 = vld [vmem:[%s3 + $0x4] sm:$0xf]
        %v1797 = vld [vmem:[%s3 + $0x8] sm:$0xf]
        %v1798 = vld [vmem:[%s3 + $0xc] sm:$0xf]
        %v1799 = vld [vmem:[%s3 + $0x10] sm:$0xf]
        %v1800 = vld [vmem:[%s3 + $0x14] sm:$0xf]
        %v1801 = vld [vmem:[%s3 + $0x18] sm:$0xf]
        %v1802 = vld [vmem:[%s3 + $0x1c] sm:$0xf]
        %v1803 = vld [vmem:[%s3 + $0x20] sm:$0xf]
        %v1804 = vld [vmem:[%s3 + $0x24] sm:$0xf]
        %v1805 = vld [vmem:[%s3 + $0x28] sm:$0xf]
        %v1806 = vld [vmem:[%s3 + $0x2c] sm:$0xf]
        %v1807 = vld [vmem:[%s3 + $0x30] sm:$0xf]
        %v1808 = vld [vmem:[%s3 + $0x34] sm:$0xf]
        %v1809 = vld [vmem:[%s3 + $0x38] sm:$0xf]
        %v1810 = vld [vmem:[%s3 + $0x3c] sm:$0xf]
        %v1811 = vld [vmem:[%s637] sm:$0xff]
        %v1812 = vld [vmem:[%s637 + $0x10] sm:$0xff]
        %v1813 = vld [vmem:[%s637 + $0x20] sm:$0xff]
        %v1814 = vld [vmem:[%s637 + $0x30] sm:$0xff]
        %v1815 = vld [vmem:[%s637 + $0x40] sm:$0xff]
        %v1816 = vld [vmem:[%s637 + $0x50] sm:$0xff]
        %v1817 = vld [vmem:[%s637 + $0x60] sm:$0xff]
        %v1818 = vld [vmem:[%s637 + $0x70] sm:$0xff]
        %v1819 = vld [vmem:[%s637 + $0x90] sm:$0xff]
        %v1820 = vld [vmem:[%s637 + $0xa0] sm:$0xff]
        %v1821 = vld [vmem:[%s637 + $0xb0] sm:$0xff]
        %v1822 = vld [vmem:[%s637 + $0xc0] sm:$0xff]
        %v1823 = vld [vmem:[%s637 + $0xd0] sm:$0xff]
        %v1824 = vld [vmem:[%s637 + $0xe0] sm:$0xff]
        %v1825 = vld [vmem:[%s637 + $0xf0] sm:$0xff]
        %v1826 = vld [vmem:[%s637 + $0x100] sm:$0xff]
        %v1827 = vpack.c.bf16 %v1812, %v1811
        %v1828 = vpack.c.bf16 %v1814, %v1813
        %v1829 = vpack.c.bf16 %v1816, %v1815
        %v1830 = vpack.c.bf16 %v1818, %v1817
        %v1831 = vpack.c.bf16 %v1820, %v1819
        %v1832 = vpack.c.bf16 %v1822, %v1821
        %v1833 = vpack.c.bf16 %v1824, %v1823
        %v1834 = vpack.c.bf16 %v1826, %v1825
        %s1835 = scalar_lea.vmem %s3, 64
        %v1836 = vld [vmem:[%s1835] sm:$0xf]
        %v1837 = vld [vmem:[%s1835 + $0x4] sm:$0xf]
        %v1838 = vld [vmem:[%s1835 + $0x8] sm:$0xf]
        %v1839 = vld [vmem:[%s1835 + $0xc] sm:$0xf]
        %v1840 = vld [vmem:[%s1835 + $0x10] sm:$0xf]
        %v1841 = vld [vmem:[%s1835 + $0x14] sm:$0xf]
        %v1842 = vld [vmem:[%s1835 + $0x18] sm:$0xf]
        %v1843 = vld [vmem:[%s1835 + $0x1c] sm:$0xf]
        %v1844 = vld [vmem:[%s1835 + $0x20] sm:$0xf]
        %v1845 = vld [vmem:[%s1835 + $0x24] sm:$0xf]
        %v1846 = vld [vmem:[%s1835 + $0x28] sm:$0xf]
        %v1847 = vld [vmem:[%s1835 + $0x2c] sm:$0xf]
        %v1848 = vld [vmem:[%s1835 + $0x30] sm:$0xf]
        %v1849 = vld [vmem:[%s1835 + $0x34] sm:$0xf]
        %v1850 = vld [vmem:[%s1835 + $0x38] sm:$0xf]
        %v1851 = vld [vmem:[%s1835 + $0x3c] sm:$0xf]
        %v1868 = vunpack.c.l.b16 %v1836
        %v1869 = vunpack.c.l.b16 %v1837
        %v1870 = vunpack.c.l.b16 %v1838
        %v1871 = vunpack.c.l.b16 %v1839
        %v1872 = vunpack.c.l.b16 %v1840
        %v1873 = vunpack.c.l.b16 %v1841
        %v1874 = vunpack.c.l.b16 %v1842
        %v1875 = vunpack.c.l.b16 %v1843
        %v1876 = vunpack.c.l.b16 %v1844
        %v1877 = vunpack.c.l.b16 %v1845
        %v1878 = vunpack.c.l.b16 %v1846
        %v1879 = vunpack.c.l.b16 %v1847
        %v1880 = vunpack.c.l.b16 %v1848
        %v1881 = vunpack.c.l.b16 %v1849
        %v1882 = vunpack.c.l.b16 %v1850
        %v1883 = vunpack.c.l.b16 %v1851
        %v1884 = vpack.c.b16 %v1869, %v1868
        %v1885 = vpack.c.b16 %v1871, %v1870
        %v1886 = vpack.c.b16 %v1873, %v1872
        %v1887 = vpack.c.b16 %v1875, %v1874
        %v1888 = vpack.c.b16 %v1877, %v1876
        %v1889 = vpack.c.b16 %v1879, %v1878
        %v1890 = vpack.c.b16 %v1881, %v1880
        %v1891 = vpack.c.b16 %v1883, %v1882
        %1900 = vmatprep.subr.bf16.mxu0 0
        %1901 = vmatpush1.bf16.msra.mxu0 %v1891
        %1902 = vmatprep.subr.bf16.mxu0 0
        %1903 = vmatpush1.bf16.msra.mxu0 %v1890
        %1904 = vmatprep.subr.bf16.mxu0 0
        %1905 = vmatpush1.bf16.msra.mxu0 %v1889
        %1906 = vmatprep.subr.bf16.mxu0 0
        %1907 = vmatpush1.bf16.msra.mxu0 %v1888
        %1908 = vmatprep.subr.bf16.mxu0 0
        %1909 = vmatpush1.bf16.msra.mxu0 %v1887
        %1910 = vmatprep.subr.bf16.mxu0 0
        %1911 = vmatpush1.bf16.msra.mxu0 %v1886
        %1912 = vmatprep.subr.bf16.mxu0 0
        %1913 = vmatpush1.bf16.msra.mxu0 %v1885
        %1914 = vmatprep.subr.bf16.mxu0 0
        %1915 = vmatpush1.bf16.msra.mxu0 %v1884
        %1916 = vmatprep.subr.bf16.mxu0 0
        %1917 = vmatpush2.bf16.msra.mxu0 0
        %1918 = vmatprep.subr.bf16.mxu0 0
        %1919 = vmatpush2.bf16.msra.mxu0 0
        %1920 = vmatprep.subr.bf16.mxu0 0
        %1921 = vmatpush2.bf16.msra.mxu0 0
        %1922 = vmatprep.subr.bf16.mxu0 0
        %1923 = vmatpush2.bf16.msra.mxu0 0
        %1924 = vmatprep.subr.bf16.mxu0 0
        %1925 = vmatpush2.bf16.msra.mxu0 0
        %1926 = vmatprep.subr.bf16.mxu0 0
        %1927 = vmatpush2.bf16.msra.mxu0 0
        %1928 = vmatprep.subr.bf16.mxu0 0
        %1929 = vmatpush2.bf16.msra.mxu0 0
        %1930 = vmatprep.subr.bf16.mxu0 0
        %1931 = vmatpush2.bf16.msra.mxu0 0
        %1932 = vmatprep.mubr.bf16.mxu0 0
        %1933 = vmatmul.mubr.bf16.gmra.mxu0 %v1827
        %v1934 = vpop.f32.mrf.mxu0
        %v1935 = vadd.f32 0.0, %v1934
        %v1936 = vpop.f32.mrf.mxu0
        %v1937 = vpop.f32.mrf.mxu0
        %v1938 = vadd.f32 0.0, %v1937
        %v1939 = vpop.f32.mrf.mxu0
        %1940 = vmatprep.mubr.bf16.mxu0 0
        %1941 = vmatmul.mubr.bf16.gmra.mxu0 %v1828
        %v1942 = vpop.f32.mrf.mxu0
        %v1943 = vadd.f32 0.0, %v1942
        %v1944 = vpop.f32.mrf.mxu0
        %v1945 = vpop.f32.mrf.mxu0
        %v1946 = vadd.f32 0.0, %v1945
        %v1947 = vpop.f32.mrf.mxu0
        %1948 = vmatprep.mubr.bf16.mxu0 0
        %1949 = vmatmul.mubr.bf16.gmra.mxu0 %v1829
        %v1950 = vpop.f32.mrf.mxu0
        %v1951 = vadd.f32 0.0, %v1950
        %v1952 = vpop.f32.mrf.mxu0
        %v1953 = vpop.f32.mrf.mxu0
        %v1954 = vadd.f32 0.0, %v1953
        %v1955 = vpop.f32.mrf.mxu0
        %1956 = vmatprep.mubr.bf16.mxu0 0
        %1957 = vmatmul.mubr.bf16.gmra.mxu0 %v1830
        %v1958 = vpop.f32.mrf.mxu0
        %v1959 = vadd.f32 0.0, %v1958
        %v1960 = vpop.f32.mrf.mxu0
        %v1961 = vpop.f32.mrf.mxu0
        %v1962 = vadd.f32 0.0, %v1961
        %v1963 = vpop.f32.mrf.mxu0
        %1964 = vmatprep.mubr.bf16.mxu0 0
        %1965 = vmatmul.mubr.bf16.gmra.mxu0 %v1831
        %v1966 = vpop.f32.mrf.mxu0
        %v1967 = vadd.f32 0.0, %v1966
        %v1968 = vpop.f32.mrf.mxu0
        %v1969 = vpop.f32.mrf.mxu0
        %v1970 = vadd.f32 0.0, %v1969
        %v1971 = vpop.f32.mrf.mxu0
        %1972 = vmatprep.mubr.bf16.mxu0 0
        %1973 = vmatmul.mubr.bf16.gmra.mxu0 %v1832
        %v1974 = vpop.f32.mrf.mxu0
        %v1975 = vadd.f32 0.0, %v1974
        %v1976 = vpop.f32.mrf.mxu0
        %v1977 = vpop.f32.mrf.mxu0
        %v1978 = vadd.f32 0.0, %v1977
        %v1979 = vpop.f32.mrf.mxu0
        %1980 = vmatprep.mubr.bf16.mxu0 0
        %1981 = vmatmul.mubr.bf16.gmra.mxu0 %v1833
        %v1982 = vpop.f32.mrf.mxu0
        %v1983 = vadd.f32 0.0, %v1982
        %v1984 = vpop.f32.mrf.mxu0
        %v1985 = vpop.f32.mrf.mxu0
        %v1986 = vadd.f32 0.0, %v1985
        %v1987 = vpop.f32.mrf.mxu0
        %1988 = vmatprep.mubr.bf16.mxu0 0
        %1989 = vmatmul.mubr.bf16.gmra.mxu0 %v1834
        %v1990 = vpop.f32.mrf.mxu0
        %v1991 = vadd.f32 0.0, %v1990
        %v1992 = vpop.f32.mrf.mxu0
        %v1993 = vpop.f32.mrf.mxu0
        %v1994 = vadd.f32 0.0, %v1993
        %v1995 = vpop.f32.mrf.mxu0
        %1996 = vdwg.mxu0
        %v2013 = vunpack.c.l.b16 %v1795
        %v2014 = vunpack.c.l.b16 %v1796
        %v2015 = vunpack.c.l.b16 %v1797
        %v2016 = vunpack.c.l.b16 %v1798
        %v2017 = vunpack.c.l.b16 %v1799
        %v2018 = vunpack.c.l.b16 %v1800
        %v2019 = vunpack.c.l.b16 %v1801
        %v2020 = vunpack.c.l.b16 %v1802
        %v2021 = vunpack.c.l.b16 %v1803
        %v2022 = vunpack.c.l.b16 %v1804
        %v2023 = vunpack.c.l.b16 %v1805
        %v2024 = vunpack.c.l.b16 %v1806
        %v2025 = vunpack.c.l.b16 %v1807
        %v2026 = vunpack.c.l.b16 %v1808
        %v2027 = vunpack.c.l.b16 %v1809
        %v2028 = vunpack.c.l.b16 %v1810
        %v2029 = vpack.c.b16 %v2014, %v2013
        %v2030 = vpack.c.b16 %v2016, %v2015
        %v2031 = vpack.c.b16 %v2018, %v2017
        %v2032 = vpack.c.b16 %v2020, %v2019
        %v2033 = vpack.c.b16 %v2022, %v2021
        %v2034 = vpack.c.b16 %v2024, %v2023
        %v2035 = vpack.c.b16 %v2026, %v2025
        %v2036 = vpack.c.b16 %v2028, %v2027
        %2045 = vmatprep.subr.bf16.mxu0 0
        %2046 = vmatpush1.bf16.msra.mxu0 %v2036
        %2047 = vmatprep.subr.bf16.mxu0 0
        %2048 = vmatpush1.bf16.msra.mxu0 %v2035
        %2049 = vmatprep.subr.bf16.mxu0 0
        %2050 = vmatpush1.bf16.msra.mxu0 %v2034
        %2051 = vmatprep.subr.bf16.mxu0 0
        %2052 = vmatpush1.bf16.msra.mxu0 %v2033
        %2053 = vmatprep.subr.bf16.mxu0 0
        %2054 = vmatpush1.bf16.msra.mxu0 %v2032
        %2055 = vmatprep.subr.bf16.mxu0 0
        %2056 = vmatpush1.bf16.msra.mxu0 %v2031
        %2057 = vmatprep.subr.bf16.mxu0 0
        %2058 = vmatpush1.bf16.msra.mxu0 %v2030
        %2059 = vmatprep.subr.bf16.mxu0 0
        %2060 = vmatpush1.bf16.msra.mxu0 %v2029
        %2061 = vmatprep.subr.bf16.mxu0 0
        %2062 = vmatpush2.bf16.msra.mxu0 0
        %2063 = vmatprep.subr.bf16.mxu0 0
        %2064 = vmatpush2.bf16.msra.mxu0 0
        %2065 = vmatprep.subr.bf16.mxu0 0
        %2066 = vmatpush2.bf16.msra.mxu0 0
        %2067 = vmatprep.subr.bf16.mxu0 0
        %2068 = vmatpush2.bf16.msra.mxu0 0
        %2069 = vmatprep.subr.bf16.mxu0 0
        %2070 = vmatpush2.bf16.msra.mxu0 0
        %2071 = vmatprep.subr.bf16.mxu0 0
        %2072 = vmatpush2.bf16.msra.mxu0 0
        %2073 = vmatprep.subr.bf16.mxu0 0
        %2074 = vmatpush2.bf16.msra.mxu0 0
        %2075 = vmatprep.subr.bf16.mxu0 0
        %2076 = vmatpush2.bf16.msra.mxu0 0
        %2077 = vmatprep.mubr.bf16.mxu0 0
        %2078 = vmatmul.mubr.bf16.gmra.mxu0 %v1787
        %v2079 = vpop.f32.mrf.mxu0
        %v2080 = vadd.f32 %v1935, %v2079
        %v2081 = vpop.f32.mrf.mxu0
        %v2082 = vpop.f32.mrf.mxu0
        %v2083 = vadd.f32 %v1938, %v2082
        %v2084 = vpop.f32.mrf.mxu0
        %2085 = vmatprep.mubr.bf16.mxu0 0
        %2086 = vmatmul.mubr.bf16.gmra.mxu0 %v1788
        %v2087 = vpop.f32.mrf.mxu0
        %v2088 = vadd.f32 %v1943, %v2087
        %v2089 = vpop.f32.mrf.mxu0
        %v2090 = vpop.f32.mrf.mxu0
        %v2091 = vadd.f32 %v1946, %v2090
        %v2092 = vpop.f32.mrf.mxu0
        %2093 = vmatprep.mubr.bf16.mxu0 0
        %2094 = vmatmul.mubr.bf16.gmra.mxu0 %v1789
        %v2095 = vpop.f32.mrf.mxu0
        %v2096 = vadd.f32 %v1951, %v2095
        %v2097 = vpop.f32.mrf.mxu0
        %v2098 = vpop.f32.mrf.mxu0
        %v2099 = vadd.f32 %v1954, %v2098
        %v2100 = vpop.f32.mrf.mxu0
        %2101 = vmatprep.mubr.bf16.mxu0 0
        %2102 = vmatmul.mubr.bf16.gmra.mxu0 %v1790
        %v2103 = vpop.f32.mrf.mxu0
        %v2104 = vadd.f32 %v1959, %v2103
        %v2105 = vpop.f32.mrf.mxu0
        %v2106 = vpop.f32.mrf.mxu0
        %v2107 = vadd.f32 %v1962, %v2106
        %v2108 = vpop.f32.mrf.mxu0
        %2109 = vmatprep.mubr.bf16.mxu0 0
        %2110 = vmatmul.mubr.bf16.gmra.mxu0 %v1791
        %v2111 = vpop.f32.mrf.mxu0
        %v2112 = vadd.f32 %v1967, %v2111
        %v2113 = vpop.f32.mrf.mxu0
        %v2114 = vpop.f32.mrf.mxu0
        %v2115 = vadd.f32 %v1970, %v2114
        %v2116 = vpop.f32.mrf.mxu0
        %2117 = vmatprep.mubr.bf16.mxu0 0
        %2118 = vmatmul.mubr.bf16.gmra.mxu0 %v1792
        %v2119 = vpop.f32.mrf.mxu0
        %v2120 = vadd.f32 %v1975, %v2119
        %v2121 = vpop.f32.mrf.mxu0
        %v2122 = vpop.f32.mrf.mxu0
        %v2123 = vadd.f32 %v1978, %v2122
        %v2124 = vpop.f32.mrf.mxu0
        %2125 = vmatprep.mubr.bf16.mxu0 0
        %2126 = vmatmul.mubr.bf16.gmra.mxu0 %v1793
        %v2127 = vpop.f32.mrf.mxu0
        %v2128 = vadd.f32 %v1983, %v2127
        %v2129 = vpop.f32.mrf.mxu0
        %v2130 = vpop.f32.mrf.mxu0
        %v2131 = vadd.f32 %v1986, %v2130
        %v2132 = vpop.f32.mrf.mxu0
        %2133 = vmatprep.mubr.bf16.mxu0 0
        %2134 = vmatmul.mubr.bf16.gmra.mxu0 %v1794
        %v2135 = vpop.f32.mrf.mxu0
        %v2136 = vadd.f32 %v1991, %v2135
        %v2137 = vpop.f32.mrf.mxu0
        %v2138 = vpop.f32.mrf.mxu0
        %v2139 = vadd.f32 %v1994, %v2138
        %v2140 = vpop.f32.mrf.mxu0
        %2141 = vdwg.mxu0
        %v2142 = vld [vmem:[#allocation2 + $0x1] sm:$0xff]
        %v2143 = vld [vmem:[#allocation2 + $0x11] sm:$0xff]
        %v2144 = vld [vmem:[#allocation2 + $0x21] sm:$0xff]
        %v2145 = vld [vmem:[#allocation2 + $0x31] sm:$0xff]
        %v2146 = vld [vmem:[#allocation2 + $0x41] sm:$0xff]
        %v2147 = vld [vmem:[#allocation2 + $0x51] sm:$0xff]
        %v2148 = vld [vmem:[#allocation2 + $0x61] sm:$0xff]
        %v2149 = vld [vmem:[#allocation2 + $0x71] sm:$0xff]
        %v2150 = vld [vmem:[#allocation2 + $0x91] sm:$0xff]
        %v2151 = vld [vmem:[#allocation2 + $0xa1] sm:$0xff]
        %v2152 = vld [vmem:[#allocation2 + $0xb1] sm:$0xff]
        %v2153 = vld [vmem:[#allocation2 + $0xc1] sm:$0xff]
        %v2154 = vld [vmem:[#allocation2 + $0xd1] sm:$0xff]
        %v2155 = vld [vmem:[#allocation2 + $0xe1] sm:$0xff]
        %v2156 = vld [vmem:[#allocation2 + $0xf1] sm:$0xff]
        %v2157 = vld [vmem:[#allocation2 + $0x101] sm:$0xff]
        %v2158 = vpack.c.bf16 %v2143, %v2142
        %v2159 = vpack.c.bf16 %v2145, %v2144
        %v2160 = vpack.c.bf16 %v2147, %v2146
        %v2161 = vpack.c.bf16 %v2149, %v2148
        %v2162 = vpack.c.bf16 %v2151, %v2150
        %v2163 = vpack.c.bf16 %v2153, %v2152
        %v2164 = vpack.c.bf16 %v2155, %v2154
        %v2165 = vpack.c.bf16 %v2157, %v2156
        %s2166 = scalar_lea.vmem %s3, 128
        %v2167 = vld [vmem:[%s2166] sm:$0xf]
        %v2168 = vld [vmem:[%s2166 + $0x4] sm:$0xf]
        %v2169 = vld [vmem:[%s2166 + $0x8] sm:$0xf]
        %v2170 = vld [vmem:[%s2166 + $0xc] sm:$0xf]
        %v2171 = vld [vmem:[%s2166 + $0x10] sm:$0xf]
        %v2172 = vld [vmem:[%s2166 + $0x14] sm:$0xf]
        %v2173 = vld [vmem:[%s2166 + $0x18] sm:$0xf]
        %v2174 = vld [vmem:[%s2166 + $0x1c] sm:$0xf]
        %v2175 = vld [vmem:[%s2166 + $0x20] sm:$0xf]
        %v2176 = vld [vmem:[%s2166 + $0x24] sm:$0xf]
        %v2177 = vld [vmem:[%s2166 + $0x28] sm:$0xf]
        %v2178 = vld [vmem:[%s2166 + $0x2c] sm:$0xf]
        %v2179 = vld [vmem:[%s2166 + $0x30] sm:$0xf]
        %v2180 = vld [vmem:[%s2166 + $0x34] sm:$0xf]
        %v2181 = vld [vmem:[%s2166 + $0x38] sm:$0xf]
        %v2182 = vld [vmem:[%s2166 + $0x3c] sm:$0xf]
        %v2199 = vunpack.c.l.b16 %v2167
        %v2200 = vunpack.c.l.b16 %v2168
        %v2201 = vunpack.c.l.b16 %v2169
        %v2202 = vunpack.c.l.b16 %v2170
        %v2203 = vunpack.c.l.b16 %v2171
        %v2204 = vunpack.c.l.b16 %v2172
        %v2205 = vunpack.c.l.b16 %v2173
        %v2206 = vunpack.c.l.b16 %v2174
        %v2207 = vunpack.c.l.b16 %v2175
        %v2208 = vunpack.c.l.b16 %v2176
        %v2209 = vunpack.c.l.b16 %v2177
        %v2210 = vunpack.c.l.b16 %v2178
        %v2211 = vunpack.c.l.b16 %v2179
        %v2212 = vunpack.c.l.b16 %v2180
        %v2213 = vunpack.c.l.b16 %v2181
        %v2214 = vunpack.c.l.b16 %v2182
        %v2215 = vpack.c.b16 %v2200, %v2199
        %v2216 = vpack.c.b16 %v2202, %v2201
        %v2217 = vpack.c.b16 %v2204, %v2203
        %v2218 = vpack.c.b16 %v2206, %v2205
        %v2219 = vpack.c.b16 %v2208, %v2207
        %v2220 = vpack.c.b16 %v2210, %v2209
        %v2221 = vpack.c.b16 %v2212, %v2211
        %v2222 = vpack.c.b16 %v2214, %v2213
        %2231 = vmatprep.subr.bf16.mxu0 0
        %2232 = vmatpush1.bf16.msra.mxu0 %v2222
        %2233 = vmatprep.subr.bf16.mxu0 0
        %2234 = vmatpush1.bf16.msra.mxu0 %v2221
        %2235 = vmatprep.subr.bf16.mxu0 0
        %2236 = vmatpush1.bf16.msra.mxu0 %v2220
        %2237 = vmatprep.subr.bf16.mxu0 0
        %2238 = vmatpush1.bf16.msra.mxu0 %v2219
        %2239 = vmatprep.subr.bf16.mxu0 0
        %2240 = vmatpush1.bf16.msra.mxu0 %v2218
        %2241 = vmatprep.subr.bf16.mxu0 0
        %2242 = vmatpush1.bf16.msra.mxu0 %v2217
        %2243 = vmatprep.subr.bf16.mxu0 0
        %2244 = vmatpush1.bf16.msra.mxu0 %v2216
        %2245 = vmatprep.subr.bf16.mxu0 0
        %2246 = vmatpush1.bf16.msra.mxu0 %v2215
        %2247 = vmatprep.subr.bf16.mxu0 0
        %2248 = vmatpush2.bf16.msra.mxu0 0
        %2249 = vmatprep.subr.bf16.mxu0 0
        %2250 = vmatpush2.bf16.msra.mxu0 0
        %2251 = vmatprep.subr.bf16.mxu0 0
        %2252 = vmatpush2.bf16.msra.mxu0 0
        %2253 = vmatprep.subr.bf16.mxu0 0
        %2254 = vmatpush2.bf16.msra.mxu0 0
        %2255 = vmatprep.subr.bf16.mxu0 0
        %2256 = vmatpush2.bf16.msra.mxu0 0
        %2257 = vmatprep.subr.bf16.mxu0 0
        %2258 = vmatpush2.bf16.msra.mxu0 0
        %2259 = vmatprep.subr.bf16.mxu0 0
        %2260 = vmatpush2.bf16.msra.mxu0 0
        %2261 = vmatprep.subr.bf16.mxu0 0
        %2262 = vmatpush2.bf16.msra.mxu0 0
        %2263 = vmatprep.mubr.bf16.mxu0 0
        %2264 = vmatmul.mubr.bf16.gmra.mxu0 %v2158
        %v2265 = vpop.f32.mrf.mxu0
        %v2266 = vadd.f32 0.0, %v2265
        %v2267 = vpop.f32.mrf.mxu0
        %v2268 = vpop.f32.mrf.mxu0
        %v2269 = vadd.f32 0.0, %v2268
        %v2270 = vpop.f32.mrf.mxu0
        %2271 = vmatprep.mubr.bf16.mxu0 0
        %2272 = vmatmul.mubr.bf16.gmra.mxu0 %v2159
        %v2273 = vpop.f32.mrf.mxu0
        %v2274 = vadd.f32 0.0, %v2273
        %v2275 = vpop.f32.mrf.mxu0
        %v2276 = vpop.f32.mrf.mxu0
        %v2277 = vadd.f32 0.0, %v2276
        %v2278 = vpop.f32.mrf.mxu0
        %2279 = vmatprep.mubr.bf16.mxu0 0
        %2280 = vmatmul.mubr.bf16.gmra.mxu0 %v2160
        %v2281 = vpop.f32.mrf.mxu0
        %v2282 = vadd.f32 0.0, %v2281
        %v2283 = vpop.f32.mrf.mxu0
        %v2284 = vpop.f32.mrf.mxu0
        %v2285 = vadd.f32 0.0, %v2284
        %v2286 = vpop.f32.mrf.mxu0
        %2287 = vmatprep.mubr.bf16.mxu0 0
        %2288 = vmatmul.mubr.bf16.gmra.mxu0 %v2161
        %v2289 = vpop.f32.mrf.mxu0
        %v2290 = vadd.f32 0.0, %v2289
        %v2291 = vpop.f32.mrf.mxu0
        %v2292 = vpop.f32.mrf.mxu0
        %v2293 = vadd.f32 0.0, %v2292
        %v2294 = vpop.f32.mrf.mxu0
        %2295 = vmatprep.mubr.bf16.mxu0 0
        %2296 = vmatmul.mubr.bf16.gmra.mxu0 %v2162
        %v2297 = vpop.f32.mrf.mxu0
        %v2298 = vadd.f32 0.0, %v2297
        %v2299 = vpop.f32.mrf.mxu0
        %v2300 = vpop.f32.mrf.mxu0
        %v2301 = vadd.f32 0.0, %v2300
        %v2302 = vpop.f32.mrf.mxu0
        %2303 = vmatprep.mubr.bf16.mxu0 0
        %2304 = vmatmul.mubr.bf16.gmra.mxu0 %v2163
        %v2305 = vpop.f32.mrf.mxu0
        %v2306 = vadd.f32 0.0, %v2305
        %v2307 = vpop.f32.mrf.mxu0
        %v2308 = vpop.f32.mrf.mxu0
        %v2309 = vadd.f32 0.0, %v2308
        %v2310 = vpop.f32.mrf.mxu0
        %2311 = vmatprep.mubr.bf16.mxu0 0
        %2312 = vmatmul.mubr.bf16.gmra.mxu0 %v2164
        %v2313 = vpop.f32.mrf.mxu0
        %v2314 = vadd.f32 0.0, %v2313
        %v2315 = vpop.f32.mrf.mxu0
        %v2316 = vpop.f32.mrf.mxu0
        %v2317 = vadd.f32 0.0, %v2316
        %v2318 = vpop.f32.mrf.mxu0
        %2319 = vmatprep.mubr.bf16.mxu0 0
        %2320 = vmatmul.mubr.bf16.gmra.mxu0 %v2165
        %v2321 = vpop.f32.mrf.mxu0
        %v2322 = vadd.f32 0.0, %v2321
        %v2323 = vpop.f32.mrf.mxu0
        %v2324 = vpop.f32.mrf.mxu0
        %v2325 = vadd.f32 0.0, %v2324
        %v2326 = vpop.f32.mrf.mxu0
        %2327 = vdwg.mxu0
        %v2328 = vadd.f32 %v2080, %v2266
        %v2329 = vadd.f32 %v2083, %v2269
        %v2330 = vadd.f32 %v2088, %v2274
        %v2331 = vadd.f32 %v2091, %v2277
        %v2332 = vadd.f32 %v2096, %v2282
        %v2333 = vadd.f32 %v2099, %v2285
        %v2334 = vadd.f32 %v2104, %v2290
        %v2335 = vadd.f32 %v2107, %v2293
        %v2336 = vadd.f32 %v2112, %v2298
        %v2337 = vadd.f32 %v2115, %v2301
        %v2338 = vadd.f32 %v2120, %v2306
        %v2339 = vadd.f32 %v2123, %v2309
        %v2340 = vadd.f32 %v2128, %v2314
        %v2341 = vadd.f32 %v2131, %v2317
        %v2342 = vadd.f32 %v2136, %v2322
        %v2343 = vadd.f32 %v2139, %v2325
        %v2344 = vld [vmem:[%s660] sm:$0xff]
        %v2345 = vld [vmem:[%s660 + $0x10] sm:$0xff]
        %v2346 = vld [vmem:[%s660 + $0x20] sm:$0xff]
        %v2347 = vld [vmem:[%s660 + $0x30] sm:$0xff]
        %v2348 = vld [vmem:[%s660 + $0x40] sm:$0xff]
        %v2349 = vld [vmem:[%s660 + $0x50] sm:$0xff]
        %v2350 = vld [vmem:[%s660 + $0x60] sm:$0xff]
        %v2351 = vld [vmem:[%s660 + $0x70] sm:$0xff]
        %v2352 = vld [vmem:[%s660 + $0x90] sm:$0xff]
        %v2353 = vld [vmem:[%s660 + $0xa0] sm:$0xff]
        %v2354 = vld [vmem:[%s660 + $0xb0] sm:$0xff]
        %v2355 = vld [vmem:[%s660 + $0xc0] sm:$0xff]
        %v2356 = vld [vmem:[%s660 + $0xd0] sm:$0xff]
        %v2357 = vld [vmem:[%s660 + $0xe0] sm:$0xff]
        %v2358 = vld [vmem:[%s660 + $0xf0] sm:$0xff]
        %v2359 = vld [vmem:[%s660 + $0x100] sm:$0xff]
        %v2360 = vpack.c.bf16 %v2345, %v2344
        %v2361 = vpack.c.bf16 %v2347, %v2346
        %v2362 = vpack.c.bf16 %v2349, %v2348
        %v2363 = vpack.c.bf16 %v2351, %v2350
        %v2364 = vpack.c.bf16 %v2353, %v2352
        %v2365 = vpack.c.bf16 %v2355, %v2354
        %v2366 = vpack.c.bf16 %v2357, %v2356
        %v2367 = vpack.c.bf16 %v2359, %v2358
        %s2368 = scalar_lea.vmem %s3, 192
        %v2369 = vld [vmem:[%s2368] sm:$0xf]
        %v2370 = vld [vmem:[%s2368 + $0x4] sm:$0xf]
        %v2371 = vld [vmem:[%s2368 + $0x8] sm:$0xf]
        %v2372 = vld [vmem:[%s2368 + $0xc] sm:$0xf]
        %v2373 = vld [vmem:[%s2368 + $0x10] sm:$0xf]
        %v2374 = vld [vmem:[%s2368 + $0x14] sm:$0xf]
        %v2375 = vld [vmem:[%s2368 + $0x18] sm:$0xf]
        %v2376 = vld [vmem:[%s2368 + $0x1c] sm:$0xf]
        %v2377 = vld [vmem:[%s2368 + $0x20] sm:$0xf]
        %v2378 = vld [vmem:[%s2368 + $0x24] sm:$0xf]
        %v2379 = vld [vmem:[%s2368 + $0x28] sm:$0xf]
        %v2380 = vld [vmem:[%s2368 + $0x2c] sm:$0xf]
        %v2381 = vld [vmem:[%s2368 + $0x30] sm:$0xf]
        %v2382 = vld [vmem:[%s2368 + $0x34] sm:$0xf]
        %v2383 = vld [vmem:[%s2368 + $0x38] sm:$0xf]
        %v2384 = vld [vmem:[%s2368 + $0x3c] sm:$0xf]
        %v2401 = vunpack.c.l.b16 %v2369
        %v2402 = vunpack.c.l.b16 %v2370
        %v2403 = vunpack.c.l.b16 %v2371
        %v2404 = vunpack.c.l.b16 %v2372
        %v2405 = vunpack.c.l.b16 %v2373
        %v2406 = vunpack.c.l.b16 %v2374
        %v2407 = vunpack.c.l.b16 %v2375
        %v2408 = vunpack.c.l.b16 %v2376
        %v2409 = vunpack.c.l.b16 %v2377
        %v2410 = vunpack.c.l.b16 %v2378
        %v2411 = vunpack.c.l.b16 %v2379
        %v2412 = vunpack.c.l.b16 %v2380
        %v2413 = vunpack.c.l.b16 %v2381
        %v2414 = vunpack.c.l.b16 %v2382
        %v2415 = vunpack.c.l.b16 %v2383
        %v2416 = vunpack.c.l.b16 %v2384
        %v2417 = vpack.c.b16 %v2402, %v2401
        %v2418 = vpack.c.b16 %v2404, %v2403
        %v2419 = vpack.c.b16 %v2406, %v2405
        %v2420 = vpack.c.b16 %v2408, %v2407
        %v2421 = vpack.c.b16 %v2410, %v2409
        %v2422 = vpack.c.b16 %v2412, %v2411
        %v2423 = vpack.c.b16 %v2414, %v2413
        %v2424 = vpack.c.b16 %v2416, %v2415
        %2433 = vmatprep.subr.bf16.mxu0 0
        %2434 = vmatpush1.bf16.msra.mxu0 %v2424
        %2435 = vmatprep.subr.bf16.mxu0 0
        %2436 = vmatpush1.bf16.msra.mxu0 %v2423
        %2437 = vmatprep.subr.bf16.mxu0 0
        %2438 = vmatpush1.bf16.msra.mxu0 %v2422
        %2439 = vmatprep.subr.bf16.mxu0 0
        %2440 = vmatpush1.bf16.msra.mxu0 %v2421
        %2441 = vmatprep.subr.bf16.mxu0 0
        %2442 = vmatpush1.bf16.msra.mxu0 %v2420
        %2443 = vmatprep.subr.bf16.mxu0 0
        %2444 = vmatpush1.bf16.msra.mxu0 %v2419
        %2445 = vmatprep.subr.bf16.mxu0 0
        %2446 = vmatpush1.bf16.msra.mxu0 %v2418
        %2447 = vmatprep.subr.bf16.mxu0 0
        %2448 = vmatpush1.bf16.msra.mxu0 %v2417
        %2449 = vmatprep.subr.bf16.mxu0 0
        %2450 = vmatpush2.bf16.msra.mxu0 0
        %2451 = vmatprep.subr.bf16.mxu0 0
        %2452 = vmatpush2.bf16.msra.mxu0 0
        %2453 = vmatprep.subr.bf16.mxu0 0
        %2454 = vmatpush2.bf16.msra.mxu0 0
        %2455 = vmatprep.subr.bf16.mxu0 0
        %2456 = vmatpush2.bf16.msra.mxu0 0
        %2457 = vmatprep.subr.bf16.mxu0 0
        %2458 = vmatpush2.bf16.msra.mxu0 0
        %2459 = vmatprep.subr.bf16.mxu0 0
        %2460 = vmatpush2.bf16.msra.mxu0 0
        %2461 = vmatprep.subr.bf16.mxu0 0
        %2462 = vmatpush2.bf16.msra.mxu0 0
        %2463 = vmatprep.subr.bf16.mxu0 0
        %2464 = vmatpush2.bf16.msra.mxu0 0
        %2465 = vmatprep.mubr.bf16.mxu0 0
        %2466 = vmatmul.mubr.bf16.gmra.mxu0 %v2360
        %v2467 = vpop.f32.mrf.mxu0
        %v2468 = vadd.f32 0.0, %v2467
        %v2469 = vpop.f32.mrf.mxu0
        %v2470 = vpop.f32.mrf.mxu0
        %v2471 = vadd.f32 0.0, %v2470
        %v2472 = vpop.f32.mrf.mxu0
        %2473 = vmatprep.mubr.bf16.mxu0 0
        %2474 = vmatmul.mubr.bf16.gmra.mxu0 %v2361
        %v2475 = vpop.f32.mrf.mxu0
        %v2476 = vadd.f32 0.0, %v2475
        %v2477 = vpop.f32.mrf.mxu0
        %v2478 = vpop.f32.mrf.mxu0
        %v2479 = vadd.f32 0.0, %v2478
        %v2480 = vpop.f32.mrf.mxu0
        %2481 = vmatprep.mubr.bf16.mxu0 0
        %2482 = vmatmul.mubr.bf16.gmra.mxu0 %v2362
        %v2483 = vpop.f32.mrf.mxu0
        %v2484 = vadd.f32 0.0, %v2483
        %v2485 = vpop.f32.mrf.mxu0
        %v2486 = vpop.f32.mrf.mxu0
        %v2487 = vadd.f32 0.0, %v2486
        %v2488 = vpop.f32.mrf.mxu0
        %2489 = vmatprep.mubr.bf16.mxu0 0
        %2490 = vmatmul.mubr.bf16.gmra.mxu0 %v2363
        %v2491 = vpop.f32.mrf.mxu0
        %v2492 = vadd.f32 0.0, %v2491
        %v2493 = vpop.f32.mrf.mxu0
        %v2494 = vpop.f32.mrf.mxu0
        %v2495 = vadd.f32 0.0, %v2494
        %v2496 = vpop.f32.mrf.mxu0
        %2497 = vmatprep.mubr.bf16.mxu0 0
        %2498 = vmatmul.mubr.bf16.gmra.mxu0 %v2364
        %v2499 = vpop.f32.mrf.mxu0
        %v2500 = vadd.f32 0.0, %v2499
        %v2501 = vpop.f32.mrf.mxu0
        %v2502 = vpop.f32.mrf.mxu0
        %v2503 = vadd.f32 0.0, %v2502
        %v2504 = vpop.f32.mrf.mxu0
        %2505 = vmatprep.mubr.bf16.mxu0 0
        %2506 = vmatmul.mubr.bf16.gmra.mxu0 %v2365
        %v2507 = vpop.f32.mrf.mxu0
        %v2508 = vadd.f32 0.0, %v2507
        %v2509 = vpop.f32.mrf.mxu0
        %v2510 = vpop.f32.mrf.mxu0
        %v2511 = vadd.f32 0.0, %v2510
        %v2512 = vpop.f32.mrf.mxu0
        %2513 = vmatprep.mubr.bf16.mxu0 0
        %2514 = vmatmul.mubr.bf16.gmra.mxu0 %v2366
        %v2515 = vpop.f32.mrf.mxu0
        %v2516 = vadd.f32 0.0, %v2515
        %v2517 = vpop.f32.mrf.mxu0
        %v2518 = vpop.f32.mrf.mxu0
        %v2519 = vadd.f32 0.0, %v2518
        %v2520 = vpop.f32.mrf.mxu0
        %2521 = vmatprep.mubr.bf16.mxu0 0
        %2522 = vmatmul.mubr.bf16.gmra.mxu0 %v2367
        %v2523 = vpop.f32.mrf.mxu0
        %v2524 = vadd.f32 0.0, %v2523
        %v2525 = vpop.f32.mrf.mxu0
        %v2526 = vpop.f32.mrf.mxu0
        %v2527 = vadd.f32 0.0, %v2526
        %v2528 = vpop.f32.mrf.mxu0
        %2529 = vdwg.mxu0
        %v2530 = vadd.f32 %v2328, %v2468
        %v2531 = vadd.f32 %v2329, %v2471
        %v2532 = vadd.f32 %v2330, %v2476
        %v2533 = vadd.f32 %v2331, %v2479
        %v2534 = vadd.f32 %v2332, %v2484
        %v2535 = vadd.f32 %v2333, %v2487
        %v2536 = vadd.f32 %v2334, %v2492
        %v2537 = vadd.f32 %v2335, %v2495
        %v2538 = vadd.f32 %v2336, %v2500
        %v2539 = vadd.f32 %v2337, %v2503
        %v2540 = vadd.f32 %v2338, %v2508
        %v2541 = vadd.f32 %v2339, %v2511
        %v2542 = vadd.f32 %v2340, %v2516
        %v2543 = vadd.f32 %v2341, %v2519
        %v2544 = vadd.f32 %v2342, %v2524
        %v2545 = vadd.f32 %v2343, %v2527
        %v2546 = vld [vmem:[%s1754] sm:$0xff]
        %v2547 = vld [vmem:[%s1754 + $0x10] sm:$0xff]
        %v2548 = vld [vmem:[%s1754 + $0x20] sm:$0xff]
        %v2549 = vld [vmem:[%s1754 + $0x30] sm:$0xff]
        %v2550 = vld [vmem:[%s1754 + $0x40] sm:$0xff]
        %v2551 = vld [vmem:[%s1754 + $0x50] sm:$0xff]
        %v2552 = vld [vmem:[%s1754 + $0x60] sm:$0xff]
        %v2553 = vld [vmem:[%s1754 + $0x70] sm:$0xff]
        %v2554 = vld [vmem:[%s1754 + $0x90] sm:$0xff]
        %v2555 = vld [vmem:[%s1754 + $0xa0] sm:$0xff]
        %v2556 = vld [vmem:[%s1754 + $0xb0] sm:$0xff]
        %v2557 = vld [vmem:[%s1754 + $0xc0] sm:$0xff]
        %v2558 = vld [vmem:[%s1754 + $0xd0] sm:$0xff]
        %v2559 = vld [vmem:[%s1754 + $0xe0] sm:$0xff]
        %v2560 = vld [vmem:[%s1754 + $0xf0] sm:$0xff]
        %v2561 = vld [vmem:[%s1754 + $0x100] sm:$0xff]
        %v2562 = vpack.c.bf16 %v2547, %v2546
        %v2563 = vpack.c.bf16 %v2549, %v2548
        %v2564 = vpack.c.bf16 %v2551, %v2550
        %v2565 = vpack.c.bf16 %v2553, %v2552
        %v2566 = vpack.c.bf16 %v2555, %v2554
        %v2567 = vpack.c.bf16 %v2557, %v2556
        %v2568 = vpack.c.bf16 %v2559, %v2558
        %v2569 = vpack.c.bf16 %v2561, %v2560
        %s2570 = scalar_lea.vmem %s3, 256
        %v2571 = vld [vmem:[%s2570] sm:$0xf]
        %v2572 = vld [vmem:[%s2570 + $0x4] sm:$0xf]
        %v2573 = vld [vmem:[%s2570 + $0x8] sm:$0xf]
        %v2574 = vld [vmem:[%s2570 + $0xc] sm:$0xf]
        %v2575 = vld [vmem:[%s2570 + $0x10] sm:$0xf]
        %v2576 = vld [vmem:[%s2570 + $0x14] sm:$0xf]
        %v2577 = vld [vmem:[%s2570 + $0x18] sm:$0xf]
        %v2578 = vld [vmem:[%s2570 + $0x1c] sm:$0xf]
        %v2579 = vld [vmem:[%s2570 + $0x20] sm:$0xf]
        %v2580 = vld [vmem:[%s2570 + $0x24] sm:$0xf]
        %v2581 = vld [vmem:[%s2570 + $0x28] sm:$0xf]
        %v2582 = vld [vmem:[%s2570 + $0x2c] sm:$0xf]
        %v2583 = vld [vmem:[%s2570 + $0x30] sm:$0xf]
        %v2584 = vld [vmem:[%s2570 + $0x34] sm:$0xf]
        %v2585 = vld [vmem:[%s2570 + $0x38] sm:$0xf]
        %v2586 = vld [vmem:[%s2570 + $0x3c] sm:$0xf]
        %v2603 = vunpack.c.l.b16 %v2571
        %v2604 = vunpack.c.l.b16 %v2572
        %v2605 = vunpack.c.l.b16 %v2573
        %v2606 = vunpack.c.l.b16 %v2574
        %v2607 = vunpack.c.l.b16 %v2575
        %v2608 = vunpack.c.l.b16 %v2576
        %v2609 = vunpack.c.l.b16 %v2577
        %v2610 = vunpack.c.l.b16 %v2578
        %v2611 = vunpack.c.l.b16 %v2579
        %v2612 = vunpack.c.l.b16 %v2580
        %v2613 = vunpack.c.l.b16 %v2581
        %v2614 = vunpack.c.l.b16 %v2582
        %v2615 = vunpack.c.l.b16 %v2583
        %v2616 = vunpack.c.l.b16 %v2584
        %v2617 = vunpack.c.l.b16 %v2585
        %v2618 = vunpack.c.l.b16 %v2586
        %v2619 = vpack.c.b16 %v2604, %v2603
        %v2620 = vpack.c.b16 %v2606, %v2605
        %v2621 = vpack.c.b16 %v2608, %v2607
        %v2622 = vpack.c.b16 %v2610, %v2609
        %v2623 = vpack.c.b16 %v2612, %v2611
        %v2624 = vpack.c.b16 %v2614, %v2613
        %v2625 = vpack.c.b16 %v2616, %v2615
        %v2626 = vpack.c.b16 %v2618, %v2617
        %2635 = vmatprep.subr.bf16.mxu0 0
        %2636 = vmatpush1.bf16.msra.mxu0 %v2626
        %2637 = vmatprep.subr.bf16.mxu0 0
        %2638 = vmatpush1.bf16.msra.mxu0 %v2625
        %2639 = vmatprep.subr.bf16.mxu0 0
        %2640 = vmatpush1.bf16.msra.mxu0 %v2624
        %2641 = vmatprep.subr.bf16.mxu0 0
        %2642 = vmatpush1.bf16.msra.mxu0 %v2623
        %2643 = vmatprep.subr.bf16.mxu0 0
        %2644 = vmatpush1.bf16.msra.mxu0 %v2622
        %2645 = vmatprep.subr.bf16.mxu0 0
        %2646 = vmatpush1.bf16.msra.mxu0 %v2621
        %2647 = vmatprep.subr.bf16.mxu0 0
        %2648 = vmatpush1.bf16.msra.mxu0 %v2620
        %2649 = vmatprep.subr.bf16.mxu0 0
        %2650 = vmatpush1.bf16.msra.mxu0 %v2619
        %2651 = vmatprep.subr.bf16.mxu0 0
        %2652 = vmatpush2.bf16.msra.mxu0 0
        %2653 = vmatprep.subr.bf16.mxu0 0
        %2654 = vmatpush2.bf16.msra.mxu0 0
        %2655 = vmatprep.subr.bf16.mxu0 0
        %2656 = vmatpush2.bf16.msra.mxu0 0
        %2657 = vmatprep.subr.bf16.mxu0 0
        %2658 = vmatpush2.bf16.msra.mxu0 0
        %2659 = vmatprep.subr.bf16.mxu0 0
        %2660 = vmatpush2.bf16.msra.mxu0 0
        %2661 = vmatprep.subr.bf16.mxu0 0
        %2662 = vmatpush2.bf16.msra.mxu0 0
        %2663 = vmatprep.subr.bf16.mxu0 0
        %2664 = vmatpush2.bf16.msra.mxu0 0
        %2665 = vmatprep.subr.bf16.mxu0 0
        %2666 = vmatpush2.bf16.msra.mxu0 0
        %2667 = vmatprep.mubr.bf16.mxu0 0
        %2668 = vmatmul.mubr.bf16.gmra.mxu0 %v2562
        %v2669 = vpop.f32.mrf.mxu0
        %v2670 = vadd.f32 0.0, %v2669
        %v2671 = vpop.f32.mrf.mxu0
        %v2672 = vpop.f32.mrf.mxu0
        %v2673 = vadd.f32 0.0, %v2672
        %v2674 = vpop.f32.mrf.mxu0
        %2675 = vmatprep.mubr.bf16.mxu0 0
        %2676 = vmatmul.mubr.bf16.gmra.mxu0 %v2563
        %v2677 = vpop.f32.mrf.mxu0
        %v2678 = vadd.f32 0.0, %v2677
        %v2679 = vpop.f32.mrf.mxu0
        %v2680 = vpop.f32.mrf.mxu0
        %v2681 = vadd.f32 0.0, %v2680
        %v2682 = vpop.f32.mrf.mxu0
        %2683 = vmatprep.mubr.bf16.mxu0 0
        %2684 = vmatmul.mubr.bf16.gmra.mxu0 %v2564
        %v2685 = vpop.f32.mrf.mxu0
        %v2686 = vadd.f32 0.0, %v2685
        %v2687 = vpop.f32.mrf.mxu0
        %v2688 = vpop.f32.mrf.mxu0
        %v2689 = vadd.f32 0.0, %v2688
        %v2690 = vpop.f32.mrf.mxu0
        %2691 = vmatprep.mubr.bf16.mxu0 0
        %2692 = vmatmul.mubr.bf16.gmra.mxu0 %v2565
        %v2693 = vpop.f32.mrf.mxu0
        %v2694 = vadd.f32 0.0, %v2693
        %v2695 = vpop.f32.mrf.mxu0
        %v2696 = vpop.f32.mrf.mxu0
        %v2697 = vadd.f32 0.0, %v2696
        %v2698 = vpop.f32.mrf.mxu0
        %2699 = vmatprep.mubr.bf16.mxu0 0
        %2700 = vmatmul.mubr.bf16.gmra.mxu0 %v2566
        %v2701 = vpop.f32.mrf.mxu0
        %v2702 = vadd.f32 0.0, %v2701
        %v2703 = vpop.f32.mrf.mxu0
        %v2704 = vpop.f32.mrf.mxu0
        %v2705 = vadd.f32 0.0, %v2704
        %v2706 = vpop.f32.mrf.mxu0
        %2707 = vmatprep.mubr.bf16.mxu0 0
        %2708 = vmatmul.mubr.bf16.gmra.mxu0 %v2567
        %v2709 = vpop.f32.mrf.mxu0
        %v2710 = vadd.f32 0.0, %v2709
        %v2711 = vpop.f32.mrf.mxu0
        %v2712 = vpop.f32.mrf.mxu0
        %v2713 = vadd.f32 0.0, %v2712
        %v2714 = vpop.f32.mrf.mxu0
        %2715 = vmatprep.mubr.bf16.mxu0 0
        %2716 = vmatmul.mubr.bf16.gmra.mxu0 %v2568
        %v2717 = vpop.f32.mrf.mxu0
        %v2718 = vadd.f32 0.0, %v2717
        %v2719 = vpop.f32.mrf.mxu0
        %v2720 = vpop.f32.mrf.mxu0
        %v2721 = vadd.f32 0.0, %v2720
        %v2722 = vpop.f32.mrf.mxu0
        %2723 = vmatprep.mubr.bf16.mxu0 0
        %2724 = vmatmul.mubr.bf16.gmra.mxu0 %v2569
        %v2725 = vpop.f32.mrf.mxu0
        %v2726 = vadd.f32 0.0, %v2725
        %v2727 = vpop.f32.mrf.mxu0
        %v2728 = vpop.f32.mrf.mxu0
        %v2729 = vadd.f32 0.0, %v2728
        %v2730 = vpop.f32.mrf.mxu0
        %2731 = vdwg.mxu0
        %v2732 = vadd.f32 %v2530, %v2670
        %v2733 = vadd.f32 %v2531, %v2673
        %v2734 = vadd.f32 %v2532, %v2678
        %v2735 = vadd.f32 %v2533, %v2681
        %v2736 = vadd.f32 %v2534, %v2686
        %v2737 = vadd.f32 %v2535, %v2689
        %v2738 = vadd.f32 %v2536, %v2694
        %v2739 = vadd.f32 %v2537, %v2697
        %v2740 = vadd.f32 %v2538, %v2702
        %v2741 = vadd.f32 %v2539, %v2705
        %v2742 = vadd.f32 %v2540, %v2710
        %v2743 = vadd.f32 %v2541, %v2713
        %v2744 = vadd.f32 %v2542, %v2718
        %v2745 = vadd.f32 %v2543, %v2721
        %v2746 = vadd.f32 %v2544, %v2726
        %v2747 = vadd.f32 %v2545, %v2729
        %v2748 = vld [vmem:[%s660 + $0x1] sm:$0xff]
        %v2749 = vld [vmem:[%s660 + $0x11] sm:$0xff]
        %v2750 = vld [vmem:[%s660 + $0x21] sm:$0xff]
        %v2751 = vld [vmem:[%s660 + $0x31] sm:$0xff]
        %v2752 = vld [vmem:[%s660 + $0x41] sm:$0xff]
        %v2753 = vld [vmem:[%s660 + $0x51] sm:$0xff]
        %v2754 = vld [vmem:[%s660 + $0x61] sm:$0xff]
        %v2755 = vld [vmem:[%s660 + $0x71] sm:$0xff]
        %v2756 = vld [vmem:[%s660 + $0x91] sm:$0xff]
        %v2757 = vld [vmem:[%s660 + $0xa1] sm:$0xff]
        %v2758 = vld [vmem:[%s660 + $0xb1] sm:$0xff]
        %v2759 = vld [vmem:[%s660 + $0xc1] sm:$0xff]
        %v2760 = vld [vmem:[%s660 + $0xd1] sm:$0xff]
        %v2761 = vld [vmem:[%s660 + $0xe1] sm:$0xff]
        %v2762 = vld [vmem:[%s660 + $0xf1] sm:$0xff]
        %v2763 = vld [vmem:[%s660 + $0x101] sm:$0xff]
        %v2764 = vpack.c.bf16 %v2749, %v2748
        %v2765 = vpack.c.bf16 %v2751, %v2750
        %v2766 = vpack.c.bf16 %v2753, %v2752
        %v2767 = vpack.c.bf16 %v2755, %v2754
        %v2768 = vpack.c.bf16 %v2757, %v2756
        %v2769 = vpack.c.bf16 %v2759, %v2758
        %v2770 = vpack.c.bf16 %v2761, %v2760
        %v2771 = vpack.c.bf16 %v2763, %v2762
        %s2772 = scalar_lea.vmem %s3, 320
        %v2773 = vld [vmem:[%s2772] sm:$0xf]
        %v2774 = vld [vmem:[%s2772 + $0x4] sm:$0xf]
        %v2775 = vld [vmem:[%s2772 + $0x8] sm:$0xf]
        %v2776 = vld [vmem:[%s2772 + $0xc] sm:$0xf]
        %v2777 = vld [vmem:[%s2772 + $0x10] sm:$0xf]
        %v2778 = vld [vmem:[%s2772 + $0x14] sm:$0xf]
        %v2779 = vld [vmem:[%s2772 + $0x18] sm:$0xf]
        %v2780 = vld [vmem:[%s2772 + $0x1c] sm:$0xf]
        %v2781 = vld [vmem:[%s2772 + $0x20] sm:$0xf]
        %v2782 = vld [vmem:[%s2772 + $0x24] sm:$0xf]
        %v2783 = vld [vmem:[%s2772 + $0x28] sm:$0xf]
        %v2784 = vld [vmem:[%s2772 + $0x2c] sm:$0xf]
        %v2785 = vld [vmem:[%s2772 + $0x30] sm:$0xf]
        %v2786 = vld [vmem:[%s2772 + $0x34] sm:$0xf]
        %v2787 = vld [vmem:[%s2772 + $0x38] sm:$0xf]
        %v2788 = vld [vmem:[%s2772 + $0x3c] sm:$0xf]
        %v2805 = vunpack.c.l.b16 %v2773
        %v2806 = vunpack.c.l.b16 %v2774
        %v2807 = vunpack.c.l.b16 %v2775
        %v2808 = vunpack.c.l.b16 %v2776
        %v2809 = vunpack.c.l.b16 %v2777
        %v2810 = vunpack.c.l.b16 %v2778
        %v2811 = vunpack.c.l.b16 %v2779
        %v2812 = vunpack.c.l.b16 %v2780
        %v2813 = vunpack.c.l.b16 %v2781
        %v2814 = vunpack.c.l.b16 %v2782
        %v2815 = vunpack.c.l.b16 %v2783
        %v2816 = vunpack.c.l.b16 %v2784
        %v2817 = vunpack.c.l.b16 %v2785
        %v2818 = vunpack.c.l.b16 %v2786
        %v2819 = vunpack.c.l.b16 %v2787
        %v2820 = vunpack.c.l.b16 %v2788
        %v2821 = vpack.c.b16 %v2806, %v2805
        %v2822 = vpack.c.b16 %v2808, %v2807
        %v2823 = vpack.c.b16 %v2810, %v2809
        %v2824 = vpack.c.b16 %v2812, %v2811
        %v2825 = vpack.c.b16 %v2814, %v2813
        %v2826 = vpack.c.b16 %v2816, %v2815
        %v2827 = vpack.c.b16 %v2818, %v2817
        %v2828 = vpack.c.b16 %v2820, %v2819
        %2837 = vmatprep.subr.bf16.mxu0 0
        %2838 = vmatpush1.bf16.msra.mxu0 %v2828
        %2839 = vmatprep.subr.bf16.mxu0 0
        %2840 = vmatpush1.bf16.msra.mxu0 %v2827
        %2841 = vmatprep.subr.bf16.mxu0 0
        %2842 = vmatpush1.bf16.msra.mxu0 %v2826
        %2843 = vmatprep.subr.bf16.mxu0 0
        %2844 = vmatpush1.bf16.msra.mxu0 %v2825
        %2845 = vmatprep.subr.bf16.mxu0 0
        %2846 = vmatpush1.bf16.msra.mxu0 %v2824
        %2847 = vmatprep.subr.bf16.mxu0 0
        %2848 = vmatpush1.bf16.msra.mxu0 %v2823
        %2849 = vmatprep.subr.bf16.mxu0 0
        %2850 = vmatpush1.bf16.msra.mxu0 %v2822
        %2851 = vmatprep.subr.bf16.mxu0 0
        %2852 = vmatpush1.bf16.msra.mxu0 %v2821
        %2853 = vmatprep.subr.bf16.mxu0 0
        %2854 = vmatpush2.bf16.msra.mxu0 0
        %2855 = vmatprep.subr.bf16.mxu0 0
        %2856 = vmatpush2.bf16.msra.mxu0 0
        %2857 = vmatprep.subr.bf16.mxu0 0
        %2858 = vmatpush2.bf16.msra.mxu0 0
        %2859 = vmatprep.subr.bf16.mxu0 0
        %2860 = vmatpush2.bf16.msra.mxu0 0
        %2861 = vmatprep.subr.bf16.mxu0 0
        %2862 = vmatpush2.bf16.msra.mxu0 0
        %2863 = vmatprep.subr.bf16.mxu0 0
        %2864 = vmatpush2.bf16.msra.mxu0 0
        %2865 = vmatprep.subr.bf16.mxu0 0
        %2866 = vmatpush2.bf16.msra.mxu0 0
        %2867 = vmatprep.subr.bf16.mxu0 0
        %2868 = vmatpush2.bf16.msra.mxu0 0
        %2869 = vmatprep.mubr.bf16.mxu0 0
        %2870 = vmatmul.mubr.bf16.gmra.mxu0 %v2764
        %v2871 = vpop.f32.mrf.mxu0
        %v2872 = vadd.f32 0.0, %v2871
        %v2873 = vpop.f32.mrf.mxu0
        %v2874 = vpop.f32.mrf.mxu0
        %v2875 = vadd.f32 0.0, %v2874
        %v2876 = vpop.f32.mrf.mxu0
        %2877 = vmatprep.mubr.bf16.mxu0 0
        %2878 = vmatmul.mubr.bf16.gmra.mxu0 %v2765
        %v2879 = vpop.f32.mrf.mxu0
        %v2880 = vadd.f32 0.0, %v2879
        %v2881 = vpop.f32.mrf.mxu0
        %v2882 = vpop.f32.mrf.mxu0
        %v2883 = vadd.f32 0.0, %v2882
        %v2884 = vpop.f32.mrf.mxu0
        %2885 = vmatprep.mubr.bf16.mxu0 0
        %2886 = vmatmul.mubr.bf16.gmra.mxu0 %v2766
        %v2887 = vpop.f32.mrf.mxu0
        %v2888 = vadd.f32 0.0, %v2887
        %v2889 = vpop.f32.mrf.mxu0
        %v2890 = vpop.f32.mrf.mxu0
        %v2891 = vadd.f32 0.0, %v2890
        %v2892 = vpop.f32.mrf.mxu0
        %2893 = vmatprep.mubr.bf16.mxu0 0
        %2894 = vmatmul.mubr.bf16.gmra.mxu0 %v2767
        %v2895 = vpop.f32.mrf.mxu0
        %v2896 = vadd.f32 0.0, %v2895
        %v2897 = vpop.f32.mrf.mxu0
        %v2898 = vpop.f32.mrf.mxu0
        %v2899 = vadd.f32 0.0, %v2898
        %v2900 = vpop.f32.mrf.mxu0
        %2901 = vmatprep.mubr.bf16.mxu0 0
        %2902 = vmatmul.mubr.bf16.gmra.mxu0 %v2768
        %v2903 = vpop.f32.mrf.mxu0
        %v2904 = vadd.f32 0.0, %v2903
        %v2905 = vpop.f32.mrf.mxu0
        %v2906 = vpop.f32.mrf.mxu0
        %v2907 = vadd.f32 0.0, %v2906
        %v2908 = vpop.f32.mrf.mxu0
        %2909 = vmatprep.mubr.bf16.mxu0 0
        %2910 = vmatmul.mubr.bf16.gmra.mxu0 %v2769
        %v2911 = vpop.f32.mrf.mxu0
        %v2912 = vadd.f32 0.0, %v2911
        %v2913 = vpop.f32.mrf.mxu0
        %v2914 = vpop.f32.mrf.mxu0
        %v2915 = vadd.f32 0.0, %v2914
        %v2916 = vpop.f32.mrf.mxu0
        %2917 = vmatprep.mubr.bf16.mxu0 0
        %2918 = vmatmul.mubr.bf16.gmra.mxu0 %v2770
        %v2919 = vpop.f32.mrf.mxu0
        %v2920 = vadd.f32 0.0, %v2919
        %v2921 = vpop.f32.mrf.mxu0
        %v2922 = vpop.f32.mrf.mxu0
        %v2923 = vadd.f32 0.0, %v2922
        %v2924 = vpop.f32.mrf.mxu0
        %2925 = vmatprep.mubr.bf16.mxu0 0
        %2926 = vmatmul.mubr.bf16.gmra.mxu0 %v2771
        %v2927 = vpop.f32.mrf.mxu0
        %v2928 = vadd.f32 0.0, %v2927
        %v2929 = vpop.f32.mrf.mxu0
        %v2930 = vpop.f32.mrf.mxu0
        %v2931 = vadd.f32 0.0, %v2930
        %v2932 = vpop.f32.mrf.mxu0
        %2933 = vdwg.mxu0
        %v2934 = vadd.f32 %v2732, %v2872
        %v2935 = vadd.f32 %v2733, %v2875
        %v2936 = vadd.f32 %v2734, %v2880
        %v2937 = vadd.f32 %v2735, %v2883
        %v2938 = vadd.f32 %v2736, %v2888
        %v2939 = vadd.f32 %v2737, %v2891
        %v2940 = vadd.f32 %v2738, %v2896
        %v2941 = vadd.f32 %v2739, %v2899
        %v2942 = vadd.f32 %v2740, %v2904
        %v2943 = vadd.f32 %v2741, %v2907
        %v2944 = vadd.f32 %v2742, %v2912
        %v2945 = vadd.f32 %v2743, %v2915
        %v2946 = vadd.f32 %v2744, %v2920
        %v2947 = vadd.f32 %v2745, %v2923
        %v2948 = vadd.f32 %v2746, %v2928
        %v2949 = vadd.f32 %v2747, %v2931
        %v2950 = vld [vmem:[%s1704] sm:$0xff]
        %v2951 = vld [vmem:[%s1704 + $0x10] sm:$0xff]
        %v2952 = vld [vmem:[%s1704 + $0x20] sm:$0xff]
        %v2953 = vld [vmem:[%s1704 + $0x30] sm:$0xff]
        %v2954 = vld [vmem:[%s1704 + $0x40] sm:$0xff]
        %v2955 = vld [vmem:[%s1704 + $0x50] sm:$0xff]
        %v2956 = vld [vmem:[%s1704 + $0x60] sm:$0xff]
        %v2957 = vld [vmem:[%s1704 + $0x70] sm:$0xff]
        %v2958 = vld [vmem:[%s1704 + $0x90] sm:$0xff]
        %v2959 = vld [vmem:[%s1704 + $0xa0] sm:$0xff]
        %v2960 = vld [vmem:[%s1704 + $0xb0] sm:$0xff]
        %v2961 = vld [vmem:[%s1704 + $0xc0] sm:$0xff]
        %v2962 = vld [vmem:[%s1704 + $0xd0] sm:$0xff]
        %v2963 = vld [vmem:[%s1704 + $0xe0] sm:$0xff]
        %v2964 = vld [vmem:[%s1704 + $0xf0] sm:$0xff]
        %v2965 = vld [vmem:[%s1704 + $0x100] sm:$0xff]
        %v2966 = vpack.c.bf16 %v2951, %v2950
        %v2967 = vpack.c.bf16 %v2953, %v2952
        %v2968 = vpack.c.bf16 %v2955, %v2954
        %v2969 = vpack.c.bf16 %v2957, %v2956
        %v2970 = vpack.c.bf16 %v2959, %v2958
        %v2971 = vpack.c.bf16 %v2961, %v2960
        %v2972 = vpack.c.bf16 %v2963, %v2962
        %v2973 = vpack.c.bf16 %v2965, %v2964
        %s2974 = scalar_lea.vmem %s3, 384
        %v2975 = vld [vmem:[%s2974] sm:$0xf]
        %v2976 = vld [vmem:[%s2974 + $0x4] sm:$0xf]
        %v2977 = vld [vmem:[%s2974 + $0x8] sm:$0xf]
        %v2978 = vld [vmem:[%s2974 + $0xc] sm:$0xf]
        %v2979 = vld [vmem:[%s2974 + $0x10] sm:$0xf]
        %v2980 = vld [vmem:[%s2974 + $0x14] sm:$0xf]
        %v2981 = vld [vmem:[%s2974 + $0x18] sm:$0xf]
        %v2982 = vld [vmem:[%s2974 + $0x1c] sm:$0xf]
        %v2983 = vld [vmem:[%s2974 + $0x20] sm:$0xf]
        %v2984 = vld [vmem:[%s2974 + $0x24] sm:$0xf]
        %v2985 = vld [vmem:[%s2974 + $0x28] sm:$0xf]
        %v2986 = vld [vmem:[%s2974 + $0x2c] sm:$0xf]
        %v2987 = vld [vmem:[%s2974 + $0x30] sm:$0xf]
        %v2988 = vld [vmem:[%s2974 + $0x34] sm:$0xf]
        %v2989 = vld [vmem:[%s2974 + $0x38] sm:$0xf]
        %v2990 = vld [vmem:[%s2974 + $0x3c] sm:$0xf]
        %v3007 = vunpack.c.l.b16 %v2975
        %v3008 = vunpack.c.l.b16 %v2976
        %v3009 = vunpack.c.l.b16 %v2977
        %v3010 = vunpack.c.l.b16 %v2978
        %v3011 = vunpack.c.l.b16 %v2979
        %v3012 = vunpack.c.l.b16 %v2980
        %v3013 = vunpack.c.l.b16 %v2981
        %v3014 = vunpack.c.l.b16 %v2982
        %v3015 = vunpack.c.l.b16 %v2983
        %v3016 = vunpack.c.l.b16 %v2984
        %v3017 = vunpack.c.l.b16 %v2985
        %v3018 = vunpack.c.l.b16 %v2986
        %v3019 = vunpack.c.l.b16 %v2987
        %v3020 = vunpack.c.l.b16 %v2988
        %v3021 = vunpack.c.l.b16 %v2989
        %v3022 = vunpack.c.l.b16 %v2990
        %v3023 = vpack.c.b16 %v3008, %v3007
        %v3024 = vpack.c.b16 %v3010, %v3009
        %v3025 = vpack.c.b16 %v3012, %v3011
        %v3026 = vpack.c.b16 %v3014, %v3013
        %v3027 = vpack.c.b16 %v3016, %v3015
        %v3028 = vpack.c.b16 %v3018, %v3017
        %v3029 = vpack.c.b16 %v3020, %v3019
        %v3030 = vpack.c.b16 %v3022, %v3021
        %3039 = vmatprep.subr.bf16.mxu0 0
        %3040 = vmatpush1.bf16.msra.mxu0 %v3030
        %3041 = vmatprep.subr.bf16.mxu0 0
        %3042 = vmatpush1.bf16.msra.mxu0 %v3029
        %3043 = vmatprep.subr.bf16.mxu0 0
        %3044 = vmatpush1.bf16.msra.mxu0 %v3028
        %3045 = vmatprep.subr.bf16.mxu0 0
        %3046 = vmatpush1.bf16.msra.mxu0 %v3027
        %3047 = vmatprep.subr.bf16.mxu0 0
        %3048 = vmatpush1.bf16.msra.mxu0 %v3026
        %3049 = vmatprep.subr.bf16.mxu0 0
        %3050 = vmatpush1.bf16.msra.mxu0 %v3025
        %3051 = vmatprep.subr.bf16.mxu0 0
        %3052 = vmatpush1.bf16.msra.mxu0 %v3024
        %3053 = vmatprep.subr.bf16.mxu0 0
        %3054 = vmatpush1.bf16.msra.mxu0 %v3023
        %3055 = vmatprep.subr.bf16.mxu0 0
        %3056 = vmatpush2.bf16.msra.mxu0 0
        %3057 = vmatprep.subr.bf16.mxu0 0
        %3058 = vmatpush2.bf16.msra.mxu0 0
        %3059 = vmatprep.subr.bf16.mxu0 0
        %3060 = vmatpush2.bf16.msra.mxu0 0
        %3061 = vmatprep.subr.bf16.mxu0 0
        %3062 = vmatpush2.bf16.msra.mxu0 0
        %3063 = vmatprep.subr.bf16.mxu0 0
        %3064 = vmatpush2.bf16.msra.mxu0 0
        %3065 = vmatprep.subr.bf16.mxu0 0
        %3066 = vmatpush2.bf16.msra.mxu0 0
        %3067 = vmatprep.subr.bf16.mxu0 0
        %3068 = vmatpush2.bf16.msra.mxu0 0
        %3069 = vmatprep.subr.bf16.mxu0 0
        %3070 = vmatpush2.bf16.msra.mxu0 0
        %3071 = vmatprep.mubr.bf16.mxu0 0
        %3072 = vmatmul.mubr.bf16.gmra.mxu0 %v2966
        %v3073 = vpop.f32.mrf.mxu0
        %v3074 = vadd.f32 0.0, %v3073
        %v3075 = vpop.f32.mrf.mxu0
        %v3076 = vpop.f32.mrf.mxu0
        %v3077 = vadd.f32 0.0, %v3076
        %v3078 = vpop.f32.mrf.mxu0
        %3079 = vmatprep.mubr.bf16.mxu0 0
        %3080 = vmatmul.mubr.bf16.gmra.mxu0 %v2967
        %v3081 = vpop.f32.mrf.mxu0
        %v3082 = vadd.f32 0.0, %v3081
        %v3083 = vpop.f32.mrf.mxu0
        %v3084 = vpop.f32.mrf.mxu0
        %v3085 = vadd.f32 0.0, %v3084
        %v3086 = vpop.f32.mrf.mxu0
        %3087 = vmatprep.mubr.bf16.mxu0 0
        %3088 = vmatmul.mubr.bf16.gmra.mxu0 %v2968
        %v3089 = vpop.f32.mrf.mxu0
        %v3090 = vadd.f32 0.0, %v3089
        %v3091 = vpop.f32.mrf.mxu0
        %v3092 = vpop.f32.mrf.mxu0
        %v3093 = vadd.f32 0.0, %v3092
        %v3094 = vpop.f32.mrf.mxu0
        %3095 = vmatprep.mubr.bf16.mxu0 0
        %3096 = vmatmul.mubr.bf16.gmra.mxu0 %v2969
        %v3097 = vpop.f32.mrf.mxu0
        %v3098 = vadd.f32 0.0, %v3097
        %v3099 = vpop.f32.mrf.mxu0
        %v3100 = vpop.f32.mrf.mxu0
        %v3101 = vadd.f32 0.0, %v3100
        %v3102 = vpop.f32.mrf.mxu0
        %3103 = vmatprep.mubr.bf16.mxu0 0
        %3104 = vmatmul.mubr.bf16.gmra.mxu0 %v2970
        %v3105 = vpop.f32.mrf.mxu0
        %v3106 = vadd.f32 0.0, %v3105
        %v3107 = vpop.f32.mrf.mxu0
        %v3108 = vpop.f32.mrf.mxu0
        %v3109 = vadd.f32 0.0, %v3108
        %v3110 = vpop.f32.mrf.mxu0
        %3111 = vmatprep.mubr.bf16.mxu0 0
        %3112 = vmatmul.mubr.bf16.gmra.mxu0 %v2971
        %v3113 = vpop.f32.mrf.mxu0
        %v3114 = vadd.f32 0.0, %v3113
        %v3115 = vpop.f32.mrf.mxu0
        %v3116 = vpop.f32.mrf.mxu0
        %v3117 = vadd.f32 0.0, %v3116
        %v3118 = vpop.f32.mrf.mxu0
        %3119 = vmatprep.mubr.bf16.mxu0 0
        %3120 = vmatmul.mubr.bf16.gmra.mxu0 %v2972
        %v3121 = vpop.f32.mrf.mxu0
        %v3122 = vadd.f32 0.0, %v3121
        %v3123 = vpop.f32.mrf.mxu0
        %v3124 = vpop.f32.mrf.mxu0
        %v3125 = vadd.f32 0.0, %v3124
        %v3126 = vpop.f32.mrf.mxu0
        %3127 = vmatprep.mubr.bf16.mxu0 0
        %3128 = vmatmul.mubr.bf16.gmra.mxu0 %v2973
        %v3129 = vpop.f32.mrf.mxu0
        %v3130 = vadd.f32 0.0, %v3129
        %v3131 = vpop.f32.mrf.mxu0
        %v3132 = vpop.f32.mrf.mxu0
        %v3133 = vadd.f32 0.0, %v3132
        %v3134 = vpop.f32.mrf.mxu0
        %3135 = vdwg.mxu0
        %v3136 = vadd.f32 %v2934, %v3074
        %v3137 = vadd.f32 %v2935, %v3077
        %v3138 = vadd.f32 %v2936, %v3082
        %v3139 = vadd.f32 %v2937, %v3085
        %v3140 = vadd.f32 %v2938, %v3090
        %v3141 = vadd.f32 %v2939, %v3093
        %v3142 = vadd.f32 %v2940, %v3098
        %v3143 = vadd.f32 %v2941, %v3101
        %v3144 = vadd.f32 %v2942, %v3106
        %v3145 = vadd.f32 %v2943, %v3109
        %v3146 = vadd.f32 %v2944, %v3114
        %v3147 = vadd.f32 %v2945, %v3117
        %v3148 = vadd.f32 %v2946, %v3122
        %v3149 = vadd.f32 %v2947, %v3125
        %v3150 = vadd.f32 %v2948, %v3130
        %v3151 = vadd.f32 %v2949, %v3133
        %v3152 = vld [vmem:[%s1721] sm:$0xff]
        %v3153 = vld [vmem:[%s1721 + $0x10] sm:$0xff]
        %v3154 = vld [vmem:[%s1721 + $0x20] sm:$0xff]
        %v3155 = vld [vmem:[%s1721 + $0x30] sm:$0xff]
        %v3156 = vld [vmem:[%s1721 + $0x40] sm:$0xff]
        %v3157 = vld [vmem:[%s1721 + $0x50] sm:$0xff]
        %v3158 = vld [vmem:[%s1721 + $0x60] sm:$0xff]
        %v3159 = vld [vmem:[%s1721 + $0x70] sm:$0xff]
        %v3160 = vld [vmem:[%s1721 + $0x90] sm:$0xff]
        %v3161 = vld [vmem:[%s1721 + $0xa0] sm:$0xff]
        %v3162 = vld [vmem:[%s1721 + $0xb0] sm:$0xff]
        %v3163 = vld [vmem:[%s1721 + $0xc0] sm:$0xff]
        %v3164 = vld [vmem:[%s1721 + $0xd0] sm:$0xff]
        %v3165 = vld [vmem:[%s1721 + $0xe0] sm:$0xff]
        %v3166 = vld [vmem:[%s1721 + $0xf0] sm:$0xff]
        %v3167 = vld [vmem:[%s1721 + $0x100] sm:$0xff]
        %v3168 = vpack.c.bf16 %v3153, %v3152
        %v3169 = vpack.c.bf16 %v3155, %v3154
        %v3170 = vpack.c.bf16 %v3157, %v3156
        %v3171 = vpack.c.bf16 %v3159, %v3158
        %v3172 = vpack.c.bf16 %v3161, %v3160
        %v3173 = vpack.c.bf16 %v3163, %v3162
        %v3174 = vpack.c.bf16 %v3165, %v3164
        %v3175 = vpack.c.bf16 %v3167, %v3166
        %s3176 = scalar_lea.vmem %s3, 448
        %v3177 = vld [vmem:[%s3176] sm:$0xf]
        %v3178 = vld [vmem:[%s3176 + $0x4] sm:$0xf]
        %v3179 = vld [vmem:[%s3176 + $0x8] sm:$0xf]
        %v3180 = vld [vmem:[%s3176 + $0xc] sm:$0xf]
        %v3181 = vld [vmem:[%s3176 + $0x10] sm:$0xf]
        %v3182 = vld [vmem:[%s3176 + $0x14] sm:$0xf]
        %v3183 = vld [vmem:[%s3176 + $0x18] sm:$0xf]
        %v3184 = vld [vmem:[%s3176 + $0x1c] sm:$0xf]
        %v3185 = vld [vmem:[%s3176 + $0x20] sm:$0xf]
        %v3186 = vld [vmem:[%s3176 + $0x24] sm:$0xf]
        %v3187 = vld [vmem:[%s3176 + $0x28] sm:$0xf]
        %v3188 = vld [vmem:[%s3176 + $0x2c] sm:$0xf]
        %v3189 = vld [vmem:[%s3176 + $0x30] sm:$0xf]
        %v3190 = vld [vmem:[%s3176 + $0x34] sm:$0xf]
        %v3191 = vld [vmem:[%s3176 + $0x38] sm:$0xf]
        %v3192 = vld [vmem:[%s3176 + $0x3c] sm:$0xf]
        %v3209 = vunpack.c.l.b16 %v3177
        %v3210 = vunpack.c.l.b16 %v3178
        %v3211 = vunpack.c.l.b16 %v3179
        %v3212 = vunpack.c.l.b16 %v3180
        %v3213 = vunpack.c.l.b16 %v3181
        %v3214 = vunpack.c.l.b16 %v3182
        %v3215 = vunpack.c.l.b16 %v3183
        %v3216 = vunpack.c.l.b16 %v3184
        %v3217 = vunpack.c.l.b16 %v3185
        %v3218 = vunpack.c.l.b16 %v3186
        %v3219 = vunpack.c.l.b16 %v3187
        %v3220 = vunpack.c.l.b16 %v3188
        %v3221 = vunpack.c.l.b16 %v3189
        %v3222 = vunpack.c.l.b16 %v3190
        %v3223 = vunpack.c.l.b16 %v3191
        %v3224 = vunpack.c.l.b16 %v3192
        %v3225 = vpack.c.b16 %v3210, %v3209
        %v3226 = vpack.c.b16 %v3212, %v3211
        %v3227 = vpack.c.b16 %v3214, %v3213
        %v3228 = vpack.c.b16 %v3216, %v3215
        %v3229 = vpack.c.b16 %v3218, %v3217
        %v3230 = vpack.c.b16 %v3220, %v3219
        %v3231 = vpack.c.b16 %v3222, %v3221
        %v3232 = vpack.c.b16 %v3224, %v3223
        %3241 = vmatprep.subr.bf16.mxu0 0
        %3242 = vmatpush1.bf16.msra.mxu0 %v3232
        %3243 = vmatprep.subr.bf16.mxu0 0
        %3244 = vmatpush1.bf16.msra.mxu0 %v3231
        %3245 = vmatprep.subr.bf16.mxu0 0
        %3246 = vmatpush1.bf16.msra.mxu0 %v3230
        %3247 = vmatprep.subr.bf16.mxu0 0
        %3248 = vmatpush1.bf16.msra.mxu0 %v3229
        %3249 = vmatprep.subr.bf16.mxu0 0
        %3250 = vmatpush1.bf16.msra.mxu0 %v3228
        %3251 = vmatprep.subr.bf16.mxu0 0
        %3252 = vmatpush1.bf16.msra.mxu0 %v3227
        %3253 = vmatprep.subr.bf16.mxu0 0
        %3254 = vmatpush1.bf16.msra.mxu0 %v3226
        %3255 = vmatprep.subr.bf16.mxu0 0
        %3256 = vmatpush1.bf16.msra.mxu0 %v3225
        %3257 = vmatprep.subr.bf16.mxu0 0
        %3258 = vmatpush2.bf16.msra.mxu0 0
        %3259 = vmatprep.subr.bf16.mxu0 0
        %3260 = vmatpush2.bf16.msra.mxu0 0
        %3261 = vmatprep.subr.bf16.mxu0 0
        %3262 = vmatpush2.bf16.msra.mxu0 0
        %3263 = vmatprep.subr.bf16.mxu0 0
        %3264 = vmatpush2.bf16.msra.mxu0 0
        %3265 = vmatprep.subr.bf16.mxu0 0
        %3266 = vmatpush2.bf16.msra.mxu0 0
        %3267 = vmatprep.subr.bf16.mxu0 0
        %3268 = vmatpush2.bf16.msra.mxu0 0
        %3269 = vmatprep.subr.bf16.mxu0 0
        %3270 = vmatpush2.bf16.msra.mxu0 0
        %3271 = vmatprep.subr.bf16.mxu0 0
        %3272 = vmatpush2.bf16.msra.mxu0 0
        %3273 = vmatprep.mubr.bf16.mxu0 0
        %3274 = vmatmul.mubr.bf16.gmra.mxu0 %v3168
        %v3275 = vpop.f32.mrf.mxu0
        %v3276 = vadd.f32 0.0, %v3275
        %v3277 = vpop.f32.mrf.mxu0
        %v3278 = vpop.f32.mrf.mxu0
        %v3279 = vadd.f32 0.0, %v3278
        %v3280 = vpop.f32.mrf.mxu0
        %3281 = vmatprep.mubr.bf16.mxu0 0
        %3282 = vmatmul.mubr.bf16.gmra.mxu0 %v3169
        %v3283 = vpop.f32.mrf.mxu0
        %v3284 = vadd.f32 0.0, %v3283
        %v3285 = vpop.f32.mrf.mxu0
        %v3286 = vpop.f32.mrf.mxu0
        %v3287 = vadd.f32 0.0, %v3286
        %v3288 = vpop.f32.mrf.mxu0
        %3289 = vmatprep.mubr.bf16.mxu0 0
        %3290 = vmatmul.mubr.bf16.gmra.mxu0 %v3170
        %v3291 = vpop.f32.mrf.mxu0
        %v3292 = vadd.f32 0.0, %v3291
        %v3293 = vpop.f32.mrf.mxu0
        %v3294 = vpop.f32.mrf.mxu0
        %v3295 = vadd.f32 0.0, %v3294
        %v3296 = vpop.f32.mrf.mxu0
        %3297 = vmatprep.mubr.bf16.mxu0 0
        %3298 = vmatmul.mubr.bf16.gmra.mxu0 %v3171
        %v3299 = vpop.f32.mrf.mxu0
        %v3300 = vadd.f32 0.0, %v3299
        %v3301 = vpop.f32.mrf.mxu0
        %v3302 = vpop.f32.mrf.mxu0
        %v3303 = vadd.f32 0.0, %v3302
        %v3304 = vpop.f32.mrf.mxu0
        %3305 = vmatprep.mubr.bf16.mxu0 0
        %3306 = vmatmul.mubr.bf16.gmra.mxu0 %v3172
        %v3307 = vpop.f32.mrf.mxu0
        %v3308 = vadd.f32 0.0, %v3307
        %v3309 = vpop.f32.mrf.mxu0
        %v3310 = vpop.f32.mrf.mxu0
        %v3311 = vadd.f32 0.0, %v3310
        %v3312 = vpop.f32.mrf.mxu0
        %3313 = vmatprep.mubr.bf16.mxu0 0
        %3314 = vmatmul.mubr.bf16.gmra.mxu0 %v3173
        %v3315 = vpop.f32.mrf.mxu0
        %v3316 = vadd.f32 0.0, %v3315
        %v3317 = vpop.f32.mrf.mxu0
        %v3318 = vpop.f32.mrf.mxu0
        %v3319 = vadd.f32 0.0, %v3318
        %v3320 = vpop.f32.mrf.mxu0
        %3321 = vmatprep.mubr.bf16.mxu0 0
        %3322 = vmatmul.mubr.bf16.gmra.mxu0 %v3174
        %v3323 = vpop.f32.mrf.mxu0
        %v3324 = vadd.f32 0.0, %v3323
        %v3325 = vpop.f32.mrf.mxu0
        %v3326 = vpop.f32.mrf.mxu0
        %v3327 = vadd.f32 0.0, %v3326
        %v3328 = vpop.f32.mrf.mxu0
        %3329 = vmatprep.mubr.bf16.mxu0 0
        %3330 = vmatmul.mubr.bf16.gmra.mxu0 %v3175
        %v3331 = vpop.f32.mrf.mxu0
        %v3332 = vadd.f32 0.0, %v3331
        %v3333 = vpop.f32.mrf.mxu0
        %v3334 = vpop.f32.mrf.mxu0
        %v3335 = vadd.f32 0.0, %v3334
        %v3336 = vpop.f32.mrf.mxu0
        %3337 = vdwg.mxu0
        %v3338 = vadd.f32 %v3136, %v3276
        %v3339 = vadd.f32 %v3137, %v3279
        %v3340 = vadd.f32 %v3138, %v3284
        %v3341 = vadd.f32 %v3139, %v3287
        %v3342 = vadd.f32 %v3140, %v3292
        %v3343 = vadd.f32 %v3141, %v3295
        %v3344 = vadd.f32 %v3142, %v3300
        %v3345 = vadd.f32 %v3143, %v3303
        %v3346 = vadd.f32 %v3144, %v3308
        %v3347 = vadd.f32 %v3145, %v3311
        %v3348 = vadd.f32 %v3146, %v3316
        %v3349 = vadd.f32 %v3147, %v3319
        %v3350 = vadd.f32 %v3148, %v3324
        %v3351 = vadd.f32 %v3149, %v3327
        %v3352 = vadd.f32 %v3150, %v3332
        %v3353 = vadd.f32 %v3151, %v3335
        %v3354 = vld [vmem:[%s1704 + $0x1] sm:$0xff]
        %v3355 = vld [vmem:[%s1704 + $0x11] sm:$0xff]
        %v3356 = vld [vmem:[%s1704 + $0x21] sm:$0xff]
        %v3357 = vld [vmem:[%s1704 + $0x31] sm:$0xff]
        %v3358 = vld [vmem:[%s1704 + $0x41] sm:$0xff]
        %v3359 = vld [vmem:[%s1704 + $0x51] sm:$0xff]
        %v3360 = vld [vmem:[%s1704 + $0x61] sm:$0xff]
        %v3361 = vld [vmem:[%s1704 + $0x71] sm:$0xff]
        %v3362 = vld [vmem:[%s1704 + $0x91] sm:$0xff]
        %v3363 = vld [vmem:[%s1704 + $0xa1] sm:$0xff]
        %v3364 = vld [vmem:[%s1704 + $0xb1] sm:$0xff]
        %v3365 = vld [vmem:[%s1704 + $0xc1] sm:$0xff]
        %v3366 = vld [vmem:[%s1704 + $0xd1] sm:$0xff]
        %v3367 = vld [vmem:[%s1704 + $0xe1] sm:$0xff]
        %v3368 = vld [vmem:[%s1704 + $0xf1] sm:$0xff]
        %v3369 = vld [vmem:[%s1704 + $0x101] sm:$0xff]
        %v3370 = vpack.c.bf16 %v3355, %v3354
        %v3371 = vpack.c.bf16 %v3357, %v3356
        %v3372 = vpack.c.bf16 %v3359, %v3358
        %v3373 = vpack.c.bf16 %v3361, %v3360
        %v3374 = vpack.c.bf16 %v3363, %v3362
        %v3375 = vpack.c.bf16 %v3365, %v3364
        %v3376 = vpack.c.bf16 %v3367, %v3366
        %v3377 = vpack.c.bf16 %v3369, %v3368
        %s3378 = scalar_lea.vmem %s3, 512
        %v3379 = vld [vmem:[%s3378] sm:$0xf]
        %v3380 = vld [vmem:[%s3378 + $0x4] sm:$0xf]
        %v3381 = vld [vmem:[%s3378 + $0x8] sm:$0xf]
        %v3382 = vld [vmem:[%s3378 + $0xc] sm:$0xf]
        %v3383 = vld [vmem:[%s3378 + $0x10] sm:$0xf]
        %v3384 = vld [vmem:[%s3378 + $0x14] sm:$0xf]
        %v3385 = vld [vmem:[%s3378 + $0x18] sm:$0xf]
        %v3386 = vld [vmem:[%s3378 + $0x1c] sm:$0xf]
        %v3387 = vld [vmem:[%s3378 + $0x20] sm:$0xf]
        %v3388 = vld [vmem:[%s3378 + $0x24] sm:$0xf]
        %v3389 = vld [vmem:[%s3378 + $0x28] sm:$0xf]
        %v3390 = vld [vmem:[%s3378 + $0x2c] sm:$0xf]
        %v3391 = vld [vmem:[%s3378 + $0x30] sm:$0xf]
        %v3392 = vld [vmem:[%s3378 + $0x34] sm:$0xf]
        %v3393 = vld [vmem:[%s3378 + $0x38] sm:$0xf]
        %v3394 = vld [vmem:[%s3378 + $0x3c] sm:$0xf]
        %v3411 = vunpack.c.l.b16 %v3379
        %v3412 = vunpack.c.l.b16 %v3380
        %v3413 = vunpack.c.l.b16 %v3381
        %v3414 = vunpack.c.l.b16 %v3382
        %v3415 = vunpack.c.l.b16 %v3383
        %v3416 = vunpack.c.l.b16 %v3384
        %v3417 = vunpack.c.l.b16 %v3385
        %v3418 = vunpack.c.l.b16 %v3386
        %v3419 = vunpack.c.l.b16 %v3387
        %v3420 = vunpack.c.l.b16 %v3388
        %v3421 = vunpack.c.l.b16 %v3389
        %v3422 = vunpack.c.l.b16 %v3390
        %v3423 = vunpack.c.l.b16 %v3391
        %v3424 = vunpack.c.l.b16 %v3392
        %v3425 = vunpack.c.l.b16 %v3393
        %v3426 = vunpack.c.l.b16 %v3394
        %v3427 = vpack.c.b16 %v3412, %v3411
        %v3428 = vpack.c.b16 %v3414, %v3413
        %v3429 = vpack.c.b16 %v3416, %v3415
        %v3430 = vpack.c.b16 %v3418, %v3417
        %v3431 = vpack.c.b16 %v3420, %v3419
        %v3432 = vpack.c.b16 %v3422, %v3421
        %v3433 = vpack.c.b16 %v3424, %v3423
        %v3434 = vpack.c.b16 %v3426, %v3425
        %3443 = vmatprep.subr.bf16.mxu0 0
        %3444 = vmatpush1.bf16.msra.mxu0 %v3434
        %3445 = vmatprep.subr.bf16.mxu0 0
        %3446 = vmatpush1.bf16.msra.mxu0 %v3433
        %3447 = vmatprep.subr.bf16.mxu0 0
        %3448 = vmatpush1.bf16.msra.mxu0 %v3432
        %3449 = vmatprep.subr.bf16.mxu0 0
        %3450 = vmatpush1.bf16.msra.mxu0 %v3431
        %3451 = vmatprep.subr.bf16.mxu0 0
        %3452 = vmatpush1.bf16.msra.mxu0 %v3430
        %3453 = vmatprep.subr.bf16.mxu0 0
        %3454 = vmatpush1.bf16.msra.mxu0 %v3429
        %3455 = vmatprep.subr.bf16.mxu0 0
        %3456 = vmatpush1.bf16.msra.mxu0 %v3428
        %3457 = vmatprep.subr.bf16.mxu0 0
        %3458 = vmatpush1.bf16.msra.mxu0 %v3427
        %3459 = vmatprep.subr.bf16.mxu0 0
        %3460 = vmatpush2.bf16.msra.mxu0 0
        %3461 = vmatprep.subr.bf16.mxu0 0
        %3462 = vmatpush2.bf16.msra.mxu0 0
        %3463 = vmatprep.subr.bf16.mxu0 0
        %3464 = vmatpush2.bf16.msra.mxu0 0
        %3465 = vmatprep.subr.bf16.mxu0 0
        %3466 = vmatpush2.bf16.msra.mxu0 0
        %3467 = vmatprep.subr.bf16.mxu0 0
        %3468 = vmatpush2.bf16.msra.mxu0 0
        %3469 = vmatprep.subr.bf16.mxu0 0
        %3470 = vmatpush2.bf16.msra.mxu0 0
        %3471 = vmatprep.subr.bf16.mxu0 0
        %3472 = vmatpush2.bf16.msra.mxu0 0
        %3473 = vmatprep.subr.bf16.mxu0 0
        %3474 = vmatpush2.bf16.msra.mxu0 0
        %3475 = vmatprep.mubr.bf16.mxu0 0
        %3476 = vmatmul.mubr.bf16.gmra.mxu0 %v3370
        %v3477 = vpop.f32.mrf.mxu0
        %v3478 = vadd.f32 0.0, %v3477
        %v3479 = vpop.f32.mrf.mxu0
        %v3480 = vpop.f32.mrf.mxu0
        %v3481 = vadd.f32 0.0, %v3480
        %v3482 = vpop.f32.mrf.mxu0
        %3483 = vmatprep.mubr.bf16.mxu0 0
        %3484 = vmatmul.mubr.bf16.gmra.mxu0 %v3371
        %v3485 = vpop.f32.mrf.mxu0
        %v3486 = vadd.f32 0.0, %v3485
        %v3487 = vpop.f32.mrf.mxu0
        %v3488 = vpop.f32.mrf.mxu0
        %v3489 = vadd.f32 0.0, %v3488
        %v3490 = vpop.f32.mrf.mxu0
        %3491 = vmatprep.mubr.bf16.mxu0 0
        %3492 = vmatmul.mubr.bf16.gmra.mxu0 %v3372
        %v3493 = vpop.f32.mrf.mxu0
        %v3494 = vadd.f32 0.0, %v3493
        %v3495 = vpop.f32.mrf.mxu0
        %v3496 = vpop.f32.mrf.mxu0
        %v3497 = vadd.f32 0.0, %v3496
        %v3498 = vpop.f32.mrf.mxu0
        %3499 = vmatprep.mubr.bf16.mxu0 0
        %3500 = vmatmul.mubr.bf16.gmra.mxu0 %v3373
        %v3501 = vpop.f32.mrf.mxu0
        %v3502 = vadd.f32 0.0, %v3501
        %v3503 = vpop.f32.mrf.mxu0
        %v3504 = vpop.f32.mrf.mxu0
        %v3505 = vadd.f32 0.0, %v3504
        %v3506 = vpop.f32.mrf.mxu0
        %3507 = vmatprep.mubr.bf16.mxu0 0
        %3508 = vmatmul.mubr.bf16.gmra.mxu0 %v3374
        %v3509 = vpop.f32.mrf.mxu0
        %v3510 = vadd.f32 0.0, %v3509
        %v3511 = vpop.f32.mrf.mxu0
        %v3512 = vpop.f32.mrf.mxu0
        %v3513 = vadd.f32 0.0, %v3512
        %v3514 = vpop.f32.mrf.mxu0
        %3515 = vmatprep.mubr.bf16.mxu0 0
        %3516 = vmatmul.mubr.bf16.gmra.mxu0 %v3375
        %v3517 = vpop.f32.mrf.mxu0
        %v3518 = vadd.f32 0.0, %v3517
        %v3519 = vpop.f32.mrf.mxu0
        %v3520 = vpop.f32.mrf.mxu0
        %v3521 = vadd.f32 0.0, %v3520
        %v3522 = vpop.f32.mrf.mxu0
        %3523 = vmatprep.mubr.bf16.mxu0 0
        %3524 = vmatmul.mubr.bf16.gmra.mxu0 %v3376
        %v3525 = vpop.f32.mrf.mxu0
        %v3526 = vadd.f32 0.0, %v3525
        %v3527 = vpop.f32.mrf.mxu0
        %v3528 = vpop.f32.mrf.mxu0
        %v3529 = vadd.f32 0.0, %v3528
        %v3530 = vpop.f32.mrf.mxu0
        %3531 = vmatprep.mubr.bf16.mxu0 0
        %3532 = vmatmul.mubr.bf16.gmra.mxu0 %v3377
        %v3533 = vpop.f32.mrf.mxu0
        %v3534 = vadd.f32 0.0, %v3533
        %v3535 = vpop.f32.mrf.mxu0
        %v3536 = vpop.f32.mrf.mxu0
        %v3537 = vadd.f32 0.0, %v3536
        %v3538 = vpop.f32.mrf.mxu0
        %3539 = vdwg.mxu0
        %v3540 = vadd.f32 %v3338, %v3478
        %v3541 = vadd.f32 %v3339, %v3481
        %v3542 = vadd.f32 %v3340, %v3486
        %v3543 = vadd.f32 %v3341, %v3489
        %v3544 = vadd.f32 %v3342, %v3494
        %v3545 = vadd.f32 %v3343, %v3497
        %v3546 = vadd.f32 %v3344, %v3502
        %v3547 = vadd.f32 %v3345, %v3505
        %v3548 = vadd.f32 %v3346, %v3510
        %v3549 = vadd.f32 %v3347, %v3513
        %v3550 = vadd.f32 %v3348, %v3518
        %v3551 = vadd.f32 %v3349, %v3521
        %v3552 = vadd.f32 %v3350, %v3526
        %v3553 = vadd.f32 %v3351, %v3529
        %v3554 = vadd.f32 %v3352, %v3534
        %v3555 = vadd.f32 %v3353, %v3537
        %v3556 = vld [vmem:[%s4] sm:$0x1]
        %v3558 = vlaneseq
        %v3559 = vshrl.u32 %v3558, 7
        %v3560 = vsub.s32 0, %v3559
        %v3561 = vrot.slane %v3556, %v3560
        %v3563 = vadd.f32 %v3540, %v3561
        %v3564 = vadd.f32 %v3541, %v3561
        %v3565 = vadd.f32 %v3542, %v3561
        %v3566 = vadd.f32 %v3543, %v3561
        %v3567 = vadd.f32 %v3544, %v3561
        %v3568 = vadd.f32 %v3545, %v3561
        %v3569 = vadd.f32 %v3546, %v3561
        %v3570 = vadd.f32 %v3547, %v3561
        %v3571 = vadd.f32 %v3548, %v3561
        %v3572 = vadd.f32 %v3549, %v3561
        %v3573 = vadd.f32 %v3550, %v3561
        %v3574 = vadd.f32 %v3551, %v3561
        %v3575 = vadd.f32 %v3552, %v3561
        %v3576 = vadd.f32 %v3553, %v3561
        %v3577 = vadd.f32 %v3554, %v3561
        %v3578 = vadd.f32 %v3555, %v3561
        %vm3579 = vcmp.gt.f32.partialorder %v3563, 0.0
        %vm3580 = vcmp.gt.f32.partialorder %v3564, 0.0
        %vm3581 = vcmp.gt.f32.partialorder %v3565, 0.0
        %vm3582 = vcmp.gt.f32.partialorder %v3566, 0.0
        %vm3583 = vcmp.gt.f32.partialorder %v3567, 0.0
        %vm3584 = vcmp.gt.f32.partialorder %v3568, 0.0
        %vm3585 = vcmp.gt.f32.partialorder %v3569, 0.0
        %vm3586 = vcmp.gt.f32.partialorder %v3570, 0.0
        %vm3587 = vcmp.gt.f32.partialorder %v3571, 0.0
        %vm3588 = vcmp.gt.f32.partialorder %v3572, 0.0
        %vm3589 = vcmp.gt.f32.partialorder %v3573, 0.0
        %vm3590 = vcmp.gt.f32.partialorder %v3574, 0.0
        %vm3591 = vcmp.gt.f32.partialorder %v3575, 0.0
        %vm3592 = vcmp.gt.f32.partialorder %v3576, 0.0
        %vm3593 = vcmp.gt.f32.partialorder %v3577, 0.0
        %vm3594 = vcmp.gt.f32.partialorder %v3578, 0.0
        %v3595 = vmin.f32 %v3563, 0.0
        %v3596 = vmin.f32 %v3564, 0.0
        %v3597 = vmin.f32 %v3565, 0.0
        %v3598 = vmin.f32 %v3566, 0.0
        %v3599 = vmin.f32 %v3567, 0.0
        %v3600 = vmin.f32 %v3568, 0.0
        %v3601 = vmin.f32 %v3569, 0.0
        %v3602 = vmin.f32 %v3570, 0.0
        %v3603 = vmin.f32 %v3571, 0.0
        %v3604 = vmin.f32 %v3572, 0.0
        %v3605 = vmin.f32 %v3573, 0.0
        %v3606 = vmin.f32 %v3574, 0.0
        %v3607 = vmin.f32 %v3575, 0.0
        %v3608 = vmin.f32 %v3576, 0.0
        %v3609 = vmin.f32 %v3577, 0.0
        %v3610 = vmin.f32 %v3578, 0.0
        %v3611 = vmul.f32 %v3595, 1.442695
        %v3612 = vpow.pop %v3611
        %v3613 = vmul.f32 %v3596, 1.442695
        %v3614 = vpow.pop %v3613
        %v3615 = vmul.f32 %v3597, 1.442695
        %v3616 = vpow.pop %v3615
        %v3617 = vmul.f32 %v3598, 1.442695
        %v3618 = vpow.pop %v3617
        %v3619 = vmul.f32 %v3599, 1.442695
        %v3620 = vpow.pop %v3619
        %v3621 = vmul.f32 %v3600, 1.442695
        %v3622 = vpow.pop %v3621
        %v3623 = vmul.f32 %v3601, 1.442695
        %v3624 = vpow.pop %v3623
        %v3625 = vmul.f32 %v3602, 1.442695
        %v3626 = vpow.pop %v3625
        %v3627 = vmul.f32 %v3603, 1.442695
        %v3628 = vpow.pop %v3627
        %v3629 = vmul.f32 %v3604, 1.442695
        %v3630 = vpow.pop %v3629
        %v3631 = vmul.f32 %v3605, 1.442695
        %v3632 = vpow.pop %v3631
        %v3633 = vmul.f32 %v3606, 1.442695
        %v3634 = vpow.pop %v3633
        %v3635 = vmul.f32 %v3607, 1.442695
        %v3636 = vpow.pop %v3635
        %v3637 = vmul.f32 %v3608, 1.442695
        %v3638 = vpow.pop %v3637
        %v3639 = vmul.f32 %v3609, 1.442695
        %v3640 = vpow.pop %v3639
        %v3641 = vmul.f32 %v3610, 1.442695
        %v3642 = vpow.pop %v3641
        %v3643 = vsub.f32 %v3612, 1.0
        %v3644 = vsub.f32 %v3614, 1.0
        %v3645 = vsub.f32 %v3616, 1.0
        %v3646 = vsub.f32 %v3618, 1.0
        %v3647 = vsub.f32 %v3620, 1.0
        %v3648 = vsub.f32 %v3622, 1.0
        %v3649 = vsub.f32 %v3624, 1.0
        %v3650 = vsub.f32 %v3626, 1.0
        %v3651 = vsub.f32 %v3628, 1.0
        %v3652 = vsub.f32 %v3630, 1.0
        %v3653 = vsub.f32 %v3632, 1.0
        %v3654 = vsub.f32 %v3634, 1.0
        %v3655 = vsub.f32 %v3636, 1.0
        %v3656 = vsub.f32 %v3638, 1.0
        %v3657 = vsub.f32 %v3640, 1.0
        %v3658 = vsub.f32 %v3642, 1.0
        %v3659 = vsel %vm3579, %v3563, %v3643
        %v3660 = vsel %vm3580, %v3564, %v3644
        %v3661 = vsel %vm3581, %v3565, %v3645
        %v3662 = vsel %vm3582, %v3566, %v3646
        %v3663 = vsel %vm3583, %v3567, %v3647
        %v3664 = vsel %vm3584, %v3568, %v3648
        %v3665 = vsel %vm3585, %v3569, %v3649
        %v3666 = vsel %vm3586, %v3570, %v3650
        %v3667 = vsel %vm3587, %v3571, %v3651
        %v3668 = vsel %vm3588, %v3572, %v3652
        %v3669 = vsel %vm3589, %v3573, %v3653
        %v3670 = vsel %vm3590, %v3574, %v3654
        %v3671 = vsel %vm3591, %v3575, %v3655
        %v3672 = vsel %vm3592, %v3576, %v3656
        %v3673 = vsel %vm3593, %v3577, %v3657
        %v3674 = vsel %vm3594, %v3578, %v3658
        %v3675 = vmax.f32 %v3659, %v3660
        %v3676 = vmax.f32 %v3661, %v3662
        %v3677 = vmax.f32 %v3663, %v3664
        %v3678 = vmax.f32 %v3665, %v3666
        %v3679 = vmax.f32 %v3667, %v3668
        %v3680 = vmax.f32 %v3669, %v3670
        %v3681 = vmax.f32 %v3671, %v3672
        %v3682 = vmax.f32 %v3673, %v3674
        %v3691 = vcombine.high %v3675, %v3675
        %v3693 = vunpack.c.l.s4 1983009808
        %v3694 = vunpack.c.0.s8 %v3693
        %v3695 = vlaneseq
        %v3696 = vshrl.u32 %v3695, 7
        %v3697 = vsub.s32 %v3694, %v3696
        %v3698 = vrot.slane %v3675, %v3697
        %v3700 = vunpack.c.l.s4 1983009808
        %v3701 = vunpack.c.0.s8 %v3700
        %v3702 = vlaneseq
        %v3703 = vshrl.u32 %v3702, 7
        %v3704 = vsub.s32 %v3701, %v3703
        %v3705 = vrot.slane %v3691, %v3704
        %v3706 = vcombine.high %v3698, %v3698
        %v3707 = vcombine.high %v3705, %v3705
        %v3708 = vcombine.high %v3676, %v3676
        %v3710 = vunpack.c.l.s4 1983009808
        %v3711 = vunpack.c.0.s8 %v3710
        %v3712 = vlaneseq
        %v3713 = vshrl.u32 %v3712, 7
        %v3714 = vsub.s32 %v3711, %v3713
        %v3715 = vrot.slane %v3676, %v3714
        %v3717 = vunpack.c.l.s4 1983009808
        %v3718 = vunpack.c.0.s8 %v3717
        %v3719 = vlaneseq
        %v3720 = vshrl.u32 %v3719, 7
        %v3721 = vsub.s32 %v3718, %v3720
        %v3722 = vrot.slane %v3708, %v3721
        %v3723 = vcombine.high %v3715, %v3715
        %v3724 = vcombine.high %v3722, %v3722
        %v3725 = vcombine.high %v3677, %v3677
        %v3727 = vunpack.c.l.s4 1983009808
        %v3728 = vunpack.c.0.s8 %v3727
        %v3729 = vlaneseq
        %v3730 = vshrl.u32 %v3729, 7
        %v3731 = vsub.s32 %v3728, %v3730
        %v3732 = vrot.slane %v3677, %v3731
        %v3734 = vunpack.c.l.s4 1983009808
        %v3735 = vunpack.c.0.s8 %v3734
        %v3736 = vlaneseq
        %v3737 = vshrl.u32 %v3736, 7
        %v3738 = vsub.s32 %v3735, %v3737
        %v3739 = vrot.slane %v3725, %v3738
        %v3740 = vcombine.high %v3732, %v3732
        %v3741 = vcombine.high %v3739, %v3739
        %v3742 = vcombine.high %v3678, %v3678
        %v3744 = vunpack.c.l.s4 1983009808
        %v3745 = vunpack.c.0.s8 %v3744
        %v3746 = vlaneseq
        %v3747 = vshrl.u32 %v3746, 7
        %v3748 = vsub.s32 %v3745, %v3747
        %v3749 = vrot.slane %v3678, %v3748
        %v3751 = vunpack.c.l.s4 1983009808
        %v3752 = vunpack.c.0.s8 %v3751
        %v3753 = vlaneseq
        %v3754 = vshrl.u32 %v3753, 7
        %v3755 = vsub.s32 %v3752, %v3754
        %v3756 = vrot.slane %v3742, %v3755
        %v3757 = vcombine.high %v3749, %v3749
        %v3758 = vcombine.high %v3756, %v3756
        %v3759 = vcombine.high %v3679, %v3679
        %v3761 = vunpack.c.l.s4 1983009808
        %v3762 = vunpack.c.0.s8 %v3761
        %v3763 = vlaneseq
        %v3764 = vshrl.u32 %v3763, 7
        %v3765 = vsub.s32 %v3762, %v3764
        %v3766 = vrot.slane %v3679, %v3765
        %v3768 = vunpack.c.l.s4 1983009808
        %v3769 = vunpack.c.0.s8 %v3768
        %v3770 = vlaneseq
        %v3771 = vshrl.u32 %v3770, 7
        %v3772 = vsub.s32 %v3769, %v3771
        %v3773 = vrot.slane %v3759, %v3772
        %v3774 = vcombine.high %v3766, %v3766
        %v3775 = vcombine.high %v3773, %v3773
        %v3776 = vcombine.high %v3680, %v3680
        %v3778 = vunpack.c.l.s4 1983009808
        %v3779 = vunpack.c.0.s8 %v3778
        %v3780 = vlaneseq
        %v3781 = vshrl.u32 %v3780, 7
        %v3782 = vsub.s32 %v3779, %v3781
        %v3783 = vrot.slane %v3680, %v3782
        %v3785 = vunpack.c.l.s4 1983009808
        %v3786 = vunpack.c.0.s8 %v3785
        %v3787 = vlaneseq
        %v3788 = vshrl.u32 %v3787, 7
        %v3789 = vsub.s32 %v3786, %v3788
        %v3790 = vrot.slane %v3776, %v3789
        %v3791 = vcombine.high %v3783, %v3783
        %v3792 = vcombine.high %v3790, %v3790
        %v3793 = vcombine.high %v3681, %v3681
        %v3795 = vunpack.c.l.s4 1983009808
        %v3796 = vunpack.c.0.s8 %v3795
        %v3797 = vlaneseq
        %v3798 = vshrl.u32 %v3797, 7
        %v3799 = vsub.s32 %v3796, %v3798
        %v3800 = vrot.slane %v3681, %v3799
        %v3802 = vunpack.c.l.s4 1983009808
        %v3803 = vunpack.c.0.s8 %v3802
        %v3804 = vlaneseq
        %v3805 = vshrl.u32 %v3804, 7
        %v3806 = vsub.s32 %v3803, %v3805
        %v3807 = vrot.slane %v3793, %v3806
        %v3808 = vcombine.high %v3800, %v3800
        %v3809 = vcombine.high %v3807, %v3807
        %v3810 = vcombine.high %v3682, %v3682
        %v3812 = vunpack.c.l.s4 1983009808
        %v3813 = vunpack.c.0.s8 %v3812
        %v3814 = vlaneseq
        %v3815 = vshrl.u32 %v3814, 7
        %v3816 = vsub.s32 %v3813, %v3815
        %v3817 = vrot.slane %v3682, %v3816
        %v3819 = vunpack.c.l.s4 1983009808
        %v3820 = vunpack.c.0.s8 %v3819
        %v3821 = vlaneseq
        %v3822 = vshrl.u32 %v3821, 7
        %v3823 = vsub.s32 %v3820, %v3822
        %v3824 = vrot.slane %v3810, %v3823
        %v3825 = vcombine.high %v3817, %v3817
        %v3826 = vcombine.high %v3824, %v3824
        %v3859 = vsel %vm1027, %v3698, -inf
        %v3860 = vrot.slane %v3859, 4
        %v3861 = vmax.f32 %v3859, %v3860
        %v3862 = vrot.slane %v3861, 2
        %v3863 = vmax.f32 %v3861, %v3862
        %v3864 = vrot.slane %v3863, 1
        %v3865 = vmax.f32 %v3863, %v3864
        %v3866 = vsel %vm1027, %v3706, -inf
        %v3867 = vrot.slane %v3866, 4
        %v3868 = vmax.f32 %v3866, %v3867
        %v3869 = vrot.slane %v3868, 2
        %v3870 = vmax.f32 %v3868, %v3869
        %v3871 = vrot.slane %v3870, 1
        %v3872 = vmax.f32 %v3870, %v3871
        %v3873 = vsel %vm1027, %v3705, -inf
        %v3874 = vrot.slane %v3873, 4
        %v3875 = vmax.f32 %v3873, %v3874
        %v3876 = vrot.slane %v3875, 2
        %v3877 = vmax.f32 %v3875, %v3876
        %v3878 = vrot.slane %v3877, 1
        %v3879 = vmax.f32 %v3877, %v3878
        %v3880 = vsel %vm1027, %v3707, -inf
        %v3881 = vrot.slane %v3880, 4
        %v3882 = vmax.f32 %v3880, %v3881
        %v3883 = vrot.slane %v3882, 2
        %v3884 = vmax.f32 %v3882, %v3883
        %v3885 = vrot.slane %v3884, 1
        %v3886 = vmax.f32 %v3884, %v3885
        %v3887 = vsel %vm1027, %v3715, -inf
        %v3888 = vrot.slane %v3887, 4
        %v3889 = vmax.f32 %v3887, %v3888
        %v3890 = vrot.slane %v3889, 2
        %v3891 = vmax.f32 %v3889, %v3890
        %v3892 = vrot.slane %v3891, 1
        %v3893 = vmax.f32 %v3891, %v3892
        %v3894 = vsel %vm1027, %v3723, -inf
        %v3895 = vrot.slane %v3894, 4
        %v3896 = vmax.f32 %v3894, %v3895
        %v3897 = vrot.slane %v3896, 2
        %v3898 = vmax.f32 %v3896, %v3897
        %v3899 = vrot.slane %v3898, 1
        %v3900 = vmax.f32 %v3898, %v3899
        %v3901 = vsel %vm1027, %v3722, -inf
        %v3902 = vrot.slane %v3901, 4
        %v3903 = vmax.f32 %v3901, %v3902
        %v3904 = vrot.slane %v3903, 2
        %v3905 = vmax.f32 %v3903, %v3904
        %v3906 = vrot.slane %v3905, 1
        %v3907 = vmax.f32 %v3905, %v3906
        %v3908 = vsel %vm1027, %v3724, -inf
        %v3909 = vrot.slane %v3908, 4
        %v3910 = vmax.f32 %v3908, %v3909
        %v3911 = vrot.slane %v3910, 2
        %v3912 = vmax.f32 %v3910, %v3911
        %v3913 = vrot.slane %v3912, 1
        %v3914 = vmax.f32 %v3912, %v3913
        %v3915 = vsel %vm1027, %v3732, -inf
        %v3916 = vrot.slane %v3915, 4
        %v3917 = vmax.f32 %v3915, %v3916
        %v3918 = vrot.slane %v3917, 2
        %v3919 = vmax.f32 %v3917, %v3918
        %v3920 = vrot.slane %v3919, 1
        %v3921 = vmax.f32 %v3919, %v3920
        %v3922 = vsel %vm1027, %v3740, -inf
        %v3923 = vrot.slane %v3922, 4
        %v3924 = vmax.f32 %v3922, %v3923
        %v3925 = vrot.slane %v3924, 2
        %v3926 = vmax.f32 %v3924, %v3925
        %v3927 = vrot.slane %v3926, 1
        %v3928 = vmax.f32 %v3926, %v3927
        %v3929 = vsel %vm1027, %v3739, -inf
        %v3930 = vrot.slane %v3929, 4
        %v3931 = vmax.f32 %v3929, %v3930
        %v3932 = vrot.slane %v3931, 2
        %v3933 = vmax.f32 %v3931, %v3932
        %v3934 = vrot.slane %v3933, 1
        %v3935 = vmax.f32 %v3933, %v3934
        %v3936 = vsel %vm1027, %v3741, -inf
        %v3937 = vrot.slane %v3936, 4
        %v3938 = vmax.f32 %v3936, %v3937
        %v3939 = vrot.slane %v3938, 2
        %v3940 = vmax.f32 %v3938, %v3939
        %v3941 = vrot.slane %v3940, 1
        %v3942 = vmax.f32 %v3940, %v3941
        %v3943 = vsel %vm1027, %v3749, -inf
        %v3944 = vrot.slane %v3943, 4
        %v3945 = vmax.f32 %v3943, %v3944
        %v3946 = vrot.slane %v3945, 2
        %v3947 = vmax.f32 %v3945, %v3946
        %v3948 = vrot.slane %v3947, 1
        %v3949 = vmax.f32 %v3947, %v3948
        %v3950 = vsel %vm1027, %v3757, -inf
        %v3951 = vrot.slane %v3950, 4
        %v3952 = vmax.f32 %v3950, %v3951
        %v3953 = vrot.slane %v3952, 2
        %v3954 = vmax.f32 %v3952, %v3953
        %v3955 = vrot.slane %v3954, 1
        %v3956 = vmax.f32 %v3954, %v3955
        %v3957 = vsel %vm1027, %v3756, -inf
        %v3958 = vrot.slane %v3957, 4
        %v3959 = vmax.f32 %v3957, %v3958
        %v3960 = vrot.slane %v3959, 2
        %v3961 = vmax.f32 %v3959, %v3960
        %v3962 = vrot.slane %v3961, 1
        %v3963 = vmax.f32 %v3961, %v3962
        %v3964 = vsel %vm1027, %v3758, -inf
        %v3965 = vrot.slane %v3964, 4
        %v3966 = vmax.f32 %v3964, %v3965
        %v3967 = vrot.slane %v3966, 2
        %v3968 = vmax.f32 %v3966, %v3967
        %v3969 = vrot.slane %v3968, 1
        %v3970 = vmax.f32 %v3968, %v3969
        %v3971 = vsel %vm1027, %v3766, -inf
        %v3972 = vrot.slane %v3971, 4
        %v3973 = vmax.f32 %v3971, %v3972
        %v3974 = vrot.slane %v3973, 2
        %v3975 = vmax.f32 %v3973, %v3974
        %v3976 = vrot.slane %v3975, 1
        %v3977 = vmax.f32 %v3975, %v3976
        %v3978 = vsel %vm1027, %v3774, -inf
        %v3979 = vrot.slane %v3978, 4
        %v3980 = vmax.f32 %v3978, %v3979
        %v3981 = vrot.slane %v3980, 2
        %v3982 = vmax.f32 %v3980, %v3981
        %v3983 = vrot.slane %v3982, 1
        %v3984 = vmax.f32 %v3982, %v3983
        %v3985 = vsel %vm1027, %v3773, -inf
        %v3986 = vrot.slane %v3985, 4
        %v3987 = vmax.f32 %v3985, %v3986
        %v3988 = vrot.slane %v3987, 2
        %v3989 = vmax.f32 %v3987, %v3988
        %v3990 = vrot.slane %v3989, 1
        %v3991 = vmax.f32 %v3989, %v3990
        %v3992 = vsel %vm1027, %v3775, -inf
        %v3993 = vrot.slane %v3992, 4
        %v3994 = vmax.f32 %v3992, %v3993
        %v3995 = vrot.slane %v3994, 2
        %v3996 = vmax.f32 %v3994, %v3995
        %v3997 = vrot.slane %v3996, 1
        %v3998 = vmax.f32 %v3996, %v3997
        %v3999 = vsel %vm1027, %v3783, -inf
        %v4000 = vrot.slane %v3999, 4
        %v4001 = vmax.f32 %v3999, %v4000
        %v4002 = vrot.slane %v4001, 2
        %v4003 = vmax.f32 %v4001, %v4002
        %v4004 = vrot.slane %v4003, 1
        %v4005 = vmax.f32 %v4003, %v4004
        %v4006 = vsel %vm1027, %v3791, -inf
        %v4007 = vrot.slane %v4006, 4
        %v4008 = vmax.f32 %v4006, %v4007
        %v4009 = vrot.slane %v4008, 2
        %v4010 = vmax.f32 %v4008, %v4009
        %v4011 = vrot.slane %v4010, 1
        %v4012 = vmax.f32 %v4010, %v4011
        %v4013 = vsel %vm1027, %v3790, -inf
        %v4014 = vrot.slane %v4013, 4
        %v4015 = vmax.f32 %v4013, %v4014
        %v4016 = vrot.slane %v4015, 2
        %v4017 = vmax.f32 %v4015, %v4016
        %v4018 = vrot.slane %v4017, 1
        %v4019 = vmax.f32 %v4017, %v4018
        %v4020 = vsel %vm1027, %v3792, -inf
        %v4021 = vrot.slane %v4020, 4
        %v4022 = vmax.f32 %v4020, %v4021
        %v4023 = vrot.slane %v4022, 2
        %v4024 = vmax.f32 %v4022, %v4023
        %v4025 = vrot.slane %v4024, 1
        %v4026 = vmax.f32 %v4024, %v4025
        %v4027 = vsel %vm1027, %v3800, -inf
        %v4028 = vrot.slane %v4027, 4
        %v4029 = vmax.f32 %v4027, %v4028
        %v4030 = vrot.slane %v4029, 2
        %v4031 = vmax.f32 %v4029, %v4030
        %v4032 = vrot.slane %v4031, 1
        %v4033 = vmax.f32 %v4031, %v4032
        %v4034 = vsel %vm1027, %v3808, -inf
        %v4035 = vrot.slane %v4034, 4
        %v4036 = vmax.f32 %v4034, %v4035
        %v4037 = vrot.slane %v4036, 2
        %v4038 = vmax.f32 %v4036, %v4037
        %v4039 = vrot.slane %v4038, 1
        %v4040 = vmax.f32 %v4038, %v4039
        %v4041 = vsel %vm1027, %v3807, -inf
        %v4042 = vrot.slane %v4041, 4
        %v4043 = vmax.f32 %v4041, %v4042
        %v4044 = vrot.slane %v4043, 2
        %v4045 = vmax.f32 %v4043, %v4044
        %v4046 = vrot.slane %v4045, 1
        %v4047 = vmax.f32 %v4045, %v4046
        %v4048 = vsel %vm1027, %v3809, -inf
        %v4049 = vrot.slane %v4048, 4
        %v4050 = vmax.f32 %v4048, %v4049
        %v4051 = vrot.slane %v4050, 2
        %v4052 = vmax.f32 %v4050, %v4051
        %v4053 = vrot.slane %v4052, 1
        %v4054 = vmax.f32 %v4052, %v4053
        %v4055 = vsel %vm1027, %v3817, -inf
        %v4056 = vrot.slane %v4055, 4
        %v4057 = vmax.f32 %v4055, %v4056
        %v4058 = vrot.slane %v4057, 2
        %v4059 = vmax.f32 %v4057, %v4058
        %v4060 = vrot.slane %v4059, 1
        %v4061 = vmax.f32 %v4059, %v4060
        %v4062 = vsel %vm1027, %v3825, -inf
        %v4063 = vrot.slane %v4062, 4
        %v4064 = vmax.f32 %v4062, %v4063
        %v4065 = vrot.slane %v4064, 2
        %v4066 = vmax.f32 %v4064, %v4065
        %v4067 = vrot.slane %v4066, 1
        %v4068 = vmax.f32 %v4066, %v4067
        %v4069 = vsel %vm1027, %v3824, -inf
        %v4070 = vrot.slane %v4069, 4
        %v4071 = vmax.f32 %v4069, %v4070
        %v4072 = vrot.slane %v4071, 2
        %v4073 = vmax.f32 %v4071, %v4072
        %v4074 = vrot.slane %v4073, 1
        %v4075 = vmax.f32 %v4073, %v4074
        %v4076 = vsel %vm1027, %v3826, -inf
        %v4077 = vrot.slane %v4076, 4
        %v4078 = vmax.f32 %v4076, %v4077
        %v4079 = vrot.slane %v4078, 2
        %v4080 = vmax.f32 %v4078, %v4079
        %v4081 = vrot.slane %v4080, 1
        %v4082 = vmax.f32 %v4080, %v4081
        %v4083 = vpack.c.bf16 %v3865, %v3865
        %v4084 = vpack.c.bf16 %v3872, %v3872
        %v4085 = vpack.c.bf16 %v3893, %v3893
        %v4086 = vpack.c.bf16 %v3900, %v3900
        %v4087 = vpack.c.bf16 %v3977, %v3977
        %v4088 = vpack.c.bf16 %v3984, %v3984
        %v4089 = vpack.c.bf16 %v4005, %v4005
        %v4090 = vpack.c.bf16 %v4012, %v4012
        %v4091 = vld [vmem:[%s5] sm:$0xf]
        %v4092 = vld [vmem:[%s5 + $0x4] sm:$0xf]
        %v4093 = vld [vmem:[%s5 + $0x8] sm:$0xf]
        %v4094 = vld [vmem:[%s5 + $0xc] sm:$0xf]
        %v4095 = vld [vmem:[%s5 + $0x10] sm:$0xf]
        %v4096 = vld [vmem:[%s5 + $0x14] sm:$0xf]
        %v4097 = vld [vmem:[%s5 + $0x18] sm:$0xf]
        %v4098 = vld [vmem:[%s5 + $0x1c] sm:$0xf]
        %v4099 = vld [vmem:[%s5 + $0x20] sm:$0xf]
        %v4100 = vld [vmem:[%s5 + $0x24] sm:$0xf]
        %v4101 = vld [vmem:[%s5 + $0x28] sm:$0xf]
        %v4102 = vld [vmem:[%s5 + $0x2c] sm:$0xf]
        %v4103 = vld [vmem:[%s5 + $0x30] sm:$0xf]
        %v4104 = vld [vmem:[%s5 + $0x34] sm:$0xf]
        %v4105 = vld [vmem:[%s5 + $0x38] sm:$0xf]
        %v4106 = vld [vmem:[%s5 + $0x3c] sm:$0xf]
        %v4107 = vpack.c.bf16 %v3879, %v3879
        %v4108 = vpack.c.bf16 %v3907, %v3907
        %v4109 = vpack.c.bf16 %v3991, %v3991
        %v4110 = vpack.c.bf16 %v4019, %v4019
        %s4111 = scalar_lea.vmem %s5, 64
        %v4112 = vld [vmem:[%s4111] sm:$0xf]
        %v4113 = vld [vmem:[%s4111 + $0x4] sm:$0xf]
        %v4114 = vld [vmem:[%s4111 + $0x8] sm:$0xf]
        %v4115 = vld [vmem:[%s4111 + $0xc] sm:$0xf]
        %v4116 = vld [vmem:[%s4111 + $0x10] sm:$0xf]
        %v4117 = vld [vmem:[%s4111 + $0x14] sm:$0xf]
        %v4118 = vld [vmem:[%s4111 + $0x18] sm:$0xf]
        %v4119 = vld [vmem:[%s4111 + $0x1c] sm:$0xf]
        %v4120 = vld [vmem:[%s4111 + $0x20] sm:$0xf]
        %v4121 = vld [vmem:[%s4111 + $0x24] sm:$0xf]
        %v4122 = vld [vmem:[%s4111 + $0x28] sm:$0xf]
        %v4123 = vld [vmem:[%s4111 + $0x2c] sm:$0xf]
        %v4124 = vld [vmem:[%s4111 + $0x30] sm:$0xf]
        %v4125 = vld [vmem:[%s4111 + $0x34] sm:$0xf]
        %v4126 = vld [vmem:[%s4111 + $0x38] sm:$0xf]
        %v4127 = vld [vmem:[%s4111 + $0x3c] sm:$0xf]
        %v4136 = vunpack.c.l.b16 %v4084
        %v4137 = vunpack.c.l.b16 %v4107
        %v4138 = vunpack.c.l.b16 %v4086
        %v4139 = vunpack.c.l.b16 %v4108
        %v4140 = vunpack.c.l.b16 %v4088
        %v4141 = vunpack.c.l.b16 %v4109
        %v4142 = vunpack.c.l.b16 %v4090
        %v4143 = vunpack.c.l.b16 %v4110
        %vm4144 = vcmask 1041409
        %v4145 = vsel %vm4144, %v4137, %v4136
        %vm4146 = vcmask 1042434
        %v4147 = vsel %vm4146, %v4138, %v4145
        %vm4148 = vcmask 1043459
        %v4149 = vsel %vm4148, %v4139, %v4147
        %vm4150 = vcmask 1044484
        %v4151 = vsel %vm4150, %v4140, %v4149
        %vm4152 = vcmask 1045509
        %v4153 = vsel %vm4152, %v4141, %v4151
        %vm4154 = vcmask 1046534
        %v4155 = vsel %vm4154, %v4142, %v4153
        %vm4156 = vcmask 1047559
        %v4157 = vsel %vm4156, %v4143, %v4155
        %v4158 = vpack.c.b16 %v4157, %v4157
        %v4176 = vunpack.c.l.b16 %v4112
        %v4177 = vunpack.c.l.b16 %v4113
        %v4178 = vunpack.c.l.b16 %v4114
        %v4179 = vunpack.c.l.b16 %v4115
        %v4180 = vunpack.c.l.b16 %v4116
        %v4181 = vunpack.c.l.b16 %v4117
        %v4182 = vunpack.c.l.b16 %v4118
        %v4183 = vunpack.c.l.b16 %v4119
        %v4184 = vunpack.c.l.b16 %v4120
        %v4185 = vunpack.c.l.b16 %v4121
        %v4186 = vunpack.c.l.b16 %v4122
        %v4187 = vunpack.c.l.b16 %v4123
        %v4188 = vunpack.c.l.b16 %v4124
        %v4189 = vunpack.c.l.b16 %v4125
        %v4190 = vunpack.c.l.b16 %v4126
        %v4191 = vunpack.c.l.b16 %v4127
        %v4192 = vpack.c.b16 %v4177, %v4176
        %v4193 = vpack.c.b16 %v4179, %v4178
        %v4194 = vpack.c.b16 %v4181, %v4180
        %v4195 = vpack.c.b16 %v4183, %v4182
        %v4196 = vpack.c.b16 %v4185, %v4184
        %v4197 = vpack.c.b16 %v4187, %v4186
        %v4198 = vpack.c.b16 %v4189, %v4188
        %v4199 = vpack.c.b16 %v4191, %v4190
        %4208 = vmatprep.subr.bf16.mxu0 0
        %4209 = vmatpush1.bf16.msra.mxu0 %v4199
        %4210 = vmatprep.subr.bf16.mxu0 0
        %4211 = vmatpush1.bf16.msra.mxu0 %v4198
        %4212 = vmatprep.subr.bf16.mxu0 0
        %4213 = vmatpush1.bf16.msra.mxu0 %v4197
        %4214 = vmatprep.subr.bf16.mxu0 0
        %4215 = vmatpush1.bf16.msra.mxu0 %v4196
        %4216 = vmatprep.subr.bf16.mxu0 0
        %4217 = vmatpush1.bf16.msra.mxu0 %v4195
        %4218 = vmatprep.subr.bf16.mxu0 0
        %4219 = vmatpush1.bf16.msra.mxu0 %v4194
        %4220 = vmatprep.subr.bf16.mxu0 0
        %4221 = vmatpush1.bf16.msra.mxu0 %v4193
        %4222 = vmatprep.subr.bf16.mxu0 0
        %4223 = vmatpush1.bf16.msra.mxu0 %v4192
        %4224 = vmatprep.subr.bf16.mxu0 0
        %4225 = vmatpush2.bf16.msra.mxu0 0
        %4226 = vmatprep.subr.bf16.mxu0 0
        %4227 = vmatpush2.bf16.msra.mxu0 0
        %4228 = vmatprep.subr.bf16.mxu0 0
        %4229 = vmatpush2.bf16.msra.mxu0 0
        %4230 = vmatprep.subr.bf16.mxu0 0
        %4231 = vmatpush2.bf16.msra.mxu0 0
        %4232 = vmatprep.subr.bf16.mxu0 0
        %4233 = vmatpush2.bf16.msra.mxu0 0
        %4234 = vmatprep.subr.bf16.mxu0 0
        %4235 = vmatpush2.bf16.msra.mxu0 0
        %4236 = vmatprep.subr.bf16.mxu0 0
        %4237 = vmatpush2.bf16.msra.mxu0 0
        %4238 = vmatprep.subr.bf16.mxu0 0
        %4239 = vmatpush2.bf16.msra.mxu0 0
        %4240 = vmatprep.mubr.bf16.mxu0 0
        %4241 = vmatmul.mubr.bf16.gmra.mxu0 %v4158
        %v4242 = vpop.f32.mrf.mxu0
        %v4243 = vadd.f32 0.0, %v4242
        %v4244 = vpop.f32.mrf.mxu0
        %v4245 = vpop.f32.mrf.mxu0
        %v4246 = vpop.f32.mrf.mxu0
        %4247 = vdwg.mxu0
        %v4252 = vunpack.c.l.b16 %v4083
        %v4253 = vunpack.c.l.b16 %v4085
        %v4254 = vunpack.c.l.b16 %v4087
        %v4255 = vunpack.c.l.b16 %v4089
        %v4256 = vsel %vm4144, %v4136, %v4252
        %v4257 = vsel %vm4146, %v4253, %v4256
        %v4258 = vsel %vm4148, %v4138, %v4257
        %v4259 = vsel %vm4150, %v4254, %v4258
        %v4260 = vsel %vm4152, %v4140, %v4259
        %v4261 = vsel %vm4154, %v4255, %v4260
        %v4262 = vsel %vm4156, %v4142, %v4261
        %v4263 = vpack.c.b16 %v4262, %v4262
        %v4281 = vunpack.c.l.b16 %v4091
        %v4282 = vunpack.c.l.b16 %v4092
        %v4283 = vunpack.c.l.b16 %v4093
        %v4284 = vunpack.c.l.b16 %v4094
        %v4285 = vunpack.c.l.b16 %v4095
        %v4286 = vunpack.c.l.b16 %v4096
        %v4287 = vunpack.c.l.b16 %v4097
        %v4288 = vunpack.c.l.b16 %v4098
        %v4289 = vunpack.c.l.b16 %v4099
        %v4290 = vunpack.c.l.b16 %v4100
        %v4291 = vunpack.c.l.b16 %v4101
        %v4292 = vunpack.c.l.b16 %v4102
        %v4293 = vunpack.c.l.b16 %v4103
        %v4294 = vunpack.c.l.b16 %v4104
        %v4295 = vunpack.c.l.b16 %v4105
        %v4296 = vunpack.c.l.b16 %v4106
        %v4297 = vpack.c.b16 %v4282, %v4281
        %v4298 = vpack.c.b16 %v4284, %v4283
        %v4299 = vpack.c.b16 %v4286, %v4285
        %v4300 = vpack.c.b16 %v4288, %v4287
        %v4301 = vpack.c.b16 %v4290, %v4289
        %v4302 = vpack.c.b16 %v4292, %v4291
        %v4303 = vpack.c.b16 %v4294, %v4293
        %v4304 = vpack.c.b16 %v4296, %v4295
        %4313 = vmatprep.subr.bf16.mxu0 0
        %4314 = vmatpush1.bf16.msra.mxu0 %v4304
        %4315 = vmatprep.subr.bf16.mxu0 0
        %4316 = vmatpush1.bf16.msra.mxu0 %v4303
        %4317 = vmatprep.subr.bf16.mxu0 0
        %4318 = vmatpush1.bf16.msra.mxu0 %v4302
        %4319 = vmatprep.subr.bf16.mxu0 0
        %4320 = vmatpush1.bf16.msra.mxu0 %v4301
        %4321 = vmatprep.subr.bf16.mxu0 0
        %4322 = vmatpush1.bf16.msra.mxu0 %v4300
        %4323 = vmatprep.subr.bf16.mxu0 0
        %4324 = vmatpush1.bf16.msra.mxu0 %v4299
        %4325 = vmatprep.subr.bf16.mxu0 0
        %4326 = vmatpush1.bf16.msra.mxu0 %v4298
        %4327 = vmatprep.subr.bf16.mxu0 0
        %4328 = vmatpush1.bf16.msra.mxu0 %v4297
        %4329 = vmatprep.subr.bf16.mxu0 0
        %4330 = vmatpush2.bf16.msra.mxu0 0
        %4331 = vmatprep.subr.bf16.mxu0 0
        %4332 = vmatpush2.bf16.msra.mxu0 0
        %4333 = vmatprep.subr.bf16.mxu0 0
        %4334 = vmatpush2.bf16.msra.mxu0 0
        %4335 = vmatprep.subr.bf16.mxu0 0
        %4336 = vmatpush2.bf16.msra.mxu0 0
        %4337 = vmatprep.subr.bf16.mxu0 0
        %4338 = vmatpush2.bf16.msra.mxu0 0
        %4339 = vmatprep.subr.bf16.mxu0 0
        %4340 = vmatpush2.bf16.msra.mxu0 0
        %4341 = vmatprep.subr.bf16.mxu0 0
        %4342 = vmatpush2.bf16.msra.mxu0 0
        %4343 = vmatprep.subr.bf16.mxu0 0
        %4344 = vmatpush2.bf16.msra.mxu0 0
        %4345 = vmatprep.mubr.bf16.mxu0 0
        %4346 = vmatmul.mubr.bf16.gmra.mxu0 %v4263
        %v4347 = vpop.f32.mrf.mxu0
        %v4348 = vadd.f32 %v4243, %v4347
        %v4349 = vpop.f32.mrf.mxu0
        %v4350 = vpop.f32.mrf.mxu0
        %v4351 = vpop.f32.mrf.mxu0
        %4352 = vdwg.mxu0
        %v4353 = vpack.c.bf16 %v3886, %v3886
        %v4354 = vpack.c.bf16 %v3914, %v3914
        %v4355 = vpack.c.bf16 %v3998, %v3998
        %v4356 = vpack.c.bf16 %v4026, %v4026
        %s4357 = scalar_lea.vmem %s5, 128
        %v4358 = vld [vmem:[%s4357] sm:$0xf]
        %v4359 = vld [vmem:[%s4357 + $0x4] sm:$0xf]
        %v4360 = vld [vmem:[%s4357 + $0x8] sm:$0xf]
        %v4361 = vld [vmem:[%s4357 + $0xc] sm:$0xf]
        %v4362 = vld [vmem:[%s4357 + $0x10] sm:$0xf]
        %v4363 = vld [vmem:[%s4357 + $0x14] sm:$0xf]
        %v4364 = vld [vmem:[%s4357 + $0x18] sm:$0xf]
        %v4365 = vld [vmem:[%s4357 + $0x1c] sm:$0xf]
        %v4366 = vld [vmem:[%s4357 + $0x20] sm:$0xf]
        %v4367 = vld [vmem:[%s4357 + $0x24] sm:$0xf]
        %v4368 = vld [vmem:[%s4357 + $0x28] sm:$0xf]
        %v4369 = vld [vmem:[%s4357 + $0x2c] sm:$0xf]
        %v4370 = vld [vmem:[%s4357 + $0x30] sm:$0xf]
        %v4371 = vld [vmem:[%s4357 + $0x34] sm:$0xf]
        %v4372 = vld [vmem:[%s4357 + $0x38] sm:$0xf]
        %v4373 = vld [vmem:[%s4357 + $0x3c] sm:$0xf]
        %v4378 = vunpack.c.l.b16 %v4353
        %v4379 = vunpack.c.l.b16 %v4354
        %v4380 = vunpack.c.l.b16 %v4355
        %v4381 = vunpack.c.l.b16 %v4356
        %v4382 = vsel %vm4144, %v4378, %v4137
        %v4383 = vsel %vm4146, %v4139, %v4382
        %v4384 = vsel %vm4148, %v4379, %v4383
        %v4385 = vsel %vm4150, %v4141, %v4384
        %v4386 = vsel %vm4152, %v4380, %v4385
        %v4387 = vsel %vm4154, %v4143, %v4386
        %v4388 = vsel %vm4156, %v4381, %v4387
        %v4389 = vpack.c.b16 %v4388, %v4388
        %v4407 = vunpack.c.l.b16 %v4358
        %v4408 = vunpack.c.l.b16 %v4359
        %v4409 = vunpack.c.l.b16 %v4360
        %v4410 = vunpack.c.l.b16 %v4361
        %v4411 = vunpack.c.l.b16 %v4362
        %v4412 = vunpack.c.l.b16 %v4363
        %v4413 = vunpack.c.l.b16 %v4364
        %v4414 = vunpack.c.l.b16 %v4365
        %v4415 = vunpack.c.l.b16 %v4366
        %v4416 = vunpack.c.l.b16 %v4367
        %v4417 = vunpack.c.l.b16 %v4368
        %v4418 = vunpack.c.l.b16 %v4369
        %v4419 = vunpack.c.l.b16 %v4370
        %v4420 = vunpack.c.l.b16 %v4371
        %v4421 = vunpack.c.l.b16 %v4372
        %v4422 = vunpack.c.l.b16 %v4373
        %v4423 = vpack.c.b16 %v4408, %v4407
        %v4424 = vpack.c.b16 %v4410, %v4409
        %v4425 = vpack.c.b16 %v4412, %v4411
        %v4426 = vpack.c.b16 %v4414, %v4413
        %v4427 = vpack.c.b16 %v4416, %v4415
        %v4428 = vpack.c.b16 %v4418, %v4417
        %v4429 = vpack.c.b16 %v4420, %v4419
        %v4430 = vpack.c.b16 %v4422, %v4421
        %4439 = vmatprep.subr.bf16.mxu0 0
        %4440 = vmatpush1.bf16.msra.mxu0 %v4430
        %4441 = vmatprep.subr.bf16.mxu0 0
        %4442 = vmatpush1.bf16.msra.mxu0 %v4429
        %4443 = vmatprep.subr.bf16.mxu0 0
        %4444 = vmatpush1.bf16.msra.mxu0 %v4428
        %4445 = vmatprep.subr.bf16.mxu0 0
        %4446 = vmatpush1.bf16.msra.mxu0 %v4427
        %4447 = vmatprep.subr.bf16.mxu0 0
        %4448 = vmatpush1.bf16.msra.mxu0 %v4426
        %4449 = vmatprep.subr.bf16.mxu0 0
        %4450 = vmatpush1.bf16.msra.mxu0 %v4425
        %4451 = vmatprep.subr.bf16.mxu0 0
        %4452 = vmatpush1.bf16.msra.mxu0 %v4424
        %4453 = vmatprep.subr.bf16.mxu0 0
        %4454 = vmatpush1.bf16.msra.mxu0 %v4423
        %4455 = vmatprep.subr.bf16.mxu0 0
        %4456 = vmatpush2.bf16.msra.mxu0 0
        %4457 = vmatprep.subr.bf16.mxu0 0
        %4458 = vmatpush2.bf16.msra.mxu0 0
        %4459 = vmatprep.subr.bf16.mxu0 0
        %4460 = vmatpush2.bf16.msra.mxu0 0
        %4461 = vmatprep.subr.bf16.mxu0 0
        %4462 = vmatpush2.bf16.msra.mxu0 0
        %4463 = vmatprep.subr.bf16.mxu0 0
        %4464 = vmatpush2.bf16.msra.mxu0 0
        %4465 = vmatprep.subr.bf16.mxu0 0
        %4466 = vmatpush2.bf16.msra.mxu0 0
        %4467 = vmatprep.subr.bf16.mxu0 0
        %4468 = vmatpush2.bf16.msra.mxu0 0
        %4469 = vmatprep.subr.bf16.mxu0 0
        %4470 = vmatpush2.bf16.msra.mxu0 0
        %4471 = vmatprep.mubr.bf16.mxu0 0
        %4472 = vmatmul.mubr.bf16.gmra.mxu0 %v4389
        %v4473 = vpop.f32.mrf.mxu0
        %v4474 = vadd.f32 0.0, %v4473
        %v4475 = vpop.f32.mrf.mxu0
        %v4476 = vpop.f32.mrf.mxu0
        %v4477 = vpop.f32.mrf.mxu0
        %4478 = vdwg.mxu0
        %v4479 = vadd.f32 %v4348, %v4474
        %v4480 = vpack.c.bf16 %v3921, %v3921
        %v4481 = vpack.c.bf16 %v3928, %v3928
        %v4482 = vpack.c.bf16 %v4033, %v4033
        %v4483 = vpack.c.bf16 %v4040, %v4040
        %s4484 = scalar_lea.vmem %s5, 192
        %v4485 = vld [vmem:[%s4484] sm:$0xf]
        %v4486 = vld [vmem:[%s4484 + $0x4] sm:$0xf]
        %v4487 = vld [vmem:[%s4484 + $0x8] sm:$0xf]
        %v4488 = vld [vmem:[%s4484 + $0xc] sm:$0xf]
        %v4489 = vld [vmem:[%s4484 + $0x10] sm:$0xf]
        %v4490 = vld [vmem:[%s4484 + $0x14] sm:$0xf]
        %v4491 = vld [vmem:[%s4484 + $0x18] sm:$0xf]
        %v4492 = vld [vmem:[%s4484 + $0x1c] sm:$0xf]
        %v4493 = vld [vmem:[%s4484 + $0x20] sm:$0xf]
        %v4494 = vld [vmem:[%s4484 + $0x24] sm:$0xf]
        %v4495 = vld [vmem:[%s4484 + $0x28] sm:$0xf]
        %v4496 = vld [vmem:[%s4484 + $0x2c] sm:$0xf]
        %v4497 = vld [vmem:[%s4484 + $0x30] sm:$0xf]
        %v4498 = vld [vmem:[%s4484 + $0x34] sm:$0xf]
        %v4499 = vld [vmem:[%s4484 + $0x38] sm:$0xf]
        %v4500 = vld [vmem:[%s4484 + $0x3c] sm:$0xf]
        %v4505 = vunpack.c.l.b16 %v4480
        %v4506 = vunpack.c.l.b16 %v4481
        %v4507 = vunpack.c.l.b16 %v4482
        %v4508 = vunpack.c.l.b16 %v4483
        %v4509 = vsel %vm4144, %v4138, %v4253
        %v4510 = vsel %vm4146, %v4505, %v4509
        %v4511 = vsel %vm4148, %v4506, %v4510
        %v4512 = vsel %vm4150, %v4255, %v4511
        %v4513 = vsel %vm4152, %v4142, %v4512
        %v4514 = vsel %vm4154, %v4507, %v4513
        %v4515 = vsel %vm4156, %v4508, %v4514
        %v4516 = vpack.c.b16 %v4515, %v4515
        %v4534 = vunpack.c.l.b16 %v4485
        %v4535 = vunpack.c.l.b16 %v4486
        %v4536 = vunpack.c.l.b16 %v4487
        %v4537 = vunpack.c.l.b16 %v4488
        %v4538 = vunpack.c.l.b16 %v4489
        %v4539 = vunpack.c.l.b16 %v4490
        %v4540 = vunpack.c.l.b16 %v4491
        %v4541 = vunpack.c.l.b16 %v4492
        %v4542 = vunpack.c.l.b16 %v4493
        %v4543 = vunpack.c.l.b16 %v4494
        %v4544 = vunpack.c.l.b16 %v4495
        %v4545 = vunpack.c.l.b16 %v4496
        %v4546 = vunpack.c.l.b16 %v4497
        %v4547 = vunpack.c.l.b16 %v4498
        %v4548 = vunpack.c.l.b16 %v4499
        %v4549 = vunpack.c.l.b16 %v4500
        %v4550 = vpack.c.b16 %v4535, %v4534
        %v4551 = vpack.c.b16 %v4537, %v4536
        %v4552 = vpack.c.b16 %v4539, %v4538
        %v4553 = vpack.c.b16 %v4541, %v4540
        %v4554 = vpack.c.b16 %v4543, %v4542
        %v4555 = vpack.c.b16 %v4545, %v4544
        %v4556 = vpack.c.b16 %v4547, %v4546
        %v4557 = vpack.c.b16 %v4549, %v4548
        %4566 = vmatprep.subr.bf16.mxu0 0
        %4567 = vmatpush1.bf16.msra.mxu0 %v4557
        %4568 = vmatprep.subr.bf16.mxu0 0
        %4569 = vmatpush1.bf16.msra.mxu0 %v4556
        %4570 = vmatprep.subr.bf16.mxu0 0
        %4571 = vmatpush1.bf16.msra.mxu0 %v4555
        %4572 = vmatprep.subr.bf16.mxu0 0
        %4573 = vmatpush1.bf16.msra.mxu0 %v4554
        %4574 = vmatprep.subr.bf16.mxu0 0
        %4575 = vmatpush1.bf16.msra.mxu0 %v4553
        %4576 = vmatprep.subr.bf16.mxu0 0
        %4577 = vmatpush1.bf16.msra.mxu0 %v4552
        %4578 = vmatprep.subr.bf16.mxu0 0
        %4579 = vmatpush1.bf16.msra.mxu0 %v4551
        %4580 = vmatprep.subr.bf16.mxu0 0
        %4581 = vmatpush1.bf16.msra.mxu0 %v4550
        %4582 = vmatprep.subr.bf16.mxu0 0
        %4583 = vmatpush2.bf16.msra.mxu0 0
        %4584 = vmatprep.subr.bf16.mxu0 0
        %4585 = vmatpush2.bf16.msra.mxu0 0
        %4586 = vmatprep.subr.bf16.mxu0 0
        %4587 = vmatpush2.bf16.msra.mxu0 0
        %4588 = vmatprep.subr.bf16.mxu0 0
        %4589 = vmatpush2.bf16.msra.mxu0 0
        %4590 = vmatprep.subr.bf16.mxu0 0
        %4591 = vmatpush2.bf16.msra.mxu0 0
        %4592 = vmatprep.subr.bf16.mxu0 0
        %4593 = vmatpush2.bf16.msra.mxu0 0
        %4594 = vmatprep.subr.bf16.mxu0 0
        %4595 = vmatpush2.bf16.msra.mxu0 0
        %4596 = vmatprep.subr.bf16.mxu0 0
        %4597 = vmatpush2.bf16.msra.mxu0 0
        %4598 = vmatprep.mubr.bf16.mxu0 0
        %4599 = vmatmul.mubr.bf16.gmra.mxu0 %v4516
        %v4600 = vpop.f32.mrf.mxu0
        %v4601 = vadd.f32 0.0, %v4600
        %v4602 = vpop.f32.mrf.mxu0
        %v4603 = vpop.f32.mrf.mxu0
        %v4604 = vpop.f32.mrf.mxu0
        %4605 = vdwg.mxu0
        %v4606 = vadd.f32 %v4479, %v4601
        %v4607 = vpack.c.bf16 %v3935, %v3935
        %v4608 = vpack.c.bf16 %v4047, %v4047
        %s4609 = scalar_lea.vmem %s5, 256
        %v4610 = vld [vmem:[%s4609] sm:$0xf]
        %v4611 = vld [vmem:[%s4609 + $0x4] sm:$0xf]
        %v4612 = vld [vmem:[%s4609 + $0x8] sm:$0xf]
        %v4613 = vld [vmem:[%s4609 + $0xc] sm:$0xf]
        %v4614 = vld [vmem:[%s4609 + $0x10] sm:$0xf]
        %v4615 = vld [vmem:[%s4609 + $0x14] sm:$0xf]
        %v4616 = vld [vmem:[%s4609 + $0x18] sm:$0xf]
        %v4617 = vld [vmem:[%s4609 + $0x1c] sm:$0xf]
        %v4618 = vld [vmem:[%s4609 + $0x20] sm:$0xf]
        %v4619 = vld [vmem:[%s4609 + $0x24] sm:$0xf]
        %v4620 = vld [vmem:[%s4609 + $0x28] sm:$0xf]
        %v4621 = vld [vmem:[%s4609 + $0x2c] sm:$0xf]
        %v4622 = vld [vmem:[%s4609 + $0x30] sm:$0xf]
        %v4623 = vld [vmem:[%s4609 + $0x34] sm:$0xf]
        %v4624 = vld [vmem:[%s4609 + $0x38] sm:$0xf]
        %v4625 = vld [vmem:[%s4609 + $0x3c] sm:$0xf]
        %v4628 = vunpack.c.l.b16 %v4607
        %v4629 = vunpack.c.l.b16 %v4608
        %v4630 = vsel %vm4144, %v4139, %v4138
        %v4631 = vsel %vm4146, %v4506, %v4630
        %v4632 = vsel %vm4148, %v4628, %v4631
        %v4633 = vsel %vm4150, %v4142, %v4632
        %v4634 = vsel %vm4152, %v4143, %v4633
        %v4635 = vsel %vm4154, %v4508, %v4634
        %v4636 = vsel %vm4156, %v4629, %v4635
        %v4637 = vpack.c.b16 %v4636, %v4636
        %v4655 = vunpack.c.l.b16 %v4610
        %v4656 = vunpack.c.l.b16 %v4611
        %v4657 = vunpack.c.l.b16 %v4612
        %v4658 = vunpack.c.l.b16 %v4613
        %v4659 = vunpack.c.l.b16 %v4614
        %v4660 = vunpack.c.l.b16 %v4615
        %v4661 = vunpack.c.l.b16 %v4616
        %v4662 = vunpack.c.l.b16 %v4617
        %v4663 = vunpack.c.l.b16 %v4618
        %v4664 = vunpack.c.l.b16 %v4619
        %v4665 = vunpack.c.l.b16 %v4620
        %v4666 = vunpack.c.l.b16 %v4621
        %v4667 = vunpack.c.l.b16 %v4622
        %v4668 = vunpack.c.l.b16 %v4623
        %v4669 = vunpack.c.l.b16 %v4624
        %v4670 = vunpack.c.l.b16 %v4625
        %v4671 = vpack.c.b16 %v4656, %v4655
        %v4672 = vpack.c.b16 %v4658, %v4657
        %v4673 = vpack.c.b16 %v4660, %v4659
        %v4674 = vpack.c.b16 %v4662, %v4661
        %v4675 = vpack.c.b16 %v4664, %v4663
        %v4676 = vpack.c.b16 %v4666, %v4665
        %v4677 = vpack.c.b16 %v4668, %v4667
        %v4678 = vpack.c.b16 %v4670, %v4669
        %4687 = vmatprep.subr.bf16.mxu0 0
        %4688 = vmatpush1.bf16.msra.mxu0 %v4678
        %4689 = vmatprep.subr.bf16.mxu0 0
        %4690 = vmatpush1.bf16.msra.mxu0 %v4677
        %4691 = vmatprep.subr.bf16.mxu0 0
        %4692 = vmatpush1.bf16.msra.mxu0 %v4676
        %4693 = vmatprep.subr.bf16.mxu0 0
        %4694 = vmatpush1.bf16.msra.mxu0 %v4675
        %4695 = vmatprep.subr.bf16.mxu0 0
        %4696 = vmatpush1.bf16.msra.mxu0 %v4674
        %4697 = vmatprep.subr.bf16.mxu0 0
        %4698 = vmatpush1.bf16.msra.mxu0 %v4673
        %4699 = vmatprep.subr.bf16.mxu0 0
        %4700 = vmatpush1.bf16.msra.mxu0 %v4672
        %4701 = vmatprep.subr.bf16.mxu0 0
        %4702 = vmatpush1.bf16.msra.mxu0 %v4671
        %4703 = vmatprep.subr.bf16.mxu0 0
        %4704 = vmatpush2.bf16.msra.mxu0 0
        %4705 = vmatprep.subr.bf16.mxu0 0
        %4706 = vmatpush2.bf16.msra.mxu0 0
        %4707 = vmatprep.subr.bf16.mxu0 0
        %4708 = vmatpush2.bf16.msra.mxu0 0
        %4709 = vmatprep.subr.bf16.mxu0 0
        %4710 = vmatpush2.bf16.msra.mxu0 0
        %4711 = vmatprep.subr.bf16.mxu0 0
        %4712 = vmatpush2.bf16.msra.mxu0 0
        %4713 = vmatprep.subr.bf16.mxu0 0
        %4714 = vmatpush2.bf16.msra.mxu0 0
        %4715 = vmatprep.subr.bf16.mxu0 0
        %4716 = vmatpush2.bf16.msra.mxu0 0
        %4717 = vmatprep.subr.bf16.mxu0 0
        %4718 = vmatpush2.bf16.msra.mxu0 0
        %4719 = vmatprep.mubr.bf16.mxu0 0
        %4720 = vmatmul.mubr.bf16.gmra.mxu0 %v4637
        %v4721 = vpop.f32.mrf.mxu0
        %v4722 = vadd.f32 0.0, %v4721
        %v4723 = vpop.f32.mrf.mxu0
        %v4724 = vpop.f32.mrf.mxu0
        %v4725 = vpop.f32.mrf.mxu0
        %4726 = vdwg.mxu0
        %v4727 = vadd.f32 %v4606, %v4722
        %v4728 = vpack.c.bf16 %v3942, %v3942
        %v4729 = vpack.c.bf16 %v4054, %v4054
        %s4730 = scalar_lea.vmem %s5, 320
        %v4731 = vld [vmem:[%s4730] sm:$0xf]
        %v4732 = vld [vmem:[%s4730 + $0x4] sm:$0xf]
        %v4733 = vld [vmem:[%s4730 + $0x8] sm:$0xf]
        %v4734 = vld [vmem:[%s4730 + $0xc] sm:$0xf]
        %v4735 = vld [vmem:[%s4730 + $0x10] sm:$0xf]
        %v4736 = vld [vmem:[%s4730 + $0x14] sm:$0xf]
        %v4737 = vld [vmem:[%s4730 + $0x18] sm:$0xf]
        %v4738 = vld [vmem:[%s4730 + $0x1c] sm:$0xf]
        %v4739 = vld [vmem:[%s4730 + $0x20] sm:$0xf]
        %v4740 = vld [vmem:[%s4730 + $0x24] sm:$0xf]
        %v4741 = vld [vmem:[%s4730 + $0x28] sm:$0xf]
        %v4742 = vld [vmem:[%s4730 + $0x2c] sm:$0xf]
        %v4743 = vld [vmem:[%s4730 + $0x30] sm:$0xf]
        %v4744 = vld [vmem:[%s4730 + $0x34] sm:$0xf]
        %v4745 = vld [vmem:[%s4730 + $0x38] sm:$0xf]
        %v4746 = vld [vmem:[%s4730 + $0x3c] sm:$0xf]
        %v4749 = vunpack.c.l.b16 %v4728
        %v4750 = vunpack.c.l.b16 %v4729
        %v4751 = vsel %vm4144, %v4379, %v4139
        %v4752 = vsel %vm4146, %v4628, %v4751
        %v4753 = vsel %vm4148, %v4749, %v4752
        %v4754 = vsel %vm4150, %v4143, %v4753
        %v4755 = vsel %vm4152, %v4381, %v4754
        %v4756 = vsel %vm4154, %v4629, %v4755
        %v4757 = vsel %vm4156, %v4750, %v4756
        %v4758 = vpack.c.b16 %v4757, %v4757
        %v4776 = vunpack.c.l.b16 %v4731
        %v4777 = vunpack.c.l.b16 %v4732
        %v4778 = vunpack.c.l.b16 %v4733
        %v4779 = vunpack.c.l.b16 %v4734
        %v4780 = vunpack.c.l.b16 %v4735
        %v4781 = vunpack.c.l.b16 %v4736
        %v4782 = vunpack.c.l.b16 %v4737
        %v4783 = vunpack.c.l.b16 %v4738
        %v4784 = vunpack.c.l.b16 %v4739
        %v4785 = vunpack.c.l.b16 %v4740
        %v4786 = vunpack.c.l.b16 %v4741
        %v4787 = vunpack.c.l.b16 %v4742
        %v4788 = vunpack.c.l.b16 %v4743
        %v4789 = vunpack.c.l.b16 %v4744
        %v4790 = vunpack.c.l.b16 %v4745
        %v4791 = vunpack.c.l.b16 %v4746
        %v4792 = vpack.c.b16 %v4777, %v4776
        %v4793 = vpack.c.b16 %v4779, %v4778
        %v4794 = vpack.c.b16 %v4781, %v4780
        %v4795 = vpack.c.b16 %v4783, %v4782
        %v4796 = vpack.c.b16 %v4785, %v4784
        %v4797 = vpack.c.b16 %v4787, %v4786
        %v4798 = vpack.c.b16 %v4789, %v4788
        %v4799 = vpack.c.b16 %v4791, %v4790
        %4808 = vmatprep.subr.bf16.mxu0 0
        %4809 = vmatpush1.bf16.msra.mxu0 %v4799
        %4810 = vmatprep.subr.bf16.mxu0 0
        %4811 = vmatpush1.bf16.msra.mxu0 %v4798
        %4812 = vmatprep.subr.bf16.mxu0 0
        %4813 = vmatpush1.bf16.msra.mxu0 %v4797
        %4814 = vmatprep.subr.bf16.mxu0 0
        %4815 = vmatpush1.bf16.msra.mxu0 %v4796
        %4816 = vmatprep.subr.bf16.mxu0 0
        %4817 = vmatpush1.bf16.msra.mxu0 %v4795
        %4818 = vmatprep.subr.bf16.mxu0 0
        %4819 = vmatpush1.bf16.msra.mxu0 %v4794
        %4820 = vmatprep.subr.bf16.mxu0 0
        %4821 = vmatpush1.bf16.msra.mxu0 %v4793
        %4822 = vmatprep.subr.bf16.mxu0 0
        %4823 = vmatpush1.bf16.msra.mxu0 %v4792
        %4824 = vmatprep.subr.bf16.mxu0 0
        %4825 = vmatpush2.bf16.msra.mxu0 0
        %4826 = vmatprep.subr.bf16.mxu0 0
        %4827 = vmatpush2.bf16.msra.mxu0 0
        %4828 = vmatprep.subr.bf16.mxu0 0
        %4829 = vmatpush2.bf16.msra.mxu0 0
        %4830 = vmatprep.subr.bf16.mxu0 0
        %4831 = vmatpush2.bf16.msra.mxu0 0
        %4832 = vmatprep.subr.bf16.mxu0 0
        %4833 = vmatpush2.bf16.msra.mxu0 0
        %4834 = vmatprep.subr.bf16.mxu0 0
        %4835 = vmatpush2.bf16.msra.mxu0 0
        %4836 = vmatprep.subr.bf16.mxu0 0
        %4837 = vmatpush2.bf16.msra.mxu0 0
        %4838 = vmatprep.subr.bf16.mxu0 0
        %4839 = vmatpush2.bf16.msra.mxu0 0
        %4840 = vmatprep.mubr.bf16.mxu0 0
        %4841 = vmatmul.mubr.bf16.gmra.mxu0 %v4758
        %v4842 = vpop.f32.mrf.mxu0
        %v4843 = vadd.f32 0.0, %v4842
        %v4844 = vpop.f32.mrf.mxu0
        %v4845 = vpop.f32.mrf.mxu0
        %v4846 = vpop.f32.mrf.mxu0
        %4847 = vdwg.mxu0
        %v4848 = vadd.f32 %v4727, %v4843
        %v4849 = vpack.c.bf16 %v3949, %v3949
        %v4850 = vpack.c.bf16 %v3956, %v3956
        %v4851 = vpack.c.bf16 %v4061, %v4061
        %v4852 = vpack.c.bf16 %v4068, %v4068
        %s4853 = scalar_lea.vmem %s5, 384
        %v4854 = vld [vmem:[%s4853] sm:$0xf]
        %v4855 = vld [vmem:[%s4853 + $0x4] sm:$0xf]
        %v4856 = vld [vmem:[%s4853 + $0x8] sm:$0xf]
        %v4857 = vld [vmem:[%s4853 + $0xc] sm:$0xf]
        %v4858 = vld [vmem:[%s4853 + $0x10] sm:$0xf]
        %v4859 = vld [vmem:[%s4853 + $0x14] sm:$0xf]
        %v4860 = vld [vmem:[%s4853 + $0x18] sm:$0xf]
        %v4861 = vld [vmem:[%s4853 + $0x1c] sm:$0xf]
        %v4862 = vld [vmem:[%s4853 + $0x20] sm:$0xf]
        %v4863 = vld [vmem:[%s4853 + $0x24] sm:$0xf]
        %v4864 = vld [vmem:[%s4853 + $0x28] sm:$0xf]
        %v4865 = vld [vmem:[%s4853 + $0x2c] sm:$0xf]
        %v4866 = vld [vmem:[%s4853 + $0x30] sm:$0xf]
        %v4867 = vld [vmem:[%s4853 + $0x34] sm:$0xf]
        %v4868 = vld [vmem:[%s4853 + $0x38] sm:$0xf]
        %v4869 = vld [vmem:[%s4853 + $0x3c] sm:$0xf]
        %v4874 = vunpack.c.l.b16 %v4849
        %v4875 = vunpack.c.l.b16 %v4850
        %v4876 = vunpack.c.l.b16 %v4851
        %v4877 = vunpack.c.l.b16 %v4852
        %v4878 = vsel %vm4144, %v4506, %v4505
        %v4879 = vsel %vm4146, %v4874, %v4878
        %v4880 = vsel %vm4148, %v4875, %v4879
        %v4881 = vsel %vm4150, %v4507, %v4880
        %v4882 = vsel %vm4152, %v4508, %v4881
        %v4883 = vsel %vm4154, %v4876, %v4882
        %v4884 = vsel %vm4156, %v4877, %v4883
        %v4885 = vpack.c.b16 %v4884, %v4884
        %v4903 = vunpack.c.l.b16 %v4854
        %v4904 = vunpack.c.l.b16 %v4855
        %v4905 = vunpack.c.l.b16 %v4856
        %v4906 = vunpack.c.l.b16 %v4857
        %v4907 = vunpack.c.l.b16 %v4858
        %v4908 = vunpack.c.l.b16 %v4859
        %v4909 = vunpack.c.l.b16 %v4860
        %v4910 = vunpack.c.l.b16 %v4861
        %v4911 = vunpack.c.l.b16 %v4862
        %v4912 = vunpack.c.l.b16 %v4863
        %v4913 = vunpack.c.l.b16 %v4864
        %v4914 = vunpack.c.l.b16 %v4865
        %v4915 = vunpack.c.l.b16 %v4866
        %v4916 = vunpack.c.l.b16 %v4867
        %v4917 = vunpack.c.l.b16 %v4868
        %v4918 = vunpack.c.l.b16 %v4869
        %v4919 = vpack.c.b16 %v4904, %v4903
        %v4920 = vpack.c.b16 %v4906, %v4905
        %v4921 = vpack.c.b16 %v4908, %v4907
        %v4922 = vpack.c.b16 %v4910, %v4909
        %v4923 = vpack.c.b16 %v4912, %v4911
        %v4924 = vpack.c.b16 %v4914, %v4913
        %v4925 = vpack.c.b16 %v4916, %v4915
        %v4926 = vpack.c.b16 %v4918, %v4917
        %4935 = vmatprep.subr.bf16.mxu0 0
        %4936 = vmatpush1.bf16.msra.mxu0 %v4926
        %4937 = vmatprep.subr.bf16.mxu0 0
        %4938 = vmatpush1.bf16.msra.mxu0 %v4925
        %4939 = vmatprep.subr.bf16.mxu0 0
        %4940 = vmatpush1.bf16.msra.mxu0 %v4924
        %4941 = vmatprep.subr.bf16.mxu0 0
        %4942 = vmatpush1.bf16.msra.mxu0 %v4923
        %4943 = vmatprep.subr.bf16.mxu0 0
        %4944 = vmatpush1.bf16.msra.mxu0 %v4922
        %4945 = vmatprep.subr.bf16.mxu0 0
        %4946 = vmatpush1.bf16.msra.mxu0 %v4921
        %4947 = vmatprep.subr.bf16.mxu0 0
        %4948 = vmatpush1.bf16.msra.mxu0 %v4920
        %4949 = vmatprep.subr.bf16.mxu0 0
        %4950 = vmatpush1.bf16.msra.mxu0 %v4919
        %4951 = vmatprep.subr.bf16.mxu0 0
        %4952 = vmatpush2.bf16.msra.mxu0 0
        %4953 = vmatprep.subr.bf16.mxu0 0
        %4954 = vmatpush2.bf16.msra.mxu0 0
        %4955 = vmatprep.subr.bf16.mxu0 0
        %4956 = vmatpush2.bf16.msra.mxu0 0
        %4957 = vmatprep.subr.bf16.mxu0 0
        %4958 = vmatpush2.bf16.msra.mxu0 0
        %4959 = vmatprep.subr.bf16.mxu0 0
        %4960 = vmatpush2.bf16.msra.mxu0 0
        %4961 = vmatprep.subr.bf16.mxu0 0
        %4962 = vmatpush2.bf16.msra.mxu0 0
        %4963 = vmatprep.subr.bf16.mxu0 0
        %4964 = vmatpush2.bf16.msra.mxu0 0
        %4965 = vmatprep.subr.bf16.mxu0 0
        %4966 = vmatpush2.bf16.msra.mxu0 0
        %4967 = vmatprep.mubr.bf16.mxu0 0
        %4968 = vmatmul.mubr.bf16.gmra.mxu0 %v4885
        %v4969 = vpop.f32.mrf.mxu0
        %v4970 = vadd.f32 0.0, %v4969
        %v4971 = vpop.f32.mrf.mxu0
        %v4972 = vpop.f32.mrf.mxu0
        %v4973 = vpop.f32.mrf.mxu0
        %4974 = vdwg.mxu0
        %v4975 = vadd.f32 %v4848, %v4970
        %v4976 = vpack.c.bf16 %v3963, %v3963
        %v4977 = vpack.c.bf16 %v4075, %v4075
        %s4978 = scalar_lea.vmem %s5, 448
        %v4979 = vld [vmem:[%s4978] sm:$0xf]
        %v4980 = vld [vmem:[%s4978 + $0x4] sm:$0xf]
        %v4981 = vld [vmem:[%s4978 + $0x8] sm:$0xf]
        %v4982 = vld [vmem:[%s4978 + $0xc] sm:$0xf]
        %v4983 = vld [vmem:[%s4978 + $0x10] sm:$0xf]
        %v4984 = vld [vmem:[%s4978 + $0x14] sm:$0xf]
        %v4985 = vld [vmem:[%s4978 + $0x18] sm:$0xf]
        %v4986 = vld [vmem:[%s4978 + $0x1c] sm:$0xf]
        %v4987 = vld [vmem:[%s4978 + $0x20] sm:$0xf]
        %v4988 = vld [vmem:[%s4978 + $0x24] sm:$0xf]
        %v4989 = vld [vmem:[%s4978 + $0x28] sm:$0xf]
        %v4990 = vld [vmem:[%s4978 + $0x2c] sm:$0xf]
        %v4991 = vld [vmem:[%s4978 + $0x30] sm:$0xf]
        %v4992 = vld [vmem:[%s4978 + $0x34] sm:$0xf]
        %v4993 = vld [vmem:[%s4978 + $0x38] sm:$0xf]
        %v4994 = vld [vmem:[%s4978 + $0x3c] sm:$0xf]
        %v4997 = vunpack.c.l.b16 %v4976
        %v4998 = vunpack.c.l.b16 %v4977
        %v4999 = vsel %vm4144, %v4628, %v4506
        %v5000 = vsel %vm4146, %v4875, %v4999
        %v5001 = vsel %vm4148, %v4997, %v5000
        %v5002 = vsel %vm4150, %v4508, %v5001
        %v5003 = vsel %vm4152, %v4629, %v5002
        %v5004 = vsel %vm4154, %v4877, %v5003
        %v5005 = vsel %vm4156, %v4998, %v5004
        %v5006 = vpack.c.b16 %v5005, %v5005
        %v5024 = vunpack.c.l.b16 %v4979
        %v5025 = vunpack.c.l.b16 %v4980
        %v5026 = vunpack.c.l.b16 %v4981
        %v5027 = vunpack.c.l.b16 %v4982
        %v5028 = vunpack.c.l.b16 %v4983
        %v5029 = vunpack.c.l.b16 %v4984
        %v5030 = vunpack.c.l.b16 %v4985
        %v5031 = vunpack.c.l.b16 %v4986
        %v5032 = vunpack.c.l.b16 %v4987
        %v5033 = vunpack.c.l.b16 %v4988
        %v5034 = vunpack.c.l.b16 %v4989
        %v5035 = vunpack.c.l.b16 %v4990
        %v5036 = vunpack.c.l.b16 %v4991
        %v5037 = vunpack.c.l.b16 %v4992
        %v5038 = vunpack.c.l.b16 %v4993
        %v5039 = vunpack.c.l.b16 %v4994
        %v5040 = vpack.c.b16 %v5025, %v5024
        %v5041 = vpack.c.b16 %v5027, %v5026
        %v5042 = vpack.c.b16 %v5029, %v5028
        %v5043 = vpack.c.b16 %v5031, %v5030
        %v5044 = vpack.c.b16 %v5033, %v5032
        %v5045 = vpack.c.b16 %v5035, %v5034
        %v5046 = vpack.c.b16 %v5037, %v5036
        %v5047 = vpack.c.b16 %v5039, %v5038
        %5056 = vmatprep.subr.bf16.mxu0 0
        %5057 = vmatpush1.bf16.msra.mxu0 %v5047
        %5058 = vmatprep.subr.bf16.mxu0 0
        %5059 = vmatpush1.bf16.msra.mxu0 %v5046
        %5060 = vmatprep.subr.bf16.mxu0 0
        %5061 = vmatpush1.bf16.msra.mxu0 %v5045
        %5062 = vmatprep.subr.bf16.mxu0 0
        %5063 = vmatpush1.bf16.msra.mxu0 %v5044
        %5064 = vmatprep.subr.bf16.mxu0 0
        %5065 = vmatpush1.bf16.msra.mxu0 %v5043
        %5066 = vmatprep.subr.bf16.mxu0 0
        %5067 = vmatpush1.bf16.msra.mxu0 %v5042
        %5068 = vmatprep.subr.bf16.mxu0 0
        %5069 = vmatpush1.bf16.msra.mxu0 %v5041
        %5070 = vmatprep.subr.bf16.mxu0 0
        %5071 = vmatpush1.bf16.msra.mxu0 %v5040
        %5072 = vmatprep.subr.bf16.mxu0 0
        %5073 = vmatpush2.bf16.msra.mxu0 0
        %5074 = vmatprep.subr.bf16.mxu0 0
        %5075 = vmatpush2.bf16.msra.mxu0 0
        %5076 = vmatprep.subr.bf16.mxu0 0
        %5077 = vmatpush2.bf16.msra.mxu0 0
        %5078 = vmatprep.subr.bf16.mxu0 0
        %5079 = vmatpush2.bf16.msra.mxu0 0
        %5080 = vmatprep.subr.bf16.mxu0 0
        %5081 = vmatpush2.bf16.msra.mxu0 0
        %5082 = vmatprep.subr.bf16.mxu0 0
        %5083 = vmatpush2.bf16.msra.mxu0 0
        %5084 = vmatprep.subr.bf16.mxu0 0
        %5085 = vmatpush2.bf16.msra.mxu0 0
        %5086 = vmatprep.subr.bf16.mxu0 0
        %5087 = vmatpush2.bf16.msra.mxu0 0
        %5088 = vmatprep.mubr.bf16.mxu0 0
        %5089 = vmatmul.mubr.bf16.gmra.mxu0 %v5006
        %v5090 = vpop.f32.mrf.mxu0
        %v5091 = vadd.f32 0.0, %v5090
        %v5092 = vpop.f32.mrf.mxu0
        %v5093 = vpop.f32.mrf.mxu0
        %v5094 = vpop.f32.mrf.mxu0
        %5095 = vdwg.mxu0
        %v5096 = vadd.f32 %v4975, %v5091
        %v5097 = vpack.c.bf16 %v3970, %v3970
        %v5098 = vpack.c.bf16 %v4082, %v4082
        %s5099 = scalar_lea.vmem %s5, 512
        %v5100 = vld [vmem:[%s5099] sm:$0xf]
        %v5101 = vld [vmem:[%s5099 + $0x4] sm:$0xf]
        %v5102 = vld [vmem:[%s5099 + $0x8] sm:$0xf]
        %v5103 = vld [vmem:[%s5099 + $0xc] sm:$0xf]
        %v5104 = vld [vmem:[%s5099 + $0x10] sm:$0xf]
        %v5105 = vld [vmem:[%s5099 + $0x14] sm:$0xf]
        %v5106 = vld [vmem:[%s5099 + $0x18] sm:$0xf]
        %v5107 = vld [vmem:[%s5099 + $0x1c] sm:$0xf]
        %v5108 = vld [vmem:[%s5099 + $0x20] sm:$0xf]
        %v5109 = vld [vmem:[%s5099 + $0x24] sm:$0xf]
        %v5110 = vld [vmem:[%s5099 + $0x28] sm:$0xf]
        %v5111 = vld [vmem:[%s5099 + $0x2c] sm:$0xf]
        %v5112 = vld [vmem:[%s5099 + $0x30] sm:$0xf]
        %v5113 = vld [vmem:[%s5099 + $0x34] sm:$0xf]
        %v5114 = vld [vmem:[%s5099 + $0x38] sm:$0xf]
        %v5115 = vld [vmem:[%s5099 + $0x3c] sm:$0xf]
        %v5118 = vunpack.c.l.b16 %v5097
        %v5119 = vunpack.c.l.b16 %v5098
        %v5120 = vsel %vm4144, %v4749, %v4628
        %v5121 = vsel %vm4146, %v4997, %v5120
        %v5122 = vsel %vm4148, %v5118, %v5121
        %v5123 = vsel %vm4150, %v4629, %v5122
        %v5124 = vsel %vm4152, %v4750, %v5123
        %v5125 = vsel %vm4154, %v4998, %v5124
        %v5126 = vsel %vm4156, %v5119, %v5125
        %v5127 = vpack.c.b16 %v5126, %v5126
        %v5145 = vunpack.c.l.b16 %v5100
        %v5146 = vunpack.c.l.b16 %v5101
        %v5147 = vunpack.c.l.b16 %v5102
        %v5148 = vunpack.c.l.b16 %v5103
        %v5149 = vunpack.c.l.b16 %v5104
        %v5150 = vunpack.c.l.b16 %v5105
        %v5151 = vunpack.c.l.b16 %v5106
        %v5152 = vunpack.c.l.b16 %v5107
        %v5153 = vunpack.c.l.b16 %v5108
        %v5154 = vunpack.c.l.b16 %v5109
        %v5155 = vunpack.c.l.b16 %v5110
        %v5156 = vunpack.c.l.b16 %v5111
        %v5157 = vunpack.c.l.b16 %v5112
        %v5158 = vunpack.c.l.b16 %v5113
        %v5159 = vunpack.c.l.b16 %v5114
        %v5160 = vunpack.c.l.b16 %v5115
        %v5161 = vpack.c.b16 %v5146, %v5145
        %v5162 = vpack.c.b16 %v5148, %v5147
        %v5163 = vpack.c.b16 %v5150, %v5149
        %v5164 = vpack.c.b16 %v5152, %v5151
        %v5165 = vpack.c.b16 %v5154, %v5153
        %v5166 = vpack.c.b16 %v5156, %v5155
        %v5167 = vpack.c.b16 %v5158, %v5157
        %v5168 = vpack.c.b16 %v5160, %v5159
        %5177 = vmatprep.subr.bf16.mxu0 0
        %5178 = vmatpush1.bf16.msra.mxu0 %v5168
        %5179 = vmatprep.subr.bf16.mxu0 0
        %5180 = vmatpush1.bf16.msra.mxu0 %v5167
        %5181 = vmatprep.subr.bf16.mxu0 0
        %5182 = vmatpush1.bf16.msra.mxu0 %v5166
        %5183 = vmatprep.subr.bf16.mxu0 0
        %5184 = vmatpush1.bf16.msra.mxu0 %v5165
        %5185 = vmatprep.subr.bf16.mxu0 0
        %5186 = vmatpush1.bf16.msra.mxu0 %v5164
        %5187 = vmatprep.subr.bf16.mxu0 0
        %5188 = vmatpush1.bf16.msra.mxu0 %v5163
        %5189 = vmatprep.subr.bf16.mxu0 0
        %5190 = vmatpush1.bf16.msra.mxu0 %v5162
        %5191 = vmatprep.subr.bf16.mxu0 0
        %5192 = vmatpush1.bf16.msra.mxu0 %v5161
        %5193 = vmatprep.subr.bf16.mxu0 0
        %5194 = vmatpush2.bf16.msra.mxu0 0
        %5195 = vmatprep.subr.bf16.mxu0 0
        %5196 = vmatpush2.bf16.msra.mxu0 0
        %5197 = vmatprep.subr.bf16.mxu0 0
        %5198 = vmatpush2.bf16.msra.mxu0 0
        %5199 = vmatprep.subr.bf16.mxu0 0
        %5200 = vmatpush2.bf16.msra.mxu0 0
        %5201 = vmatprep.subr.bf16.mxu0 0
        %5202 = vmatpush2.bf16.msra.mxu0 0
        %5203 = vmatprep.subr.bf16.mxu0 0
        %5204 = vmatpush2.bf16.msra.mxu0 0
        %5205 = vmatprep.subr.bf16.mxu0 0
        %5206 = vmatpush2.bf16.msra.mxu0 0
        %5207 = vmatprep.subr.bf16.mxu0 0
        %5208 = vmatpush2.bf16.msra.mxu0 0
        %5209 = vmatprep.mubr.bf16.mxu0 0
        %5210 = vmatmul.mubr.bf16.gmra.mxu0 %v5127
        %v5211 = vpop.f32.mrf.mxu0
        %v5212 = vadd.f32 0.0, %v5211
        %v5213 = vpop.f32.mrf.mxu0
        %v5214 = vpop.f32.mrf.mxu0
        %v5215 = vpop.f32.mrf.mxu0
        %5216 = vdwg.mxu0
        %v5217 = vadd.f32 %v5096, %v5212
        %v5218 = vld [vmem:[%s6] sm:$0x1]
        %v5220 = vlaneseq
        %v5221 = vshrl.u32 %v5220, 7
        %v5222 = vsub.s32 0, %v5221
        %v5223 = vrot.slane %v5218, %v5222
        %v5225 = vadd.f32 %v5217, %v5223
        %vm5226 = vcmp.gt.f32.partialorder %v5225, 0.0
        %v5227 = vmin.f32 %v5225, 0.0
        %v5228 = vmul.f32 %v5227, 1.442695
        %v5229 = vpow.pop %v5228
        %v5230 = vsub.f32 %v5229, 1.0
        %v5231 = vsel %vm5226, %v5225, %v5230
        %v5232 = vpack.c.bf16 %v5231, %v5231
        %v5233 = vld [vmem:[%s7] sm:$0xf]
        %v5234 = vld [vmem:[%s7 + $0x4] sm:$0xf]
        %v5235 = vld [vmem:[%s7 + $0x8] sm:$0xf]
        %v5236 = vld [vmem:[%s7 + $0xc] sm:$0xf]
        %v5237 = vld [vmem:[%s7 + $0x10] sm:$0xf]
        %v5238 = vld [vmem:[%s7 + $0x14] sm:$0xf]
        %v5239 = vld [vmem:[%s7 + $0x18] sm:$0xf]
        %v5240 = vld [vmem:[%s7 + $0x1c] sm:$0xf]
        %v5241 = vld [vmem:[%s7 + $0x20] sm:$0xf]
        %v5242 = vld [vmem:[%s7 + $0x24] sm:$0xf]
        %v5243 = vld [vmem:[%s7 + $0x28] sm:$0xf]
        %v5244 = vld [vmem:[%s7 + $0x2c] sm:$0xf]
        %v5245 = vld [vmem:[%s7 + $0x30] sm:$0xf]
        %v5246 = vld [vmem:[%s7 + $0x34] sm:$0xf]
        %v5247 = vld [vmem:[%s7 + $0x38] sm:$0xf]
        %v5248 = vld [vmem:[%s7 + $0x3c] sm:$0xf]
        %v5249 = vld [vmem:[%s8] sm:$0x1]
        %v5251 = vlaneseq
        %v5252 = vshrl.u32 %v5251, 7
        %v5253 = vsub.s32 0, %v5252
        %v5254 = vrot.slane %v5249, %v5253
        %v5272 = vunpack.c.l.b16 %v5233
        %v5273 = vunpack.c.l.b16 %v5234
        %v5274 = vunpack.c.l.b16 %v5235
        %v5275 = vunpack.c.l.b16 %v5236
        %v5276 = vunpack.c.l.b16 %v5237
        %v5277 = vunpack.c.l.b16 %v5238
        %v5278 = vunpack.c.l.b16 %v5239
        %v5279 = vunpack.c.l.b16 %v5240
        %v5280 = vunpack.c.l.b16 %v5241
        %v5281 = vunpack.c.l.b16 %v5242
        %v5282 = vunpack.c.l.b16 %v5243
        %v5283 = vunpack.c.l.b16 %v5244
        %v5284 = vunpack.c.l.b16 %v5245
        %v5285 = vunpack.c.l.b16 %v5246
        %v5286 = vunpack.c.l.b16 %v5247
        %v5287 = vunpack.c.l.b16 %v5248
        %v5288 = vpack.c.b16 %v5273, %v5272
        %v5289 = vpack.c.b16 %v5275, %v5274
        %v5290 = vpack.c.b16 %v5277, %v5276
        %v5291 = vpack.c.b16 %v5279, %v5278
        %v5292 = vpack.c.b16 %v5281, %v5280
        %v5293 = vpack.c.b16 %v5283, %v5282
        %v5294 = vpack.c.b16 %v5285, %v5284
        %v5295 = vpack.c.b16 %v5287, %v5286
        %5304 = vmatprep.subr.bf16.mxu0 0
        %5305 = vmatpush1.bf16.msra.mxu0 %v5295
        %5306 = vmatprep.subr.bf16.mxu0 0
        %5307 = vmatpush1.bf16.msra.mxu0 %v5294
        %5308 = vmatprep.subr.bf16.mxu0 0
        %5309 = vmatpush1.bf16.msra.mxu0 %v5293
        %5310 = vmatprep.subr.bf16.mxu0 0
        %5311 = vmatpush1.bf16.msra.mxu0 %v5292
        %5312 = vmatprep.subr.bf16.mxu0 0
        %5313 = vmatpush1.bf16.msra.mxu0 %v5291
        %5314 = vmatprep.subr.bf16.mxu0 0
        %5315 = vmatpush1.bf16.msra.mxu0 %v5290
        %5316 = vmatprep.subr.bf16.mxu0 0
        %5317 = vmatpush1.bf16.msra.mxu0 %v5289
        %5318 = vmatprep.subr.bf16.mxu0 0
        %5319 = vmatpush1.bf16.msra.mxu0 %v5288
        %5320 = vmatprep.subr.bf16.mxu0 0
        %5321 = vmatpush2.bf16.msra.mxu0 0
        %5322 = vmatprep.subr.bf16.mxu0 0
        %5323 = vmatpush2.bf16.msra.mxu0 0
        %5324 = vmatprep.subr.bf16.mxu0 0
        %5325 = vmatpush2.bf16.msra.mxu0 0
        %5326 = vmatprep.subr.bf16.mxu0 0
        %5327 = vmatpush2.bf16.msra.mxu0 0
        %5328 = vmatprep.subr.bf16.mxu0 0
        %5329 = vmatpush2.bf16.msra.mxu0 0
        %5330 = vmatprep.subr.bf16.mxu0 0
        %5331 = vmatpush2.bf16.msra.mxu0 0
        %5332 = vmatprep.subr.bf16.mxu0 0
        %5333 = vmatpush2.bf16.msra.mxu0 0
        %5334 = vmatprep.subr.bf16.mxu0 0
        %5335 = vmatpush2.bf16.msra.mxu0 0
        %5336 = vmatprep.mubr.bf16.mxu0 0
        %5337 = vmatmul.mubr.bf16.gmra.mxu0 %v5232
        %v5338 = vpop.f32.mrf.mxu0
        %v5339 = vadd.f32 %v5254, %v5338
        %v5340 = vpop.f32.mrf.mxu0
        %v5341 = vpop.f32.mrf.mxu0
        %v5342 = vpop.f32.mrf.mxu0
        %5343 = vdwg.mxu0
        %vm5344 = vcmp.gt.f32.partialorder %v5339, 0.0
        %v5345 = vmin.f32 %v5339, 0.0
        %v5346 = vmul.f32 %v5345, 1.442695
        %v5347 = vpow.pop %v5346
        %v5348 = vsub.f32 %v5347, 1.0
        %v5349 = vsel %vm5344, %v5339, %v5348
        %v5351 = vcombine.high %v5349, %v5349
        %vm5353 = vcmask 1043456
        %v5354 = vsel %vm5353, %v5349, 0.0
        %v5355 = vrot.slane %v5354, 4
        %v5356 = vadd.f32 %v5354, %v5355
        %v5357 = vrot.slane %v5356, 2
        %v5358 = vadd.f32 %v5356, %v5357
        %v5359 = vrot.slane %v5358, 1
        %v5360 = vadd.f32 %v5358, %v5359
        %v5361 = vsel %vm5353, %v5351, 0.0
        %v5362 = vrot.slane %v5361, 4
        %v5363 = vadd.f32 %v5361, %v5362
        %v5364 = vrot.slane %v5363, 2
        %v5365 = vadd.f32 %v5363, %v5364
        %v5366 = vrot.slane %v5365, 1
        %v5367 = vadd.f32 %v5365, %v5366
        %v5368 = vrcp.pop 4.0
        %v5369 = vmul.f32 %v5360, %v5368
        %v5370 = vmul.f32 %v5367, %v5368
        %5371 = vst [vmem:[%s630] sm:$0xff] %v5369
        %5372 = vst [vmem:[%s630 + $0x8] sm:$0xff] %v5370
        %s5373 = smul.u32 2, %s20
        %p5374 = scmp.lt.s32.totalorder %s5373, 3
        %s5375 = scalar_select %p5374, %s5373, 3
        %s5376 = smul.addr %s5375, 8
        %s5377 = scalar_lea.vmem %s9, %s5376
        // Predicated region
        $region98: #{classifier_net1_forward.1} parent=92 // pred_check
          %p5378 = pneg %p232
        $region99: #{classifier_net1_forward.1} parent=92 // pred_check_branch
          %5380 = sbr.rel (%p5378) target = $region101
        $region100: #{classifier_net1_forward.1} parent=92 // pred_region
          %s5381 = smul.u32 2, %s20
        $region101: #{classifier_net1_forward.1} parent=92 // pred_fallthru
          _
      $region93: #{classifier_net1_forward.1} parent=5 // pred_fallthru
        _
      %p5382 = scmp.le.s32.totalorder 2, %s15
      // Predicated region
      $region102: #{classifier_net1_forward.1} parent=5 // pred_check
        %p5383 = pneg %p5382
      $region103: #{classifier_net1_forward.1} parent=5 // pred_check_branch
        %5385 = sbr.rel (%p5383) target = $region105
      $region104: #{classifier_net1_forward.1} parent=5 // pred_region
        %s5386 = ssub.s32 %s15, 2
        // Predicated region
        $region106: #{classifier_net1_forward.1} parent=104 // pred_check
          %p5387 = pneg %p238
        $region107: #{classifier_net1_forward.1} parent=104 // pred_check_branch
          %5389 = sbr.rel (%p5387) target = $region109
        $region108: #{classifier_net1_forward.1} parent=104 // pred_region
          %s5390 = smul.u32 2, %s21
          %p5391 = scmp.lt.s32.totalorder %s5390, 3
          %s5392 = scalar_select %p5391, %s5390, 3
          %s5393 = smul.addr %s5392, 8
          %s5394 = scalar_lea.vmem %s9, %s5393
        $region109: #{classifier_net1_forward.1} parent=104 // pred_fallthru
          _
      $region105: #{classifier_net1_forward.1} parent=5 // pred_fallthru
        _
    $region6: #{classifier_net1_forward.1} parent=1 // loop_footer
      %s19 = sadd.s32 1, %s15
    $region7: #{classifier_net1_forward.1} parent=1 // loop_footer_branch
      %14 = sbr.rel target = $region3
    $region8: #{classifier_net1_forward.1} parent=1 // loop_exit
      _

</llo_original>
